<compile_context>
chip_gen: v7x
topology: tpu7x:2x2x1
jax: 0.10.0
libtpu: 0.0.40
codegen_flags: <defaults>
</compile_context>

<pallas_src>
import jax
import jax.numpy as jnp
from jax import lax
from jax.experimental import pallas as pl
from jax.experimental.pallas import tpu as pltpu

GATE_PITCH = 128   # each GRU gate gets its own 128-lane group (vreg aligned)
OUT_PITCH = 128    # softmax logits padded to one full lane tile
BPAD = 8           # batch padded to one full sublane tile


def _vmem_spec():
    return pl.BlockSpec(memory_space=pltpu.MemorySpace.VMEM)


# ------------------------------ fused kernel ------------------------------- #

def _make_fused_kernel(L, T, Bp, GP):
    """Fused (GRU stack + Linear + Softmax) kernel for static L, T, Bp, GP.

    Ref order (inputs, outputs, scratch):
      x_ref   (T*Bp, isz)    time-major flattened input (row = t*Bp + b)
      h0_ref  (L, Bp, GP)    initial hidden state per layer (zero padded)
      per layer l: wih (in_l, 3*GP), whh (GP, 3*GP),
                   bih (1, 3*GP)  [b_ih with b_hr/b_hz folded in],
                   bhn (1, GP)    [b_hn only]
                   gate order along lane groups is (r, z, n)  (PyTorch order)
      fcw_ref (GP, OUT_PITCH), fcb_ref (1, OUT_PITCH)  [pad lanes bias=-1e30]
      o_ref   (T*Bp, OUT_PITCH)  softmax probabilities, lane-dense
      hT_ref  (L, Bp, GP)        final hidden state per layer
      seq_ref (T*Bp, GP)         VMEM scratch: last layer's output sequence
    """
    H3 = 3 * GP

    def kernel(*refs):
        x_ref, h0_ref = refs[0], refs[1]
        lr = [refs[2 + 4 * l: 6 + 4 * l] for l in range(L)]
        fcw_ref = refs[2 + 4 * L]
        fcb_ref = refs[3 + 4 * L]
        o_ref = refs[4 + 4 * L]
        hT_ref = refs[5 + 4 * L]
        seq_ref = refs[6 + 4 * L]

        # --- hoisted weight loads & bias broadcasts (outside the time loop) -
        wih = [lr[l][0][...] for l in range(L)]
        whh = [lr[l][1][...] for l in range(L)]
        mm_dt = wih[0].dtype                       # matmul-operand dtype
        bih = [None if l == 0 else
               jnp.broadcast_to(lr[l][2][...], (Bp, H3)) for l in range(L)]
        bhn = [jnp.broadcast_to(lr[l][3][...], (Bp, GP)) for l in range(L)]

        # --- layer-0 input gates: ONE GEMM over all T steps (off the chain) -
        gi0_all = (jnp.dot(x_ref[...].astype(mm_dt), wih[0],
                           preferred_element_type=jnp.float32)
                   + jnp.broadcast_to(lr[0][2][...], (T * Bp, H3)))

        def gru_step(l, gi, h_prev):
            # single packed (Bp, GP) @ (GP, 3*GP) hidden-gate GEMM per step;
            # r/z/n live in their own 128-lane groups -> all slices vreg
            # aligned, r * gh_n is lane-aligned.
            gh = jnp.dot(h_prev.astype(mm_dt), whh[l],
                         preferred_element_type=jnp.float32)
            rz = jax.nn.sigmoid(gi[:, :2 * GP] + gh[:, :2 * GP])
            r, z = rz[:, :GP], rz[:, GP:]
            n = jnp.tanh(gi[:, 2 * GP:] + r * (gh[:, 2 * GP:] + bhn[l]))
            return (1.0 - z) * n + z * h_prev      # all f32 elementwise

        h = [h0_ref[l] for l in range(L)]          # (Bp, GP) per layer
        prev = [None] * L                          # latest output per layer

        # --- wavefront: diagonal d runs layer l at timestep t = d - l -------
        # Layers are visited high->low inside a diagonal so layer l consumes
        # the PREVIOUS diagonal's output of layer l-1 (same timestep t); the L
        # recurrence chains are then independent within a diagonal and the
        # scheduler overlaps their MXU pushes with EUP sigmoid/tanh.
        for d in range(T + L - 1):
            for l in reversed(range(L)):
                t = d - l
                if t < 0 or t >= T:
                    continue
                if l == 0:
                    gi = gi0_all[t * Bp:(t + 1) * Bp, :]       # tile aligned
                else:
                    gi = (jnp.dot(prev[l - 1].astype(mm_dt), wih[l],
                                  preferred_element_type=jnp.float32)
                          + bih[l])
                h_new = gru_step(l, gi, h[l])
                h[l] = h_new
                prev[l] = h_new
                if l == L - 1:
                    # full (8,128) tile store, sublane & lane aligned
                    seq_ref[t * Bp:(t + 1) * Bp, :] = h_new

        for l in range(L):
            hT_ref[l] = h[l].astype(hT_ref.dtype)              # full-tile store

        # --- Linear + Softmax head: one lane-dense GEMM over the sequence ---
        # Pad logit lanes carry a -1e30 bias so exp() underflows to 0 and the
        # softmax over 128 lanes equals the softmax over the real O lanes.
        logits = (jnp.dot(seq_ref[...].astype(mm_dt), fcw_ref[...],
                          preferred_element_type=jnp.float32)
                  + fcb_ref[...])                              # (T*Bp, 128)
        m = jnp.max(logits, axis=-1, keepdims=True)
        e = jnp.exp(logits - m)
        denom = jnp.sum(e, axis=-1, keepdims=True)
        # exact reciprocal keeps the 1e-4 reference tolerance; approx=True is
        # available if ~1e-3 is acceptable.
        o_ref[...] = (e * pl.reciprocal(denom, approx=False)).astype(o_ref.dtype)

    return kernel


# ----------------------------- wrappers ------------------------------------ #

def prepack_params(params, matmul_dtype=jnp.float32):
    """One-time PyTorch-layout -> kernel-layout repacking.

    Each gate gets its own 128-lane group; b_hr/b_hz are folded into the input
    bias; FC weights/bias are padded to 128 output lanes with -1e30 pad bias.
    Pass matmul_dtype=jnp.bfloat16 on v6e/v7x for bf16 MXU operands (loosen
    tolerances to ~1e-2 if you do).
    """
    GP, OP = GATE_PITCH, OUT_PITCH
    H = params["gru"][0]["w_hh"].shape[-1]
    O = params["fc_w"].shape[0]
    assert H <= GP and O <= OP  # TODO(synk): tile over lane groups if H/O > 128

    layers = []
    for l, lp in enumerate(params["gru"]):
        in_dim = lp["w_ih"].shape[-1]
        in_pad = in_dim if l == 0 else GP          # layer>0 input is padded h
        wih_t = jnp.transpose(lp["w_ih"])          # (in_dim, 3H), gates (r,z,n)
        whh_t = jnp.transpose(lp["w_hh"])          # (H, 3H)
        wih_p = jnp.zeros((in_pad, 3 * GP), jnp.float32)
        whh_p = jnp.zeros((GP, 3 * GP), jnp.float32)
        bih_p = jnp.zeros((1, 3 * GP), jnp.float32)
        for g in range(3):
            wih_p = wih_p.at[:in_dim, g * GP:g * GP + H].set(
                wih_t[:, g * H:(g + 1) * H])
            whh_p = whh_p.at[:H, g * GP:g * GP + H].set(
                whh_t[:, g * H:(g + 1) * H])
            b = lp["b_ih"][g * H:(g + 1) * H]
            if g < 2:   # fold b_hr / b_hz (r,z gates use gi+gh summed)
                b = b + lp["b_hh"][g * H:(g + 1) * H]
            bih_p = bih_p.at[0, g * GP:g * GP + H].set(b)
        bhn_p = (jnp.zeros((1, GP), jnp.float32)
                 .at[0, :H].set(lp["b_hh"][2 * H:3 * H]))
        layers.append(dict(wih=wih_p.astype(matmul_dtype),
                           whh=whh_p.astype(matmul_dtype),
                           bih=bih_p, bhn=bhn_p))

    fcw_p = (jnp.zeros((GP, OP), jnp.float32)
             .at[:H, :O].set(jnp.transpose(params["fc_w"])))
    fcb_p = (jnp.full((1, OP), -1e30, jnp.float32)
             .at[0, :O].set(params["fc_b"]))
    return dict(layers=layers,
                fc_w=fcw_p.astype(matmul_dtype), fc_b=fcb_p)


def rc_action_model5_forward(packed, x, h, osz):
    """x: (B, T, isz), h: (L, B, hsz) -> (o: (B, T, osz), h: (L, B, hsz))."""
    B, T, isz = x.shape
    L, _, H = h.shape
    GP, OP = GATE_PITCH, OUT_PITCH
    Bp = ((B + BPAD - 1) // BPAD) * BPAD           # pad batch to 8 sublanes
    O = osz

    # Time-major, batch-padded flattening: row index = t*Bp + b.
    x_tm = jnp.transpose(x, (1, 0, 2)).astype(jnp.float32)       # (T, B, isz)
    x_flat = (jnp.zeros((T, Bp, isz), jnp.float32)
              .at[:, :B, :].set(x_tm).reshape(T * Bp, isz))
    h_pad = jnp.zeros((L, Bp, GP), jnp.float32).at[:, :B, :H].set(h)

    args = [x_flat, h_pad]
    for lp in packed["layers"]:
        args += [lp["wih"], lp["whh"], lp["bih"], lp["bhn"]]
    args += [packed["fc_w"], packed["fc_b"]]

    # NOTE: gridless single invocation is right at B=2; for large B on v7x a
    # batch grid axis with dimension_semantics=("parallel",) would use both
    # TensorCores.
    o_pad, hT_pad = pl.pallas_call(
        _make_fused_kernel(L, T, Bp, GP),
        out_shape=(jax.ShapeDtypeStruct((T * Bp, OP), jnp.float32),
                   jax.ShapeDtypeStruct((L, Bp, GP), jnp.float32)),
        in_specs=[_vmem_spec()] * len(args),
        out_specs=(_vmem_spec(), _vmem_spec()),
        scratch_shapes=[pltpu.VMEM((T * Bp, GP), jnp.float32)],
        compiler_params=pltpu.CompilerParams(
            vmem_limit_bytes=32 * 1024 * 1024),   # safe on v5e/v6e/v7x
    )(*args)

    o = jnp.transpose(o_pad.reshape(T, Bp, OP)[:, :B, :O], (1, 0, 2))  # (B,T,O)
    hT = hT_pad[:, :B, :H]                                             # (L,B,H)
    return o, hT


# ------------------------- params / reference ------------------------------ #

def init_params(key, isz, osz, hsz, ssz):
    """Deterministic synthetic init (uniform(-1/sqrt(hsz), 1/sqrt(hsz)))."""
    k = 1.0 / jnp.sqrt(jnp.float32(hsz))
    layers = []
    for l in range(ssz):
        in_sz = isz if l == 0 else hsz
        key, k1, k2, k3, k4 = jax.random.split(key, 5)
        layers.append(dict(
            w_ih=jax.random.uniform(k1, (3 * hsz, in_sz), jnp.float32, -k, k),
            w_hh=jax.random.uniform(k2, (3 * hsz, hsz), jnp.float32, -k, k),
            b_ih=jax.random.uniform(k3, (3 * hsz,), jnp.float32, -k, k),
            b_hh=jax.random.uniform(k4, (3 * hsz,), jnp.float32, -k, k),
        ))
    key, kw, kb = jax.random.split(key, 3)
    fc_w = jax.random.uniform(kw, (osz, hsz), jnp.float32, -k, k)
    fc_b = jax.random.uniform(kb, (osz,), jnp.float32, -k, k)
    return dict(gru=layers, fc_w=fc_w, fc_b=fc_b)


def reference_forward(params, x, h):
    """Pure-JAX reference implementing torch.nn.GRU + Linear + Softmax."""
    inp = x
    hs = []
    for li, lp in enumerate(params["gru"]):
        H = h.shape[-1]
        wih = lp["w_ih"].reshape(3, H, -1)
        whh = lp["w_hh"].reshape(3, H, H)
        bih = lp["b_ih"].reshape(3, H)
        bhh = lp["b_hh"].reshape(3, H)

        def step(hprev, xt):
            gi = [xt @ wih[g].T + bih[g] for g in range(3)]
            gh = [hprev @ whh[g].T + bhh[g] for g in range(3)]
            r = jax.nn.sigmoid(gi[0] + gh[0])
            z = jax.nn.sigmoid(gi[1] + gh[1])
            n = jnp.tanh(gi[2] + r * gh[2])
            hn = (1.0 - z) * n + z * hprev
            return hn, hn

        hT, seq = lax.scan(step, h[li], jnp.transpose(inp, (1, 0, 2)))
        inp = jnp.transpose(seq, (1, 0, 2))
        hs.append(hT)
    logits = inp @ params["fc_w"].T + params["fc_b"]
    return jax.nn.softmax(logits, axis=2), jnp.stack(hs, axis=0)


if __name__ == "__main__":
    isz, osz, hsz, ssz = 16, 8, 32, 2   # input, output, hidden, num GRU layers
    B, T = 2, 8
    key = jax.random.PRNGKey(0)
    kx, kp = jax.random.split(key)
    x = jax.random.normal(kx, (B, T, isz), dtype=jnp.float32)
    h0 = jnp.zeros((ssz, B, hsz), dtype=jnp.float32)   # like model.init(B)
    params = init_params(kp, isz, osz, hsz, ssz)
    # One-time repack.  On v6e/v7x: prepack_params(params, jnp.bfloat16) for
    # bf16 MXU operands (then loosen the asserts below to ~1e-2).
    packed = prepack_params(params)

    fwd = jax.jit(rc_action_model5_forward, static_argnums=(3,))
    o, hT = fwd(packed, x, h0, osz)
    jax.block_until_ready((o, hT))

    o_ref, h_ref = reference_forward(params, x, h0)
    assert o.shape == (B, T, osz) and hT.shape == (ssz, B, hsz)
    assert jnp.allclose(o, o_ref, atol=1e-4, rtol=1e-4)
    assert jnp.allclose(hT, h_ref, atol=1e-4, rtol=1e-4)
    print("KERNEL_OK")
</pallas_src>

<mosaic_0001>
module attributes {stable_mosaic.version = 11 : i64} {
  func.func @kernel(%arg0: memref<64x16xf32, #tpu.memory_space<vmem>>, %arg1: memref<2x8x128xf32, #tpu.memory_space<vmem>>, %arg2: memref<16x384xf32, #tpu.memory_space<vmem>>, %arg3: memref<128x384xf32, #tpu.memory_space<vmem>>, %arg4: memref<1x384xf32, #tpu.memory_space<vmem>>, %arg5: memref<1x128xf32, #tpu.memory_space<vmem>>, %arg6: memref<128x384xf32, #tpu.memory_space<vmem>>, %arg7: memref<128x384xf32, #tpu.memory_space<vmem>>, %arg8: memref<1x384xf32, #tpu.memory_space<vmem>>, %arg9: memref<1x128xf32, #tpu.memory_space<vmem>>, %arg10: memref<128x128xf32, #tpu.memory_space<vmem>>, %arg11: memref<1x128xf32, #tpu.memory_space<vmem>>, %arg12: memref<64x128xf32, #tpu.memory_space<vmem>>, %arg13: memref<2x8x128xf32, #tpu.memory_space<vmem>>, %arg14: memref<64x128xf32, #tpu.memory_space<vmem>>) attributes {dimension_semantics = [], scalar_prefetch = 0 : i64, scratch_operands = 1 : i64, tpu.core_type = #tpu.core_type<tc>} {
    %c0 = arith.constant 0 : index
    %c0_0 = arith.constant 0 : index
    %0 = vector.load %arg2[%c0, %c0_0] : memref<16x384xf32, #tpu.memory_space<vmem>>, vector<16x384xf32>
    %c0_1 = arith.constant 0 : index
    %c0_2 = arith.constant 0 : index
    %1 = vector.load %arg6[%c0_1, %c0_2] : memref<128x384xf32, #tpu.memory_space<vmem>>, vector<128x384xf32>
    %c0_3 = arith.constant 0 : index
    %c0_4 = arith.constant 0 : index
    %2 = vector.load %arg3[%c0_3, %c0_4] : memref<128x384xf32, #tpu.memory_space<vmem>>, vector<128x384xf32>
    %c0_5 = arith.constant 0 : index
    %c0_6 = arith.constant 0 : index
    %3 = vector.load %arg7[%c0_5, %c0_6] : memref<128x384xf32, #tpu.memory_space<vmem>>, vector<128x384xf32>
    %c0_7 = arith.constant 0 : index
    %c0_8 = arith.constant 0 : index
    %4 = vector.load %arg8[%c0_7, %c0_8] : memref<1x384xf32, #tpu.memory_space<vmem>>, vector<1x384xf32>
    %5 = vector.shape_cast %4 : vector<1x384xf32> to vector<1x384xf32>
    %6 = vector.broadcast %5 : vector<1x384xf32> to vector<8x384xf32>
    %c0_9 = arith.constant 0 : index
    %c0_10 = arith.constant 0 : index
    %7 = vector.load %arg5[%c0_9, %c0_10] : memref<1x128xf32, #tpu.memory_space<vmem>>, vector<1x128xf32>
    %8 = vector.shape_cast %7 : vector<1x128xf32> to vector<1x128xf32>
    %9 = vector.broadcast %8 : vector<1x128xf32> to vector<8x128xf32>
    %c0_11 = arith.constant 0 : index
    %c0_12 = arith.constant 0 : index
    %10 = vector.load %arg9[%c0_11, %c0_12] : memref<1x128xf32, #tpu.memory_space<vmem>>, vector<1x128xf32>
    %11 = vector.shape_cast %10 : vector<1x128xf32> to vector<1x128xf32>
    %12 = vector.broadcast %11 : vector<1x128xf32> to vector<8x128xf32>
    %c0_13 = arith.constant 0 : index
    %c0_14 = arith.constant 0 : index
    %13 = vector.load %arg0[%c0_13, %c0_14] : memref<64x16xf32, #tpu.memory_space<vmem>>, vector<64x16xf32>
    %cst = arith.constant dense<0.000000e+00> : vector<64x384xf32>
    %14 = tpu.matmul %13, %0, %cst {dimension_numbers = #tpu.dot_dimension_numbers<[1], [0], [0], [1], [0, 0, 1, 1], [], []>} : vector<64x16xf32>, vector<16x384xf32>, vector<64x384xf32> -> vector<64x384xf32>
    %c0_15 = arith.constant 0 : index
    %c0_16 = arith.constant 0 : index
    %15 = vector.load %arg4[%c0_15, %c0_16] : memref<1x384xf32, #tpu.memory_space<vmem>>, vector<1x384xf32>
    %16 = vector.shape_cast %15 : vector<1x384xf32> to vector<1x384xf32>
    %17 = vector.broadcast %16 : vector<1x384xf32> to vector<64x384xf32>
    %18 = arith.addf %14, %17 : vector<64x384xf32>
    %c0_17 = arith.constant 0 : index
    %c0_18 = arith.constant 0 : index
    %c0_19 = arith.constant 0 : index
    %19 = vector.load %arg1[%c0_17, %c0_18, %c0_19] : memref<2x8x128xf32, #tpu.memory_space<vmem>>, vector<1x8x128xf32>
    %20 = vector.shape_cast %19 : vector<1x8x128xf32> to vector<8x128xf32>
    %c1 = arith.constant 1 : index
    %c0_20 = arith.constant 0 : index
    %c0_21 = arith.constant 0 : index
    %21 = vector.load %arg1[%c1, %c0_20, %c0_21] : memref<2x8x128xf32, #tpu.memory_space<vmem>>, vector<1x8x128xf32>
    %22 = vector.shape_cast %21 : vector<1x8x128xf32> to vector<8x128xf32>
    %23 = vector.extract_strided_slice %18 {offsets = [0, 0], sizes = [8, 384], strides = [1, 1]} : vector<64x384xf32> to vector<8x384xf32>
    %cst_22 = arith.constant dense<0.000000e+00> : vector<8x384xf32>
    %24 = tpu.matmul %20, %2, %cst_22 {dimension_numbers = #tpu.dot_dimension_numbers<[1], [0], [0], [1], [0, 0, 1, 1], [], []>} : vector<8x128xf32>, vector<128x384xf32>, vector<8x384xf32> -> vector<8x384xf32>
    %25 = vector.extract_strided_slice %23 {offsets = [0, 0], sizes = [8, 256], strides = [1, 1]} : vector<8x384xf32> to vector<8x256xf32>
    %26 = vector.extract_strided_slice %24 {offsets = [0, 0], sizes = [8, 256], strides = [1, 1]} : vector<8x384xf32> to vector<8x256xf32>
    %27 = arith.addf %25, %26 : vector<8x256xf32>
    %28 = arith.negf %27 : vector<8x256xf32>
    %29 = math.exp %28 : vector<8x256xf32>
    %cst_23 = arith.constant 1.000000e+00 : f32
    %30 = vector.broadcast %cst_23 : f32 to vector<8x256xf32>
    %31 = arith.addf %30, %29 : vector<8x256xf32>
    %32 = arith.divf %30, %31 : vector<8x256xf32>
    %33 = vector.extract_strided_slice %32 {offsets = [0, 0], sizes = [8, 128], strides = [1, 1]} : vector<8x256xf32> to vector<8x128xf32>
    %34 = vector.extract_strided_slice %32 {offsets = [0, 128], sizes = [8, 128], strides = [1, 1]} : vector<8x256xf32> to vector<8x128xf32>
    %35 = vector.extract_strided_slice %23 {offsets = [0, 256], sizes = [8, 128], strides = [1, 1]} : vector<8x384xf32> to vector<8x128xf32>
    %36 = vector.extract_strided_slice %24 {offsets = [0, 256], sizes = [8, 128], strides = [1, 1]} : vector<8x384xf32> to vector<8x128xf32>
    %37 = arith.addf %36, %9 : vector<8x128xf32>
    %38 = arith.mulf %33, %37 : vector<8x128xf32>
    %39 = arith.addf %35, %38 : vector<8x128xf32>
    %40 = math.tanh %39 : vector<8x128xf32>
    %cst_24 = arith.constant 1.000000e+00 : f32
    %41 = vector.broadcast %cst_24 : f32 to vector<8x128xf32>
    %42 = arith.subf %41, %34 : vector<8x128xf32>
    %43 = arith.mulf %42, %40 : vector<8x128xf32>
    %44 = arith.mulf %34, %20 : vector<8x128xf32>
    %45 = arith.addf %43, %44 : vector<8x128xf32>
    %cst_25 = arith.constant dense<0.000000e+00> : vector<8x384xf32>
    %46 = tpu.matmul %45, %1, %cst_25 {dimension_numbers = #tpu.dot_dimension_numbers<[1], [0], [0], [1], [0, 0, 1, 1], [], []>} : vector<8x128xf32>, vector<128x384xf32>, vector<8x384xf32> -> vector<8x384xf32>
    %47 = arith.addf %46, %6 : vector<8x384xf32>
    %cst_26 = arith.constant dense<0.000000e+00> : vector<8x384xf32>
    %48 = tpu.matmul %22, %3, %cst_26 {dimension_numbers = #tpu.dot_dimension_numbers<[1], [0], [0], [1], [0, 0, 1, 1], [], []>} : vector<8x128xf32>, vector<128x384xf32>, vector<8x384xf32> -> vector<8x384xf32>
    %49 = vector.extract_strided_slice %47 {offsets = [0, 0], sizes = [8, 256], strides = [1, 1]} : vector<8x384xf32> to vector<8x256xf32>
    %50 = vector.extract_strided_slice %48 {offsets = [0, 0], sizes = [8, 256], strides = [1, 1]} : vector<8x384xf32> to vector<8x256xf32>
    %51 = arith.addf %49, %50 : vector<8x256xf32>
    %52 = arith.negf %51 : vector<8x256xf32>
    %53 = math.exp %52 : vector<8x256xf32>
    %cst_27 = arith.constant 1.000000e+00 : f32
    %54 = vector.broadcast %cst_27 : f32 to vector<8x256xf32>
    %55 = arith.addf %54, %53 : vector<8x256xf32>
    %56 = arith.divf %54, %55 : vector<8x256xf32>
    %57 = vector.extract_strided_slice %56 {offsets = [0, 0], sizes = [8, 128], strides = [1, 1]} : vector<8x256xf32> to vector<8x128xf32>
    %58 = vector.extract_strided_slice %56 {offsets = [0, 128], sizes = [8, 128], strides = [1, 1]} : vector<8x256xf32> to vector<8x128xf32>
    %59 = vector.extract_strided_slice %47 {offsets = [0, 256], sizes = [8, 128], strides = [1, 1]} : vector<8x384xf32> to vector<8x128xf32>
    %60 = vector.extract_strided_slice %48 {offsets = [0, 256], sizes = [8, 128], strides = [1, 1]} : vector<8x384xf32> to vector<8x128xf32>
    %61 = arith.addf %60, %12 : vector<8x128xf32>
    %62 = arith.mulf %57, %61 : vector<8x128xf32>
    %63 = arith.addf %59, %62 : vector<8x128xf32>
    %64 = math.tanh %63 : vector<8x128xf32>
    %cst_28 = arith.constant 1.000000e+00 : f32
    %65 = vector.broadcast %cst_28 : f32 to vector<8x128xf32>
    %66 = arith.subf %65, %58 : vector<8x128xf32>
    %67 = arith.mulf %66, %64 : vector<8x128xf32>
    %68 = arith.mulf %58, %22 : vector<8x128xf32>
    %69 = arith.addf %67, %68 : vector<8x128xf32>
    %c0_29 = arith.constant 0 : index
    %c0_30 = arith.constant 0 : index
    %70 = vector.load %arg14[%c0_29, %c0_30] : memref<64x128xf32, #tpu.memory_space<vmem>>, vector<8x128xf32>
    tpu.vector_store %arg14[%c0_29, %c0_30], %69 {strides = array<i32>} : memref<64x128xf32, #tpu.memory_space<vmem>>, vector<8x128xf32>,
    %71 = vector.extract_strided_slice %18 {offsets = [8, 0], sizes = [8, 384], strides = [1, 1]} : vector<64x384xf32> to vector<8x384xf32>
    %cst_31 = arith.constant dense<0.000000e+00> : vector<8x384xf32>
    %72 = tpu.matmul %45, %2, %cst_31 {dimension_numbers = #tpu.dot_dimension_numbers<[1], [0], [0], [1], [0, 0, 1, 1], [], []>} : vector<8x128xf32>, vector<128x384xf32>, vector<8x384xf32> -> vector<8x384xf32>
    %73 = vector.extract_strided_slice %71 {offsets = [0, 0], sizes = [8, 256], strides = [1, 1]} : vector<8x384xf32> to vector<8x256xf32>
    %74 = vector.extract_strided_slice %72 {offsets = [0, 0], sizes = [8, 256], strides = [1, 1]} : vector<8x384xf32> to vector<8x256xf32>
    %75 = arith.addf %73, %74 : vector<8x256xf32>
    %76 = arith.negf %75 : vector<8x256xf32>
    %77 = math.exp %76 : vector<8x256xf32>
    %cst_32 = arith.constant 1.000000e+00 : f32
    %78 = vector.broadcast %cst_32 : f32 to vector<8x256xf32>
    %79 = arith.addf %78, %77 : vector<8x256xf32>
    %80 = arith.divf %78, %79 : vector<8x256xf32>
    %81 = vector.extract_strided_slice %80 {offsets = [0, 0], sizes = [8, 128], strides = [1, 1]} : vector<8x256xf32> to vector<8x128xf32>
    %82 = vector.extract_strided_slice %80 {offsets = [0, 128], sizes = [8, 128], strides = [1, 1]} : vector<8x256xf32> to vector<8x128xf32>
    %83 = vector.extract_strided_slice %71 {offsets = [0, 256], sizes = [8, 128], strides = [1, 1]} : vector<8x384xf32> to vector<8x128xf32>
    %84 = vector.extract_strided_slice %72 {offsets = [0, 256], sizes = [8, 128], strides = [1, 1]} : vector<8x384xf32> to vector<8x128xf32>
    %85 = arith.addf %84, %9 : vector<8x128xf32>
    %86 = arith.mulf %81, %85 : vector<8x128xf32>
    %87 = arith.addf %83, %86 : vector<8x128xf32>
    %88 = math.tanh %87 : vector<8x128xf32>
    %cst_33 = arith.constant 1.000000e+00 : f32
    %89 = vector.broadcast %cst_33 : f32 to vector<8x128xf32>
    %90 = arith.subf %89, %82 : vector<8x128xf32>
    %91 = arith.mulf %90, %88 : vector<8x128xf32>
    %92 = arith.mulf %82, %45 : vector<8x128xf32>
    %93 = arith.addf %91, %92 : vector<8x128xf32>
    %cst_34 = arith.constant dense<0.000000e+00> : vector<8x384xf32>
    %94 = tpu.matmul %93, %1, %cst_34 {dimension_numbers = #tpu.dot_dimension_numbers<[1], [0], [0], [1], [0, 0, 1, 1], [], []>} : vector<8x128xf32>, vector<128x384xf32>, vector<8x384xf32> -> vector<8x384xf32>
    %95 = arith.addf %94, %6 : vector<8x384xf32>
    %cst_35 = arith.constant dense<0.000000e+00> : vector<8x384xf32>
    %96 = tpu.matmul %69, %3, %cst_35 {dimension_numbers = #tpu.dot_dimension_numbers<[1], [0], [0], [1], [0, 0, 1, 1], [], []>} : vector<8x128xf32>, vector<128x384xf32>, vector<8x384xf32> -> vector<8x384xf32>
    %97 = vector.extract_strided_slice %95 {offsets = [0, 0], sizes = [8, 256], strides = [1, 1]} : vector<8x384xf32> to vector<8x256xf32>
    %98 = vector.extract_strided_slice %96 {offsets = [0, 0], sizes = [8, 256], strides = [1, 1]} : vector<8x384xf32> to vector<8x256xf32>
    %99 = arith.addf %97, %98 : vector<8x256xf32>
    %100 = arith.negf %99 : vector<8x256xf32>
    %101 = math.exp %100 : vector<8x256xf32>
    %cst_36 = arith.constant 1.000000e+00 : f32
    %102 = vector.broadcast %cst_36 : f32 to vector<8x256xf32>
    %103 = arith.addf %102, %101 : vector<8x256xf32>
    %104 = arith.divf %102, %103 : vector<8x256xf32>
    %105 = vector.extract_strided_slice %104 {offsets = [0, 0], sizes = [8, 128], strides = [1, 1]} : vector<8x256xf32> to vector<8x128xf32>
    %106 = vector.extract_strided_slice %104 {offsets = [0, 128], sizes = [8, 128], strides = [1, 1]} : vector<8x256xf32> to vector<8x128xf32>
    %107 = vector.extract_strided_slice %95 {offsets = [0, 256], sizes = [8, 128], strides = [1, 1]} : vector<8x384xf32> to vector<8x128xf32>
    %108 = vector.extract_strided_slice %96 {offsets = [0, 256], sizes = [8, 128], strides = [1, 1]} : vector<8x384xf32> to vector<8x128xf32>
    %109 = arith.addf %108, %12 : vector<8x128xf32>
    %110 = arith.mulf %105, %109 : vector<8x128xf32>
    %111 = arith.addf %107, %110 : vector<8x128xf32>
    %112 = math.tanh %111 : vector<8x128xf32>
    %cst_37 = arith.constant 1.000000e+00 : f32
    %113 = vector.broadcast %cst_37 : f32 to vector<8x128xf32>
    %114 = arith.subf %113, %106 : vector<8x128xf32>
    %115 = arith.mulf %114, %112 : vector<8x128xf32>
    %116 = arith.mulf %106, %69 : vector<8x128xf32>
    %117 = arith.addf %115, %116 : vector<8x128xf32>
    %c8 = arith.constant 8 : index
    %c0_38 = arith.constant 0 : index
    %118 = vector.load %arg14[%c8, %c0_38] : memref<64x128xf32, #tpu.memory_space<vmem>>, vector<8x128xf32>
    tpu.vector_store %arg14[%c8, %c0_38], %117 {strides = array<i32>} : memref<64x128xf32, #tpu.memory_space<vmem>>, vector<8x128xf32>,
    %119 = vector.extract_strided_slice %18 {offsets = [16, 0], sizes = [8, 384], strides = [1, 1]} : vector<64x384xf32> to vector<8x384xf32>
    %cst_39 = arith.constant dense<0.000000e+00> : vector<8x384xf32>
    %120 = tpu.matmul %93, %2, %cst_39 {dimension_numbers = #tpu.dot_dimension_numbers<[1], [0], [0], [1], [0, 0, 1, 1], [], []>} : vector<8x128xf32>, vector<128x384xf32>, vector<8x384xf32> -> vector<8x384xf32>
    %121 = vector.extract_strided_slice %119 {offsets = [0, 0], sizes = [8, 256], strides = [1, 1]} : vector<8x384xf32> to vector<8x256xf32>
    %122 = vector.extract_strided_slice %120 {offsets = [0, 0], sizes = [8, 256], strides = [1, 1]} : vector<8x384xf32> to vector<8x256xf32>
    %123 = arith.addf %121, %122 : vector<8x256xf32>
    %124 = arith.negf %123 : vector<8x256xf32>
    %125 = math.exp %124 : vector<8x256xf32>
    %cst_40 = arith.constant 1.000000e+00 : f32
    %126 = vector.broadcast %cst_40 : f32 to vector<8x256xf32>
    %127 = arith.addf %126, %125 : vector<8x256xf32>
    %128 = arith.divf %126, %127 : vector<8x256xf32>
    %129 = vector.extract_strided_slice %128 {offsets = [0, 0], sizes = [8, 128], strides = [1, 1]} : vector<8x256xf32> to vector<8x128xf32>
    %130 = vector.extract_strided_slice %128 {offsets = [0, 128], sizes = [8, 128], strides = [1, 1]} : vector<8x256xf32> to vector<8x128xf32>
    %131 = vector.extract_strided_slice %119 {offsets = [0, 256], sizes = [8, 128], strides = [1, 1]} : vector<8x384xf32> to vector<8x128xf32>
    %132 = vector.extract_strided_slice %120 {offsets = [0, 256], sizes = [8, 128], strides = [1, 1]} : vector<8x384xf32> to vector<8x128xf32>
    %133 = arith.addf %132, %9 : vector<8x128xf32>
    %134 = arith.mulf %129, %133 : vector<8x128xf32>
    %135 = arith.addf %131, %134 : vector<8x128xf32>
    %136 = math.tanh %135 : vector<8x128xf32>
    %cst_41 = arith.constant 1.000000e+00 : f32
    %137 = vector.broadcast %cst_41 : f32 to vector<8x128xf32>
    %138 = arith.subf %137, %130 : vector<8x128xf32>
    %139 = arith.mulf %138, %136 : vector<8x128xf32>
    %140 = arith.mulf %130, %93 : vector<8x128xf32>
    %141 = arith.addf %139, %140 : vector<8x128xf32>
    %cst_42 = arith.constant dense<0.000000e+00> : vector<8x384xf32>
    %142 = tpu.matmul %141, %1, %cst_42 {dimension_numbers = #tpu.dot_dimension_numbers<[1], [0], [0], [1], [0, 0, 1, 1], [], []>} : vector<8x128xf32>, vector<128x384xf32>, vector<8x384xf32> -> vector<8x384xf32>
    %143 = arith.addf %142, %6 : vector<8x384xf32>
    %cst_43 = arith.constant dense<0.000000e+00> : vector<8x384xf32>
    %144 = tpu.matmul %117, %3, %cst_43 {dimension_numbers = #tpu.dot_dimension_numbers<[1], [0], [0], [1], [0, 0, 1, 1], [], []>} : vector<8x128xf32>, vector<128x384xf32>, vector<8x384xf32> -> vector<8x384xf32>
    %145 = vector.extract_strided_slice %143 {offsets = [0, 0], sizes = [8, 256], strides = [1, 1]} : vector<8x384xf32> to vector<8x256xf32>
    %146 = vector.extract_strided_slice %144 {offsets = [0, 0], sizes = [8, 256], strides = [1, 1]} : vector<8x384xf32> to vector<8x256xf32>
    %147 = arith.addf %145, %146 : vector<8x256xf32>
    %148 = arith.negf %147 : vector<8x256xf32>
    %149 = math.exp %148 : vector<8x256xf32>
    %cst_44 = arith.constant 1.000000e+00 : f32
    %150 = vector.broadcast %cst_44 : f32 to vector<8x256xf32>
    %151 = arith.addf %150, %149 : vector<8x256xf32>
    %152 = arith.divf %150, %151 : vector<8x256xf32>
    %153 = vector.extract_strided_slice %152 {offsets = [0, 0], sizes = [8, 128], strides = [1, 1]} : vector<8x256xf32> to vector<8x128xf32>
    %154 = vector.extract_strided_slice %152 {offsets = [0, 128], sizes = [8, 128], strides = [1, 1]} : vector<8x256xf32> to vector<8x128xf32>
    %155 = vector.extract_strided_slice %143 {offsets = [0, 256], sizes = [8, 128], strides = [1, 1]} : vector<8x384xf32> to vector<8x128xf32>
    %156 = vector.extract_strided_slice %144 {offsets = [0, 256], sizes = [8, 128], strides = [1, 1]} : vector<8x384xf32> to vector<8x128xf32>
    %157 = arith.addf %156, %12 : vector<8x128xf32>
    %158 = arith.mulf %153, %157 : vector<8x128xf32>
    %159 = arith.addf %155, %158 : vector<8x128xf32>
    %160 = math.tanh %159 : vector<8x128xf32>
    %cst_45 = arith.constant 1.000000e+00 : f32
    %161 = vector.broadcast %cst_45 : f32 to vector<8x128xf32>
    %162 = arith.subf %161, %154 : vector<8x128xf32>
    %163 = arith.mulf %162, %160 : vector<8x128xf32>
    %164 = arith.mulf %154, %117 : vector<8x128xf32>
    %165 = arith.addf %163, %164 : vector<8x128xf32>
    %c16 = arith.constant 16 : index
    %c0_46 = arith.constant 0 : index
    %166 = vector.load %arg14[%c16, %c0_46] : memref<64x128xf32, #tpu.memory_space<vmem>>, vector<8x128xf32>
    tpu.vector_store %arg14[%c16, %c0_46], %165 {strides = array<i32>} : memref<64x128xf32, #tpu.memory_space<vmem>>, vector<8x128xf32>,
    %167 = vector.extract_strided_slice %18 {offsets = [24, 0], sizes = [8, 384], strides = [1, 1]} : vector<64x384xf32> to vector<8x384xf32>
    %cst_47 = arith.constant dense<0.000000e+00> : vector<8x384xf32>
    %168 = tpu.matmul %141, %2, %cst_47 {dimension_numbers = #tpu.dot_dimension_numbers<[1], [0], [0], [1], [0, 0, 1, 1], [], []>} : vector<8x128xf32>, vector<128x384xf32>, vector<8x384xf32> -> vector<8x384xf32>
    %169 = vector.extract_strided_slice %167 {offsets = [0, 0], sizes = [8, 256], strides = [1, 1]} : vector<8x384xf32> to vector<8x256xf32>
    %170 = vector.extract_strided_slice %168 {offsets = [0, 0], sizes = [8, 256], strides = [1, 1]} : vector<8x384xf32> to vector<8x256xf32>
    %171 = arith.addf %169, %170 : vector<8x256xf32>
    %172 = arith.negf %171 : vector<8x256xf32>
    %173 = math.exp %172 : vector<8x256xf32>
    %cst_48 = arith.constant 1.000000e+00 : f32
    %174 = vector.broadcast %cst_48 : f32 to vector<8x256xf32>
    %175 = arith.addf %174, %173 : vector<8x256xf32>
    %176 = arith.divf %174, %175 : vector<8x256xf32>
    %177 = vector.extract_strided_slice %176 {offsets = [0, 0], sizes = [8, 128], strides = [1, 1]} : vector<8x256xf32> to vector<8x128xf32>
    %178 = vector.extract_strided_slice %176 {offsets = [0, 128], sizes = [8, 128], strides = [1, 1]} : vector<8x256xf32> to vector<8x128xf32>
    %179 = vector.extract_strided_slice %167 {offsets = [0, 256], sizes = [8, 128], strides = [1, 1]} : vector<8x384xf32> to vector<8x128xf32>
    %180 = vector.extract_strided_slice %168 {offsets = [0, 256], sizes = [8, 128], strides = [1, 1]} : vector<8x384xf32> to vector<8x128xf32>
    %181 = arith.addf %180, %9 : vector<8x128xf32>
    %182 = arith.mulf %177, %181 : vector<8x128xf32>
    %183 = arith.addf %179, %182 : vector<8x128xf32>
    %184 = math.tanh %183 : vector<8x128xf32>
    %cst_49 = arith.constant 1.000000e+00 : f32
    %185 = vector.broadcast %cst_49 : f32 to vector<8x128xf32>
    %186 = arith.subf %185, %178 : vector<8x128xf32>
    %187 = arith.mulf %186, %184 : vector<8x128xf32>
    %188 = arith.mulf %178, %141 : vector<8x128xf32>
    %189 = arith.addf %187, %188 : vector<8x128xf32>
    %cst_50 = arith.constant dense<0.000000e+00> : vector<8x384xf32>
    %190 = tpu.matmul %189, %1, %cst_50 {dimension_numbers = #tpu.dot_dimension_numbers<[1], [0], [0], [1], [0, 0, 1, 1], [], []>} : vector<8x128xf32>, vector<128x384xf32>, vector<8x384xf32> -> vector<8x384xf32>
    %191 = arith.addf %190, %6 : vector<8x384xf32>
    %cst_51 = arith.constant dense<0.000000e+00> : vector<8x384xf32>
    %192 = tpu.matmul %165, %3, %cst_51 {dimension_numbers = #tpu.dot_dimension_numbers<[1], [0], [0], [1], [0, 0, 1, 1], [], []>} : vector<8x128xf32>, vector<128x384xf32>, vector<8x384xf32> -> vector<8x384xf32>
    %193 = vector.extract_strided_slice %191 {offsets = [0, 0], sizes = [8, 256], strides = [1, 1]} : vector<8x384xf32> to vector<8x256xf32>
    %194 = vector.extract_strided_slice %192 {offsets = [0, 0], sizes = [8, 256], strides = [1, 1]} : vector<8x384xf32> to vector<8x256xf32>
    %195 = arith.addf %193, %194 : vector<8x256xf32>
    %196 = arith.negf %195 : vector<8x256xf32>
    %197 = math.exp %196 : vector<8x256xf32>
    %cst_52 = arith.constant 1.000000e+00 : f32
    %198 = vector.broadcast %cst_52 : f32 to vector<8x256xf32>
    %199 = arith.addf %198, %197 : vector<8x256xf32>
    %200 = arith.divf %198, %199 : vector<8x256xf32>
    %201 = vector.extract_strided_slice %200 {offsets = [0, 0], sizes = [8, 128], strides = [1, 1]} : vector<8x256xf32> to vector<8x128xf32>
    %202 = vector.extract_strided_slice %200 {offsets = [0, 128], sizes = [8, 128], strides = [1, 1]} : vector<8x256xf32> to vector<8x128xf32>
    %203 = vector.extract_strided_slice %191 {offsets = [0, 256], sizes = [8, 128], strides = [1, 1]} : vector<8x384xf32> to vector<8x128xf32>
    %204 = vector.extract_strided_slice %192 {offsets = [0, 256], sizes = [8, 128], strides = [1, 1]} : vector<8x384xf32> to vector<8x128xf32>
    %205 = arith.addf %204, %12 : vector<8x128xf32>
    %206 = arith.mulf %201, %205 : vector<8x128xf32>
    %207 = arith.addf %203, %206 : vector<8x128xf32>
    %208 = math.tanh %207 : vector<8x128xf32>
    %cst_53 = arith.constant 1.000000e+00 : f32
    %209 = vector.broadcast %cst_53 : f32 to vector<8x128xf32>
    %210 = arith.subf %209, %202 : vector<8x128xf32>
    %211 = arith.mulf %210, %208 : vector<8x128xf32>
    %212 = arith.mulf %202, %165 : vector<8x128xf32>
    %213 = arith.addf %211, %212 : vector<8x128xf32>
    %c24 = arith.constant 24 : index
    %c0_54 = arith.constant 0 : index
    %214 = vector.load %arg14[%c24, %c0_54] : memref<64x128xf32, #tpu.memory_space<vmem>>, vector<8x128xf32>
    tpu.vector_store %arg14[%c24, %c0_54], %213 {strides = array<i32>} : memref<64x128xf32, #tpu.memory_space<vmem>>, vector<8x128xf32>,
    %215 = vector.extract_strided_slice %18 {offsets = [32, 0], sizes = [8, 384], strides = [1, 1]} : vector<64x384xf32> to vector<8x384xf32>
    %cst_55 = arith.constant dense<0.000000e+00> : vector<8x384xf32>
    %216 = tpu.matmul %189, %2, %cst_55 {dimension_numbers = #tpu.dot_dimension_numbers<[1], [0], [0], [1], [0, 0, 1, 1], [], []>} : vector<8x128xf32>, vector<128x384xf32>, vector<8x384xf32> -> vector<8x384xf32>
    %217 = vector.extract_strided_slice %215 {offsets = [0, 0], sizes = [8, 256], strides = [1, 1]} : vector<8x384xf32> to vector<8x256xf32>
    %218 = vector.extract_strided_slice %216 {offsets = [0, 0], sizes = [8, 256], strides = [1, 1]} : vector<8x384xf32> to vector<8x256xf32>
    %219 = arith.addf %217, %218 : vector<8x256xf32>
    %220 = arith.negf %219 : vector<8x256xf32>
    %221 = math.exp %220 : vector<8x256xf32>
    %cst_56 = arith.constant 1.000000e+00 : f32
    %222 = vector.broadcast %cst_56 : f32 to vector<8x256xf32>
    %223 = arith.addf %222, %221 : vector<8x256xf32>
    %224 = arith.divf %222, %223 : vector<8x256xf32>
    %225 = vector.extract_strided_slice %224 {offsets = [0, 0], sizes = [8, 128], strides = [1, 1]} : vector<8x256xf32> to vector<8x128xf32>
    %226 = vector.extract_strided_slice %224 {offsets = [0, 128], sizes = [8, 128], strides = [1, 1]} : vector<8x256xf32> to vector<8x128xf32>
    %227 = vector.extract_strided_slice %215 {offsets = [0, 256], sizes = [8, 128], strides = [1, 1]} : vector<8x384xf32> to vector<8x128xf32>
    %228 = vector.extract_strided_slice %216 {offsets = [0, 256], sizes = [8, 128], strides = [1, 1]} : vector<8x384xf32> to vector<8x128xf32>
    %229 = arith.addf %228, %9 : vector<8x128xf32>
    %230 = arith.mulf %225, %229 : vector<8x128xf32>
    %231 = arith.addf %227, %230 : vector<8x128xf32>
    %232 = math.tanh %231 : vector<8x128xf32>
    %cst_57 = arith.constant 1.000000e+00 : f32
    %233 = vector.broadcast %cst_57 : f32 to vector<8x128xf32>
    %234 = arith.subf %233, %226 : vector<8x128xf32>
    %235 = arith.mulf %234, %232 : vector<8x128xf32>
    %236 = arith.mulf %226, %189 : vector<8x128xf32>
    %237 = arith.addf %235, %236 : vector<8x128xf32>
    %cst_58 = arith.constant dense<0.000000e+00> : vector<8x384xf32>
    %238 = tpu.matmul %237, %1, %cst_58 {dimension_numbers = #tpu.dot_dimension_numbers<[1], [0], [0], [1], [0, 0, 1, 1], [], []>} : vector<8x128xf32>, vector<128x384xf32>, vector<8x384xf32> -> vector<8x384xf32>
    %239 = arith.addf %238, %6 : vector<8x384xf32>
    %cst_59 = arith.constant dense<0.000000e+00> : vector<8x384xf32>
    %240 = tpu.matmul %213, %3, %cst_59 {dimension_numbers = #tpu.dot_dimension_numbers<[1], [0], [0], [1], [0, 0, 1, 1], [], []>} : vector<8x128xf32>, vector<128x384xf32>, vector<8x384xf32> -> vector<8x384xf32>
    %241 = vector.extract_strided_slice %239 {offsets = [0, 0], sizes = [8, 256], strides = [1, 1]} : vector<8x384xf32> to vector<8x256xf32>
    %242 = vector.extract_strided_slice %240 {offsets = [0, 0], sizes = [8, 256], strides = [1, 1]} : vector<8x384xf32> to vector<8x256xf32>
    %243 = arith.addf %241, %242 : vector<8x256xf32>
    %244 = arith.negf %243 : vector<8x256xf32>
    %245 = math.exp %244 : vector<8x256xf32>
    %cst_60 = arith.constant 1.000000e+00 : f32
    %246 = vector.broadcast %cst_60 : f32 to vector<8x256xf32>
    %247 = arith.addf %246, %245 : vector<8x256xf32>
    %248 = arith.divf %246, %247 : vector<8x256xf32>
    %249 = vector.extract_strided_slice %248 {offsets = [0, 0], sizes = [8, 128], strides = [1, 1]} : vector<8x256xf32> to vector<8x128xf32>
    %250 = vector.extract_strided_slice %248 {offsets = [0, 128], sizes = [8, 128], strides = [1, 1]} : vector<8x256xf32> to vector<8x128xf32>
    %251 = vector.extract_strided_slice %239 {offsets = [0, 256], sizes = [8, 128], strides = [1, 1]} : vector<8x384xf32> to vector<8x128xf32>
    %252 = vector.extract_strided_slice %240 {offsets = [0, 256], sizes = [8, 128], strides = [1, 1]} : vector<8x384xf32> to vector<8x128xf32>
    %253 = arith.addf %252, %12 : vector<8x128xf32>
    %254 = arith.mulf %249, %253 : vector<8x128xf32>
    %255 = arith.addf %251, %254 : vector<8x128xf32>
    %256 = math.tanh %255 : vector<8x128xf32>
    %cst_61 = arith.constant 1.000000e+00 : f32
    %257 = vector.broadcast %cst_61 : f32 to vector<8x128xf32>
    %258 = arith.subf %257, %250 : vector<8x128xf32>
    %259 = arith.mulf %258, %256 : vector<8x128xf32>
    %260 = arith.mulf %250, %213 : vector<8x128xf32>
    %261 = arith.addf %259, %260 : vector<8x128xf32>
    %c32 = arith.constant 32 : index
    %c0_62 = arith.constant 0 : index
    %262 = vector.load %arg14[%c32, %c0_62] : memref<64x128xf32, #tpu.memory_space<vmem>>, vector<8x128xf32>
    tpu.vector_store %arg14[%c32, %c0_62], %261 {strides = array<i32>} : memref<64x128xf32, #tpu.memory_space<vmem>>, vector<8x128xf32>,
    %263 = vector.extract_strided_slice %18 {offsets = [40, 0], sizes = [8, 384], strides = [1, 1]} : vector<64x384xf32> to vector<8x384xf32>
    %cst_63 = arith.constant dense<0.000000e+00> : vector<8x384xf32>
    %264 = tpu.matmul %237, %2, %cst_63 {dimension_numbers = #tpu.dot_dimension_numbers<[1], [0], [0], [1], [0, 0, 1, 1], [], []>} : vector<8x128xf32>, vector<128x384xf32>, vector<8x384xf32> -> vector<8x384xf32>
    %265 = vector.extract_strided_slice %263 {offsets = [0, 0], sizes = [8, 256], strides = [1, 1]} : vector<8x384xf32> to vector<8x256xf32>
    %266 = vector.extract_strided_slice %264 {offsets = [0, 0], sizes = [8, 256], strides = [1, 1]} : vector<8x384xf32> to vector<8x256xf32>
    %267 = arith.addf %265, %266 : vector<8x256xf32>
    %268 = arith.negf %267 : vector<8x256xf32>
    %269 = math.exp %268 : vector<8x256xf32>
    %cst_64 = arith.constant 1.000000e+00 : f32
    %270 = vector.broadcast %cst_64 : f32 to vector<8x256xf32>
    %271 = arith.addf %270, %269 : vector<8x256xf32>
    %272 = arith.divf %270, %271 : vector<8x256xf32>
    %273 = vector.extract_strided_slice %272 {offsets = [0, 0], sizes = [8, 128], strides = [1, 1]} : vector<8x256xf32> to vector<8x128xf32>
    %274 = vector.extract_strided_slice %272 {offsets = [0, 128], sizes = [8, 128], strides = [1, 1]} : vector<8x256xf32> to vector<8x128xf32>
    %275 = vector.extract_strided_slice %263 {offsets = [0, 256], sizes = [8, 128], strides = [1, 1]} : vector<8x384xf32> to vector<8x128xf32>
    %276 = vector.extract_strided_slice %264 {offsets = [0, 256], sizes = [8, 128], strides = [1, 1]} : vector<8x384xf32> to vector<8x128xf32>
    %277 = arith.addf %276, %9 : vector<8x128xf32>
    %278 = arith.mulf %273, %277 : vector<8x128xf32>
    %279 = arith.addf %275, %278 : vector<8x128xf32>
    %280 = math.tanh %279 : vector<8x128xf32>
    %cst_65 = arith.constant 1.000000e+00 : f32
    %281 = vector.broadcast %cst_65 : f32 to vector<8x128xf32>
    %282 = arith.subf %281, %274 : vector<8x128xf32>
    %283 = arith.mulf %282, %280 : vector<8x128xf32>
    %284 = arith.mulf %274, %237 : vector<8x128xf32>
    %285 = arith.addf %283, %284 : vector<8x128xf32>
    %cst_66 = arith.constant dense<0.000000e+00> : vector<8x384xf32>
    %286 = tpu.matmul %285, %1, %cst_66 {dimension_numbers = #tpu.dot_dimension_numbers<[1], [0], [0], [1], [0, 0, 1, 1], [], []>} : vector<8x128xf32>, vector<128x384xf32>, vector<8x384xf32> -> vector<8x384xf32>
    %287 = arith.addf %286, %6 : vector<8x384xf32>
    %cst_67 = arith.constant dense<0.000000e+00> : vector<8x384xf32>
    %288 = tpu.matmul %261, %3, %cst_67 {dimension_numbers = #tpu.dot_dimension_numbers<[1], [0], [0], [1], [0, 0, 1, 1], [], []>} : vector<8x128xf32>, vector<128x384xf32>, vector<8x384xf32> -> vector<8x384xf32>
    %289 = vector.extract_strided_slice %287 {offsets = [0, 0], sizes = [8, 256], strides = [1, 1]} : vector<8x384xf32> to vector<8x256xf32>
    %290 = vector.extract_strided_slice %288 {offsets = [0, 0], sizes = [8, 256], strides = [1, 1]} : vector<8x384xf32> to vector<8x256xf32>
    %291 = arith.addf %289, %290 : vector<8x256xf32>
    %292 = arith.negf %291 : vector<8x256xf32>
    %293 = math.exp %292 : vector<8x256xf32>
    %cst_68 = arith.constant 1.000000e+00 : f32
    %294 = vector.broadcast %cst_68 : f32 to vector<8x256xf32>
    %295 = arith.addf %294, %293 : vector<8x256xf32>
    %296 = arith.divf %294, %295 : vector<8x256xf32>
    %297 = vector.extract_strided_slice %296 {offsets = [0, 0], sizes = [8, 128], strides = [1, 1]} : vector<8x256xf32> to vector<8x128xf32>
    %298 = vector.extract_strided_slice %296 {offsets = [0, 128], sizes = [8, 128], strides = [1, 1]} : vector<8x256xf32> to vector<8x128xf32>
    %299 = vector.extract_strided_slice %287 {offsets = [0, 256], sizes = [8, 128], strides = [1, 1]} : vector<8x384xf32> to vector<8x128xf32>
    %300 = vector.extract_strided_slice %288 {offsets = [0, 256], sizes = [8, 128], strides = [1, 1]} : vector<8x384xf32> to vector<8x128xf32>
    %301 = arith.addf %300, %12 : vector<8x128xf32>
    %302 = arith.mulf %297, %301 : vector<8x128xf32>
    %303 = arith.addf %299, %302 : vector<8x128xf32>
    %304 = math.tanh %303 : vector<8x128xf32>
    %cst_69 = arith.constant 1.000000e+00 : f32
    %305 = vector.broadcast %cst_69 : f32 to vector<8x128xf32>
    %306 = arith.subf %305, %298 : vector<8x128xf32>
    %307 = arith.mulf %306, %304 : vector<8x128xf32>
    %308 = arith.mulf %298, %261 : vector<8x128xf32>
    %309 = arith.addf %307, %308 : vector<8x128xf32>
    %c40 = arith.constant 40 : index
    %c0_70 = arith.constant 0 : index
    %310 = vector.load %arg14[%c40, %c0_70] : memref<64x128xf32, #tpu.memory_space<vmem>>, vector<8x128xf32>
    tpu.vector_store %arg14[%c40, %c0_70], %309 {strides = array<i32>} : memref<64x128xf32, #tpu.memory_space<vmem>>, vector<8x128xf32>,
    %311 = vector.extract_strided_slice %18 {offsets = [48, 0], sizes = [8, 384], strides = [1, 1]} : vector<64x384xf32> to vector<8x384xf32>
    %cst_71 = arith.constant dense<0.000000e+00> : vector<8x384xf32>
    %312 = tpu.matmul %285, %2, %cst_71 {dimension_numbers = #tpu.dot_dimension_numbers<[1], [0], [0], [1], [0, 0, 1, 1], [], []>} : vector<8x128xf32>, vector<128x384xf32>, vector<8x384xf32> -> vector<8x384xf32>
    %313 = vector.extract_strided_slice %311 {offsets = [0, 0], sizes = [8, 256], strides = [1, 1]} : vector<8x384xf32> to vector<8x256xf32>
    %314 = vector.extract_strided_slice %312 {offsets = [0, 0], sizes = [8, 256], strides = [1, 1]} : vector<8x384xf32> to vector<8x256xf32>
    %315 = arith.addf %313, %314 : vector<8x256xf32>
    %316 = arith.negf %315 : vector<8x256xf32>
    %317 = math.exp %316 : vector<8x256xf32>
    %cst_72 = arith.constant 1.000000e+00 : f32
    %318 = vector.broadcast %cst_72 : f32 to vector<8x256xf32>
    %319 = arith.addf %318, %317 : vector<8x256xf32>
    %320 = arith.divf %318, %319 : vector<8x256xf32>
    %321 = vector.extract_strided_slice %320 {offsets = [0, 0], sizes = [8, 128], strides = [1, 1]} : vector<8x256xf32> to vector<8x128xf32>
    %322 = vector.extract_strided_slice %320 {offsets = [0, 128], sizes = [8, 128], strides = [1, 1]} : vector<8x256xf32> to vector<8x128xf32>
    %323 = vector.extract_strided_slice %311 {offsets = [0, 256], sizes = [8, 128], strides = [1, 1]} : vector<8x384xf32> to vector<8x128xf32>
    %324 = vector.extract_strided_slice %312 {offsets = [0, 256], sizes = [8, 128], strides = [1, 1]} : vector<8x384xf32> to vector<8x128xf32>
    %325 = arith.addf %324, %9 : vector<8x128xf32>
    %326 = arith.mulf %321, %325 : vector<8x128xf32>
    %327 = arith.addf %323, %326 : vector<8x128xf32>
    %328 = math.tanh %327 : vector<8x128xf32>
    %cst_73 = arith.constant 1.000000e+00 : f32
    %329 = vector.broadcast %cst_73 : f32 to vector<8x128xf32>
    %330 = arith.subf %329, %322 : vector<8x128xf32>
    %331 = arith.mulf %330, %328 : vector<8x128xf32>
    %332 = arith.mulf %322, %285 : vector<8x128xf32>
    %333 = arith.addf %331, %332 : vector<8x128xf32>
    %cst_74 = arith.constant dense<0.000000e+00> : vector<8x384xf32>
    %334 = tpu.matmul %333, %1, %cst_74 {dimension_numbers = #tpu.dot_dimension_numbers<[1], [0], [0], [1], [0, 0, 1, 1], [], []>} : vector<8x128xf32>, vector<128x384xf32>, vector<8x384xf32> -> vector<8x384xf32>
    %335 = arith.addf %334, %6 : vector<8x384xf32>
    %cst_75 = arith.constant dense<0.000000e+00> : vector<8x384xf32>
    %336 = tpu.matmul %309, %3, %cst_75 {dimension_numbers = #tpu.dot_dimension_numbers<[1], [0], [0], [1], [0, 0, 1, 1], [], []>} : vector<8x128xf32>, vector<128x384xf32>, vector<8x384xf32> -> vector<8x384xf32>
    %337 = vector.extract_strided_slice %335 {offsets = [0, 0], sizes = [8, 256], strides = [1, 1]} : vector<8x384xf32> to vector<8x256xf32>
    %338 = vector.extract_strided_slice %336 {offsets = [0, 0], sizes = [8, 256], strides = [1, 1]} : vector<8x384xf32> to vector<8x256xf32>
    %339 = arith.addf %337, %338 : vector<8x256xf32>
    %340 = arith.negf %339 : vector<8x256xf32>
    %341 = math.exp %340 : vector<8x256xf32>
    %cst_76 = arith.constant 1.000000e+00 : f32
    %342 = vector.broadcast %cst_76 : f32 to vector<8x256xf32>
    %343 = arith.addf %342, %341 : vector<8x256xf32>
    %344 = arith.divf %342, %343 : vector<8x256xf32>
    %345 = vector.extract_strided_slice %344 {offsets = [0, 0], sizes = [8, 128], strides = [1, 1]} : vector<8x256xf32> to vector<8x128xf32>
    %346 = vector.extract_strided_slice %344 {offsets = [0, 128], sizes = [8, 128], strides = [1, 1]} : vector<8x256xf32> to vector<8x128xf32>
    %347 = vector.extract_strided_slice %335 {offsets = [0, 256], sizes = [8, 128], strides = [1, 1]} : vector<8x384xf32> to vector<8x128xf32>
    %348 = vector.extract_strided_slice %336 {offsets = [0, 256], sizes = [8, 128], strides = [1, 1]} : vector<8x384xf32> to vector<8x128xf32>
    %349 = arith.addf %348, %12 : vector<8x128xf32>
    %350 = arith.mulf %345, %349 : vector<8x128xf32>
    %351 = arith.addf %347, %350 : vector<8x128xf32>
    %352 = math.tanh %351 : vector<8x128xf32>
    %cst_77 = arith.constant 1.000000e+00 : f32
    %353 = vector.broadcast %cst_77 : f32 to vector<8x128xf32>
    %354 = arith.subf %353, %346 : vector<8x128xf32>
    %355 = arith.mulf %354, %352 : vector<8x128xf32>
    %356 = arith.mulf %346, %309 : vector<8x128xf32>
    %357 = arith.addf %355, %356 : vector<8x128xf32>
    %c48 = arith.constant 48 : index
    %c0_78 = arith.constant 0 : index
    %358 = vector.load %arg14[%c48, %c0_78] : memref<64x128xf32, #tpu.memory_space<vmem>>, vector<8x128xf32>
    tpu.vector_store %arg14[%c48, %c0_78], %357 {strides = array<i32>} : memref<64x128xf32, #tpu.memory_space<vmem>>, vector<8x128xf32>,
    %359 = vector.extract_strided_slice %18 {offsets = [56, 0], sizes = [8, 384], strides = [1, 1]} : vector<64x384xf32> to vector<8x384xf32>
    %cst_79 = arith.constant dense<0.000000e+00> : vector<8x384xf32>
    %360 = tpu.matmul %333, %2, %cst_79 {dimension_numbers = #tpu.dot_dimension_numbers<[1], [0], [0], [1], [0, 0, 1, 1], [], []>} : vector<8x128xf32>, vector<128x384xf32>, vector<8x384xf32> -> vector<8x384xf32>
    %361 = vector.extract_strided_slice %359 {offsets = [0, 0], sizes = [8, 256], strides = [1, 1]} : vector<8x384xf32> to vector<8x256xf32>
    %362 = vector.extract_strided_slice %360 {offsets = [0, 0], sizes = [8, 256], strides = [1, 1]} : vector<8x384xf32> to vector<8x256xf32>
    %363 = arith.addf %361, %362 : vector<8x256xf32>
    %364 = arith.negf %363 : vector<8x256xf32>
    %365 = math.exp %364 : vector<8x256xf32>
    %cst_80 = arith.constant 1.000000e+00 : f32
    %366 = vector.broadcast %cst_80 : f32 to vector<8x256xf32>
    %367 = arith.addf %366, %365 : vector<8x256xf32>
    %368 = arith.divf %366, %367 : vector<8x256xf32>
    %369 = vector.extract_strided_slice %368 {offsets = [0, 0], sizes = [8, 128], strides = [1, 1]} : vector<8x256xf32> to vector<8x128xf32>
    %370 = vector.extract_strided_slice %368 {offsets = [0, 128], sizes = [8, 128], strides = [1, 1]} : vector<8x256xf32> to vector<8x128xf32>
    %371 = vector.extract_strided_slice %359 {offsets = [0, 256], sizes = [8, 128], strides = [1, 1]} : vector<8x384xf32> to vector<8x128xf32>
    %372 = vector.extract_strided_slice %360 {offsets = [0, 256], sizes = [8, 128], strides = [1, 1]} : vector<8x384xf32> to vector<8x128xf32>
    %373 = arith.addf %372, %9 : vector<8x128xf32>
    %374 = arith.mulf %369, %373 : vector<8x128xf32>
    %375 = arith.addf %371, %374 : vector<8x128xf32>
    %376 = math.tanh %375 : vector<8x128xf32>
    %cst_81 = arith.constant 1.000000e+00 : f32
    %377 = vector.broadcast %cst_81 : f32 to vector<8x128xf32>
    %378 = arith.subf %377, %370 : vector<8x128xf32>
    %379 = arith.mulf %378, %376 : vector<8x128xf32>
    %380 = arith.mulf %370, %333 : vector<8x128xf32>
    %381 = arith.addf %379, %380 : vector<8x128xf32>
    %cst_82 = arith.constant dense<0.000000e+00> : vector<8x384xf32>
    %382 = tpu.matmul %381, %1, %cst_82 {dimension_numbers = #tpu.dot_dimension_numbers<[1], [0], [0], [1], [0, 0, 1, 1], [], []>} : vector<8x128xf32>, vector<128x384xf32>, vector<8x384xf32> -> vector<8x384xf32>
    %383 = arith.addf %382, %6 : vector<8x384xf32>
    %cst_83 = arith.constant dense<0.000000e+00> : vector<8x384xf32>
    %384 = tpu.matmul %357, %3, %cst_83 {dimension_numbers = #tpu.dot_dimension_numbers<[1], [0], [0], [1], [0, 0, 1, 1], [], []>} : vector<8x128xf32>, vector<128x384xf32>, vector<8x384xf32> -> vector<8x384xf32>
    %385 = vector.extract_strided_slice %383 {offsets = [0, 0], sizes = [8, 256], strides = [1, 1]} : vector<8x384xf32> to vector<8x256xf32>
    %386 = vector.extract_strided_slice %384 {offsets = [0, 0], sizes = [8, 256], strides = [1, 1]} : vector<8x384xf32> to vector<8x256xf32>
    %387 = arith.addf %385, %386 : vector<8x256xf32>
    %388 = arith.negf %387 : vector<8x256xf32>
    %389 = math.exp %388 : vector<8x256xf32>
    %cst_84 = arith.constant 1.000000e+00 : f32
    %390 = vector.broadcast %cst_84 : f32 to vector<8x256xf32>
    %391 = arith.addf %390, %389 : vector<8x256xf32>
    %392 = arith.divf %390, %391 : vector<8x256xf32>
    %393 = vector.extract_strided_slice %392 {offsets = [0, 0], sizes = [8, 128], strides = [1, 1]} : vector<8x256xf32> to vector<8x128xf32>
    %394 = vector.extract_strided_slice %392 {offsets = [0, 128], sizes = [8, 128], strides = [1, 1]} : vector<8x256xf32> to vector<8x128xf32>
    %395 = vector.extract_strided_slice %383 {offsets = [0, 256], sizes = [8, 128], strides = [1, 1]} : vector<8x384xf32> to vector<8x128xf32>
    %396 = vector.extract_strided_slice %384 {offsets = [0, 256], sizes = [8, 128], strides = [1, 1]} : vector<8x384xf32> to vector<8x128xf32>
    %397 = arith.addf %396, %12 : vector<8x128xf32>
    %398 = arith.mulf %393, %397 : vector<8x128xf32>
    %399 = arith.addf %395, %398 : vector<8x128xf32>
    %400 = math.tanh %399 : vector<8x128xf32>
    %cst_85 = arith.constant 1.000000e+00 : f32
    %401 = vector.broadcast %cst_85 : f32 to vector<8x128xf32>
    %402 = arith.subf %401, %394 : vector<8x128xf32>
    %403 = arith.mulf %402, %400 : vector<8x128xf32>
    %404 = arith.mulf %394, %357 : vector<8x128xf32>
    %405 = arith.addf %403, %404 : vector<8x128xf32>
    %c56 = arith.constant 56 : index
    %c0_86 = arith.constant 0 : index
    %406 = vector.load %arg14[%c56, %c0_86] : memref<64x128xf32, #tpu.memory_space<vmem>>, vector<8x128xf32>
    tpu.vector_store %arg14[%c56, %c0_86], %405 {strides = array<i32>} : memref<64x128xf32, #tpu.memory_space<vmem>>, vector<8x128xf32>,
    %c0_87 = arith.constant 0 : index
    %c0_88 = arith.constant 0 : index
    %c0_89 = arith.constant 0 : index
    %407 = vector.load %arg13[%c0_87, %c0_88, %c0_89] : memref<2x8x128xf32, #tpu.memory_space<vmem>>, vector<1x8x128xf32>
    %408 = vector.shape_cast %407 : vector<1x8x128xf32> to vector<8x128xf32>
    %409 = vector.shape_cast %381 : vector<8x128xf32> to vector<1x8x128xf32>
    tpu.vector_store %arg13[%c0_87, %c0_88, %c0_89], %409 {strides = array<i32>} : memref<2x8x128xf32, #tpu.memory_space<vmem>>, vector<1x8x128xf32>,
    %c1_90 = arith.constant 1 : index
    %c0_91 = arith.constant 0 : index
    %c0_92 = arith.constant 0 : index
    %410 = vector.load %arg13[%c1_90, %c0_91, %c0_92] : memref<2x8x128xf32, #tpu.memory_space<vmem>>, vector<1x8x128xf32>
    %411 = vector.shape_cast %410 : vector<1x8x128xf32> to vector<8x128xf32>
    %412 = vector.shape_cast %405 : vector<8x128xf32> to vector<1x8x128xf32>
    tpu.vector_store %arg13[%c1_90, %c0_91, %c0_92], %412 {strides = array<i32>} : memref<2x8x128xf32, #tpu.memory_space<vmem>>, vector<1x8x128xf32>,
    %c0_93 = arith.constant 0 : index
    %c0_94 = arith.constant 0 : index
    %413 = vector.load %arg14[%c0_93, %c0_94] : memref<64x128xf32, #tpu.memory_space<vmem>>, vector<64x128xf32>
    %c0_95 = arith.constant 0 : index
    %c0_96 = arith.constant 0 : index
    %414 = vector.load %arg10[%c0_95, %c0_96] : memref<128x128xf32, #tpu.memory_space<vmem>>, vector<128x128xf32>
    %cst_97 = arith.constant dense<0.000000e+00> : vector<64x128xf32>
    %415 = tpu.matmul %413, %414, %cst_97 {dimension_numbers = #tpu.dot_dimension_numbers<[1], [0], [0], [1], [0, 0, 1, 1], [], []>} : vector<64x128xf32>, vector<128x128xf32>, vector<64x128xf32> -> vector<64x128xf32>
    %c0_98 = arith.constant 0 : index
    %c0_99 = arith.constant 0 : index
    %416 = vector.load %arg11[%c0_98, %c0_99] : memref<1x128xf32, #tpu.memory_space<vmem>>, vector<1x128xf32>
    %417 = vector.broadcast %416 : vector<1x128xf32> to vector<64x128xf32>
    %418 = arith.addf %415, %417 : vector<64x128xf32>
    %cst_100 = arith.constant dense<0xFF800000> : vector<64xf32>
    %419 = vector.multi_reduction <maximumf>, %418, %cst_100 [1] : vector<64x128xf32> to vector<64xf32>
    %420 = vector.shape_cast %419 : vector<64xf32> to vector<64x1xf32>
    %421 = vector.broadcast %420 : vector<64x1xf32> to vector<64x128xf32>
    %422 = arith.subf %418, %421 : vector<64x128xf32>
    %423 = math.exp %422 : vector<64x128xf32>
    %cst_101 = arith.constant dense<0.000000e+00> : vector<64xf32>
    %424 = vector.multi_reduction <add>, %423, %cst_101 [1] : vector<64x128xf32> to vector<64xf32>
    %425 = vector.shape_cast %424 : vector<64xf32> to vector<64x1xf32>
    %426 = tpu.reciprocal %425 : vector<64x1xf32> -> vector<64x1xf32>
    %427 = vector.broadcast %426 : vector<64x1xf32> to vector<64x128xf32>
    %428 = arith.mulf %423, %427 : vector<64x128xf32>
    %c0_102 = arith.constant 0 : index
    %c0_103 = arith.constant 0 : index
    %429 = vector.load %arg12[%c0_102, %c0_103] : memref<64x128xf32, #tpu.memory_space<vmem>>, vector<64x128xf32>
    tpu.vector_store %arg12[%c0_102, %c0_103], %428 {strides = array<i32>} : memref<64x128xf32, #tpu.memory_space<vmem>>, vector<64x128xf32>,
    return
  }
}

</mosaic_0001>

<llo_original>
// kernel: rc_action_model5_forward.1
$region0: #{rc_action_model5_forward.1}
  #allocation0 [shape = 'u32[]', space=smem, size = 0x4, offset = 0x4, fixed_abs, tag = 'smem constant byte address 0x4 - core index']
  #allocation1 [shape = 'u32[144,128]{1,0:T(1,128)}', space=vmem, size = 0x12000, scoped, tag = 'internal scratch']
  #allocation2 [shape = 'f32[64,128]{1,0:T(8,128)}', space=vmem, size = 0x8000, scoped, tag = 'scratch operand']
  %s0 = inlined_call_operand.vmem [shape: f32[64,16], index: 0, kind: input, shape index: {}]
  %s1 = inlined_call_operand.vmem [shape: f32[2,8,128], index: 1, kind: input, shape index: {}]
  %s2 = inlined_call_operand.hbm [shape: f32[16,384], index: 2, kind: input, shape index: {}]
  %s3 = inlined_call_operand.hbm [shape: f32[128,384], index: 3, kind: input, shape index: {}]
  %s4 = inlined_call_operand.vmem [shape: f32[1,384], index: 4, kind: input, shape index: {}]
  %s5 = inlined_call_operand.vmem [shape: f32[1,128], index: 5, kind: input, shape index: {}]
  %s6 = inlined_call_operand.hbm [shape: f32[128,384], index: 6, kind: input, shape index: {}]
  %s7 = inlined_call_operand.hbm [shape: f32[128,384], index: 7, kind: input, shape index: {}]
  %s8 = inlined_call_operand.vmem [shape: f32[1,384], index: 8, kind: input, shape index: {}]
  %s9 = inlined_call_operand.vmem [shape: f32[1,128], index: 9, kind: input, shape index: {}]
  %s10 = inlined_call_operand.vmem [shape: f32[128,128], index: 10, kind: input, shape index: {}]
  %s11 = inlined_call_operand.vmem [shape: f32[1,128], index: 11, kind: input, shape index: {}]
  %s12 = inlined_call_operand.vmem [shape: f32[64,128], index: 12, kind: output, shape index: {0}]
  %s13 = inlined_call_operand.vmem [shape: f32[2,8,128], index: 13, kind: output, shape index: {1}]
  %14 = xla_tuple %s12, %s13
  %s15 = sld [smem:[#allocation0]]
  $region82: #{rc_action_model5_forward.1} parent=0
    _
  %s17 = ssub.s32 1, %s15
  %s18 = scalar_select 0, %s17, %s15
  $region1: #{rc_action_model5_forward.1} parent=0
    #allocation3 [shape = 'u8[24576]{0}', space=vmem, size = 0x6000, scoped, tag = 'input window, operand 2, single buffered']
    #allocation4 [shape = 's32[1]{0}', space=sflag, size = 0x4, scoped, tag = 'scoped memory for rc_action_model5_forward.1']
    #allocation5 [shape = 'u8[196608]{0}', space=vmem, size = 0x30000, scoped, tag = 'input window, operand 3, single buffered']
    #allocation6 [shape = 's32[1]{0}', space=sflag, size = 0x4, scoped, tag = 'scoped memory for rc_action_model5_forward.1']
    #allocation7 [shape = 'u8[196608]{0}', space=vmem, size = 0x30000, scoped, tag = 'input window, operand 6, single buffered']
    #allocation8 [shape = 'u8[196608]{0}', space=vmem, size = 0x30000, scoped, tag = 'input window, operand 7, single buffered']
    #allocation9 [shape = 's32[1]{0}', space=sflag, size = 0x4, scoped, tag = 'scoped memory for rc_action_model5_forward.1']
    %19 = vsyncpa [#allocation4], 0
    %20 = vsyncpa [#allocation6], 0
    %21 = vsyncpa [#allocation9], 0
    // Predicated region
    $region2: #{rc_action_model5_forward.1} parent=1 // pred_check
      _
    $region3: #{rc_action_model5_forward.1} parent=1 // pred_check_branch
      %23 = sbr.rel (0) target = $region5
    $region4: #{rc_action_model5_forward.1} parent=1 // pred_region
      _
    $region5: #{rc_action_model5_forward.1} parent=1 // pred_fallthru
      _
    // Predicated region
    $region6: #{rc_action_model5_forward.1} parent=1 // pred_check
      _
    $region7: #{rc_action_model5_forward.1} parent=1 // pred_check_branch
      %25 = sbr.rel (0) target = $region9
    $region8: #{rc_action_model5_forward.1} parent=1 // pred_region
      _
    $region9: #{rc_action_model5_forward.1} parent=1 // pred_fallthru
      _
    // Predicated region
    $region10: #{rc_action_model5_forward.1} parent=1 // pred_check
      _
    $region11: #{rc_action_model5_forward.1} parent=1 // pred_check_branch
      %27 = sbr.rel (0) target = $region13
    $region12: #{rc_action_model5_forward.1} parent=1 // pred_region
      %s29 = ssub.s32 768, 768
      %30 = vsyncadd [#allocation4], %s29
      %s31 = sshll.u32 [#allocation3], 4
      %s32 = int_to_ptr.vmem [resolvable:$true] %s31
      %37 = dma.hbm_to_vmem [thread:$0]  %s2, 768, %s32, [#allocation4], 384, 384, 24
    $region13: #{rc_action_model5_forward.1} parent=1 // pred_fallthru
      _
    // Predicated region
    $region14: #{rc_action_model5_forward.1} parent=1 // pred_check
      _
    $region15: #{rc_action_model5_forward.1} parent=1 // pred_check_branch
      %39 = sbr.rel (0) target = $region17
    $region16: #{rc_action_model5_forward.1} parent=1 // pred_region
      %s41 = ssub.s32 6144, 6144
      %42 = vsyncadd [#allocation6], %s41
      %s43 = sshll.u32 [#allocation5], 4
      %s44 = int_to_ptr.vmem [resolvable:$true] %s43
      %49 = dma.hbm_to_vmem [thread:$0]  %s3, 6144, %s44, [#allocation6], 384, 384, 24
    $region17: #{rc_action_model5_forward.1} parent=1 // pred_fallthru
      _
    // Predicated region
    $region18: #{rc_action_model5_forward.1} parent=1 // pred_check
      _
    $region19: #{rc_action_model5_forward.1} parent=1 // pred_check_branch
      %51 = sbr.rel (0) target = $region21
    $region20: #{rc_action_model5_forward.1} parent=1 // pred_region
      _
    $region21: #{rc_action_model5_forward.1} parent=1 // pred_fallthru
      _
    // Predicated region
    $region22: #{rc_action_model5_forward.1} parent=1 // pred_check
      _
    $region23: #{rc_action_model5_forward.1} parent=1 // pred_check_branch
      %53 = sbr.rel (0) target = $region25
    $region24: #{rc_action_model5_forward.1} parent=1 // pred_region
      _
    $region25: #{rc_action_model5_forward.1} parent=1 // pred_fallthru
      _
    // Predicated region
    $region26: #{rc_action_model5_forward.1} parent=1 // pred_check
      _
    $region27: #{rc_action_model5_forward.1} parent=1 // pred_check_branch
      %55 = sbr.rel (0) target = $region29
    $region28: #{rc_action_model5_forward.1} parent=1 // pred_region
      %s57 = ssub.s32 6144, 6144
      %58 = vsyncadd [#allocation6], %s57
      %s59 = sshll.u32 [#allocation7], 4
      %s60 = int_to_ptr.vmem [resolvable:$true] %s59
      %65 = dma.hbm_to_vmem [thread:$0]  %s6, 6144, %s60, [#allocation6], 384, 384, 24
    $region29: #{rc_action_model5_forward.1} parent=1 // pred_fallthru
      _
    // Predicated region
    $region30: #{rc_action_model5_forward.1} parent=1 // pred_check
      _
    $region31: #{rc_action_model5_forward.1} parent=1 // pred_check_branch
      %67 = sbr.rel (0) target = $region33
    $region32: #{rc_action_model5_forward.1} parent=1 // pred_region
      %s69 = ssub.s32 6144, 6144
      %70 = vsyncadd [#allocation9], %s69
      %s71 = sshll.u32 [#allocation8], 4
      %s72 = int_to_ptr.vmem [resolvable:$true] %s71
      %77 = dma.hbm_to_vmem [thread:$0]  %s7, 6144, %s72, [#allocation9], 384, 384, 24
    $region33: #{rc_action_model5_forward.1} parent=1 // pred_fallthru
      _
    // Predicated region
    $region34: #{rc_action_model5_forward.1} parent=1 // pred_check
      _
    $region35: #{rc_action_model5_forward.1} parent=1 // pred_check_branch
      %79 = sbr.rel (0) target = $region37
    $region36: #{rc_action_model5_forward.1} parent=1 // pred_region
      _
    $region37: #{rc_action_model5_forward.1} parent=1 // pred_fallthru
      _
    // Predicated region
    $region38: #{rc_action_model5_forward.1} parent=1 // pred_check
      _
    $region39: #{rc_action_model5_forward.1} parent=1 // pred_check_branch
      %81 = sbr.rel (0) target = $region41
    $region40: #{rc_action_model5_forward.1} parent=1 // pred_region
      _
    $region41: #{rc_action_model5_forward.1} parent=1 // pred_fallthru
      _
    // Predicated region
    $region42: #{rc_action_model5_forward.1} parent=1 // pred_check
      _
    $region43: #{rc_action_model5_forward.1} parent=1 // pred_check_branch
      %83 = sbr.rel (0) target = $region45
    $region44: #{rc_action_model5_forward.1} parent=1 // pred_region
      _
    $region45: #{rc_action_model5_forward.1} parent=1 // pred_fallthru
      _
    // Predicated region
    $region46: #{rc_action_model5_forward.1} parent=1 // pred_check
      _
    $region47: #{rc_action_model5_forward.1} parent=1 // pred_check_branch
      %85 = sbr.rel (0) target = $region49
    $region48: #{rc_action_model5_forward.1} parent=1 // pred_region
      _
    $region49: #{rc_action_model5_forward.1} parent=1 // pred_fallthru
      _
    // Predicated region
    $region50: #{rc_action_model5_forward.1} parent=1 // pred_check
      _
    $region51: #{rc_action_model5_forward.1} parent=1 // pred_check_branch
      %87 = sbr.rel (0) target = $region53
    $region52: #{rc_action_model5_forward.1} parent=1 // pred_region
      %88 = dma.done [#allocation4], 768
    $region53: #{rc_action_model5_forward.1} parent=1 // pred_fallthru
      _
    // Predicated region
    $region54: #{rc_action_model5_forward.1} parent=1 // pred_check
      _
    $region55: #{rc_action_model5_forward.1} parent=1 // pred_check_branch
      %90 = sbr.rel (0) target = $region57
    $region56: #{rc_action_model5_forward.1} parent=1 // pred_region
      %91 = dma.done [#allocation6], 6144
    $region57: #{rc_action_model5_forward.1} parent=1 // pred_fallthru
      _
    // Predicated region
    $region58: #{rc_action_model5_forward.1} parent=1 // pred_check
      _
    $region59: #{rc_action_model5_forward.1} parent=1 // pred_check_branch
      %93 = sbr.rel (0) target = $region61
    $region60: #{rc_action_model5_forward.1} parent=1 // pred_region
      %94 = dma.done [#allocation6], 6144
    $region61: #{rc_action_model5_forward.1} parent=1 // pred_fallthru
      _
    // Predicated region
    $region62: #{rc_action_model5_forward.1} parent=1 // pred_check
      _
    $region63: #{rc_action_model5_forward.1} parent=1 // pred_check_branch
      %96 = sbr.rel (0) target = $region65
    $region64: #{rc_action_model5_forward.1} parent=1 // pred_region
      %97 = dma.done [#allocation9], 6144
    $region65: #{rc_action_model5_forward.1} parent=1 // pred_fallthru
      _
    %v98 = vld [vmem:[#allocation3] sm:$0xff]
    %v99 = vld [vmem:[#allocation3 + $0x8] sm:$0xff]
    %v100 = vld [vmem:[#allocation3 + $0x10] sm:$0xff]
    %v101 = vld [vmem:[#allocation3 + $0x18] sm:$0xff]
    %v102 = vld [vmem:[#allocation3 + $0x20] sm:$0xff]
    %v103 = vld [vmem:[#allocation3 + $0x28] sm:$0xff]
    %v104 = vld [vmem:[#allocation7] sm:$0xff]
    %v105 = vld [vmem:[#allocation7 + $0x8] sm:$0xff]
    %v106 = vld [vmem:[#allocation7 + $0x10] sm:$0xff]
    %v107 = vld [vmem:[#allocation7 + $0x18] sm:$0xff]
    %v108 = vld [vmem:[#allocation7 + $0x20] sm:$0xff]
    %v109 = vld [vmem:[#allocation7 + $0x28] sm:$0xff]
    %v110 = vld [vmem:[#allocation7 + $0x30] sm:$0xff]
    %v111 = vld [vmem:[#allocation7 + $0x38] sm:$0xff]
    %v112 = vld [vmem:[#allocation7 + $0x40] sm:$0xff]
    %v113 = vld [vmem:[#allocation7 + $0x48] sm:$0xff]
    %v114 = vld [vmem:[#allocation7 + $0x50] sm:$0xff]
    %v115 = vld [vmem:[#allocation7 + $0x58] sm:$0xff]
    %v116 = vld [vmem:[#allocation7 + $0x60] sm:$0xff]
    %v117 = vld [vmem:[#allocation7 + $0x68] sm:$0xff]
    %v118 = vld [vmem:[#allocation7 + $0x70] sm:$0xff]
    %v119 = vld [vmem:[#allocation7 + $0x78] sm:$0xff]
    %v120 = vld [vmem:[#allocation7 + $0x80] sm:$0xff]
    %v121 = vld [vmem:[#allocation7 + $0x88] sm:$0xff]
    %v122 = vld [vmem:[#allocation7 + $0x90] sm:$0xff]
    %v123 = vld [vmem:[#allocation7 + $0x98] sm:$0xff]
    %v124 = vld [vmem:[#allocation7 + $0xa0] sm:$0xff]
    %v125 = vld [vmem:[#allocation7 + $0xa8] sm:$0xff]
    %v126 = vld [vmem:[#allocation7 + $0xb0] sm:$0xff]
    %v127 = vld [vmem:[#allocation7 + $0xb8] sm:$0xff]
    %v128 = vld [vmem:[#allocation7 + $0xc0] sm:$0xff]
    %v129 = vld [vmem:[#allocation7 + $0xc8] sm:$0xff]
    %v130 = vld [vmem:[#allocation7 + $0xd0] sm:$0xff]
    %v131 = vld [vmem:[#allocation7 + $0xd8] sm:$0xff]
    %v132 = vld [vmem:[#allocation7 + $0xe0] sm:$0xff]
    %v133 = vld [vmem:[#allocation7 + $0xe8] sm:$0xff]
    %v134 = vld [vmem:[#allocation7 + $0xf0] sm:$0xff]
    %v135 = vld [vmem:[#allocation7 + $0xf8] sm:$0xff]
    %v136 = vld [vmem:[#allocation7 + $0x100] sm:$0xff]
    %v137 = vld [vmem:[#allocation7 + $0x108] sm:$0xff]
    %v138 = vld [vmem:[#allocation7 + $0x110] sm:$0xff]
    %v139 = vld [vmem:[#allocation7 + $0x118] sm:$0xff]
    %v140 = vld [vmem:[#allocation7 + $0x120] sm:$0xff]
    %v141 = vld [vmem:[#allocation7 + $0x128] sm:$0xff]
    %v142 = vld [vmem:[#allocation7 + $0x130] sm:$0xff]
    %v143 = vld [vmem:[#allocation7 + $0x138] sm:$0xff]
    %v144 = vld [vmem:[#allocation7 + $0x140] sm:$0xff]
    %v145 = vld [vmem:[#allocation7 + $0x148] sm:$0xff]
    %v146 = vld [vmem:[#allocation7 + $0x150] sm:$0xff]
    %v147 = vld [vmem:[#allocation7 + $0x158] sm:$0xff]
    %v148 = vld [vmem:[#allocation7 + $0x160] sm:$0xff]
    %v149 = vld [vmem:[#allocation7 + $0x168] sm:$0xff]
    %v150 = vld [vmem:[#allocation7 + $0x170] sm:$0xff]
    %v151 = vld [vmem:[#allocation7 + $0x178] sm:$0xff]
    %v152 = vld [vmem:[#allocation5] sm:$0xff]
    %v153 = vld [vmem:[#allocation5 + $0x8] sm:$0xff]
    %v154 = vld [vmem:[#allocation5 + $0x10] sm:$0xff]
    %v155 = vld [vmem:[#allocation5 + $0x18] sm:$0xff]
    %v156 = vld [vmem:[#allocation5 + $0x20] sm:$0xff]
    %v157 = vld [vmem:[#allocation5 + $0x28] sm:$0xff]
    %v158 = vld [vmem:[#allocation5 + $0x30] sm:$0xff]
    %v159 = vld [vmem:[#allocation5 + $0x38] sm:$0xff]
    %v160 = vld [vmem:[#allocation5 + $0x40] sm:$0xff]
    %v161 = vld [vmem:[#allocation5 + $0x48] sm:$0xff]
    %v162 = vld [vmem:[#allocation5 + $0x50] sm:$0xff]
    %v163 = vld [vmem:[#allocation5 + $0x58] sm:$0xff]
    %v164 = vld [vmem:[#allocation5 + $0x60] sm:$0xff]
    %v165 = vld [vmem:[#allocation5 + $0x68] sm:$0xff]
    %v166 = vld [vmem:[#allocation5 + $0x70] sm:$0xff]
    %v167 = vld [vmem:[#allocation5 + $0x78] sm:$0xff]
    %v168 = vld [vmem:[#allocation5 + $0x80] sm:$0xff]
    %v169 = vld [vmem:[#allocation5 + $0x88] sm:$0xff]
    %v170 = vld [vmem:[#allocation5 + $0x90] sm:$0xff]
    %v171 = vld [vmem:[#allocation5 + $0x98] sm:$0xff]
    %v172 = vld [vmem:[#allocation5 + $0xa0] sm:$0xff]
    %v173 = vld [vmem:[#allocation5 + $0xa8] sm:$0xff]
    %v174 = vld [vmem:[#allocation5 + $0xb0] sm:$0xff]
    %v175 = vld [vmem:[#allocation5 + $0xb8] sm:$0xff]
    %v176 = vld [vmem:[#allocation5 + $0xc0] sm:$0xff]
    %v177 = vld [vmem:[#allocation5 + $0xc8] sm:$0xff]
    %v178 = vld [vmem:[#allocation5 + $0xd0] sm:$0xff]
    %v179 = vld [vmem:[#allocation5 + $0xd8] sm:$0xff]
    %v180 = vld [vmem:[#allocation5 + $0xe0] sm:$0xff]
    %v181 = vld [vmem:[#allocation5 + $0xe8] sm:$0xff]
    %v182 = vld [vmem:[#allocation5 + $0xf0] sm:$0xff]
    %v183 = vld [vmem:[#allocation5 + $0xf8] sm:$0xff]
    %v184 = vld [vmem:[#allocation5 + $0x100] sm:$0xff]
    %v185 = vld [vmem:[#allocation5 + $0x108] sm:$0xff]
    %v186 = vld [vmem:[#allocation5 + $0x110] sm:$0xff]
    %v187 = vld [vmem:[#allocation5 + $0x118] sm:$0xff]
    %v188 = vld [vmem:[#allocation5 + $0x120] sm:$0xff]
    %v189 = vld [vmem:[#allocation5 + $0x128] sm:$0xff]
    %v190 = vld [vmem:[#allocation5 + $0x130] sm:$0xff]
    %v191 = vld [vmem:[#allocation5 + $0x138] sm:$0xff]
    %v192 = vld [vmem:[#allocation5 + $0x140] sm:$0xff]
    %v193 = vld [vmem:[#allocation5 + $0x148] sm:$0xff]
    %v194 = vld [vmem:[#allocation5 + $0x150] sm:$0xff]
    %v195 = vld [vmem:[#allocation5 + $0x158] sm:$0xff]
    %v196 = vld [vmem:[#allocation5 + $0x160] sm:$0xff]
    %v197 = vld [vmem:[#allocation5 + $0x168] sm:$0xff]
    %v198 = vld [vmem:[#allocation5 + $0x170] sm:$0xff]
    %v199 = vld [vmem:[#allocation5 + $0x178] sm:$0xff]
    %v200 = vld [vmem:[#allocation8] sm:$0xff]
    %v201 = vld [vmem:[#allocation8 + $0x8] sm:$0xff]
    %v202 = vld [vmem:[#allocation8 + $0x10] sm:$0xff]
    %v203 = vld [vmem:[#allocation8 + $0x18] sm:$0xff]
    %v204 = vld [vmem:[#allocation8 + $0x20] sm:$0xff]
    %v205 = vld [vmem:[#allocation8 + $0x28] sm:$0xff]
    %v206 = vld [vmem:[#allocation8 + $0x30] sm:$0xff]
    %v207 = vld [vmem:[#allocation8 + $0x38] sm:$0xff]
    %v208 = vld [vmem:[#allocation8 + $0x40] sm:$0xff]
    %v209 = vld [vmem:[#allocation8 + $0x48] sm:$0xff]
    %v210 = vld [vmem:[#allocation8 + $0x50] sm:$0xff]
    %v211 = vld [vmem:[#allocation8 + $0x58] sm:$0xff]
    %v212 = vld [vmem:[#allocation8 + $0x60] sm:$0xff]
    %v213 = vld [vmem:[#allocation8 + $0x68] sm:$0xff]
    %v214 = vld [vmem:[#allocation8 + $0x70] sm:$0xff]
    %v215 = vld [vmem:[#allocation8 + $0x78] sm:$0xff]
    %v216 = vld [vmem:[#allocation8 + $0x80] sm:$0xff]
    %v217 = vld [vmem:[#allocation8 + $0x88] sm:$0xff]
    %v218 = vld [vmem:[#allocation8 + $0x90] sm:$0xff]
    %v219 = vld [vmem:[#allocation8 + $0x98] sm:$0xff]
    %v220 = vld [vmem:[#allocation8 + $0xa0] sm:$0xff]
    %v221 = vld [vmem:[#allocation8 + $0xa8] sm:$0xff]
    %v222 = vld [vmem:[#allocation8 + $0xb0] sm:$0xff]
    %v223 = vld [vmem:[#allocation8 + $0xb8] sm:$0xff]
    %v224 = vld [vmem:[#allocation8 + $0xc0] sm:$0xff]
    %v225 = vld [vmem:[#allocation8 + $0xc8] sm:$0xff]
    %v226 = vld [vmem:[#allocation8 + $0xd0] sm:$0xff]
    %v227 = vld [vmem:[#allocation8 + $0xd8] sm:$0xff]
    %v228 = vld [vmem:[#allocation8 + $0xe0] sm:$0xff]
    %v229 = vld [vmem:[#allocation8 + $0xe8] sm:$0xff]
    %v230 = vld [vmem:[#allocation8 + $0xf0] sm:$0xff]
    %v231 = vld [vmem:[#allocation8 + $0xf8] sm:$0xff]
    %v232 = vld [vmem:[#allocation8 + $0x100] sm:$0xff]
    %v233 = vld [vmem:[#allocation8 + $0x108] sm:$0xff]
    %v234 = vld [vmem:[#allocation8 + $0x110] sm:$0xff]
    %v235 = vld [vmem:[#allocation8 + $0x118] sm:$0xff]
    %v236 = vld [vmem:[#allocation8 + $0x120] sm:$0xff]
    %v237 = vld [vmem:[#allocation8 + $0x128] sm:$0xff]
    %v238 = vld [vmem:[#allocation8 + $0x130] sm:$0xff]
    %v239 = vld [vmem:[#allocation8 + $0x138] sm:$0xff]
    %v240 = vld [vmem:[#allocation8 + $0x140] sm:$0xff]
    %v241 = vld [vmem:[#allocation8 + $0x148] sm:$0xff]
    %v242 = vld [vmem:[#allocation8 + $0x150] sm:$0xff]
    %v243 = vld [vmem:[#allocation8 + $0x158] sm:$0xff]
    %v244 = vld [vmem:[#allocation8 + $0x160] sm:$0xff]
    %v245 = vld [vmem:[#allocation8 + $0x168] sm:$0xff]
    %v246 = vld [vmem:[#allocation8 + $0x170] sm:$0xff]
    %v247 = vld [vmem:[#allocation8 + $0x178] sm:$0xff]
    %v248 = vld [vmem:[%s8] sm:$0x7]
    %v250 = vlaneseq
    %v251 = vshrl.u32 %v250, 7
    %v252 = vsub.s32 0, %v251
    %v253 = vrot.slane %v248, %v252
    %v254 = vlaneseq
    %v255 = vshrl.u32 %v254, 7
    %v256 = vsub.s32 1, %v255
    %v257 = vrot.slane %v248, %v256
    %v258 = vlaneseq
    %v259 = vshrl.u32 %v258, 7
    %v260 = vsub.s32 2, %v259
    %v261 = vrot.slane %v248, %v260
    %v265 = vld [vmem:[%s5] sm:$0x1]
    %v267 = vlaneseq
    %v268 = vshrl.u32 %v267, 7
    %v269 = vsub.s32 0, %v268
    %v270 = vrot.slane %v265, %v269
    %v272 = vld [vmem:[%s9] sm:$0x1]
    %v274 = vlaneseq
    %v275 = vshrl.u32 %v274, 7
    %v276 = vsub.s32 0, %v275
    %v277 = vrot.slane %v272, %v276
    %v279 = vld [vmem:[%s0] sm:$0xff]
    %v280 = vld [vmem:[%s0 + $0x8] sm:$0xff]
    %v281 = vld [vmem:[%s0 + $0x10] sm:$0xff]
    %v282 = vld [vmem:[%s0 + $0x18] sm:$0xff]
    %v283 = vld [vmem:[%s0 + $0x20] sm:$0xff]
    %v284 = vld [vmem:[%s0 + $0x28] sm:$0xff]
    %v285 = vld [vmem:[%s0 + $0x30] sm:$0xff]
    %v286 = vld [vmem:[%s0 + $0x38] sm:$0xff]
    %v287 = vld [vmem:[%s4] sm:$0x7]
    %v289 = vlaneseq
    %v290 = vshrl.u32 %v289, 7
    %v291 = vsub.s32 0, %v290
    %v292 = vrot.slane %v287, %v291
    %v293 = vlaneseq
    %v294 = vshrl.u32 %v293, 7
    %v295 = vsub.s32 1, %v294
    %v296 = vrot.slane %v287, %v295
    %v297 = vlaneseq
    %v298 = vshrl.u32 %v297, 7
    %v299 = vsub.s32 2, %v298
    %v300 = vrot.slane %v287, %v299
    %vm304 = vcmask 130048
    %v306 = vsel %vm304, %v279, 0
    %v309 = vsel %vm304, %v280, 0
    %v312 = vsel %vm304, %v281, 0
    %v315 = vsel %vm304, %v282, 0
    %v318 = vsel %vm304, %v283, 0
    %v321 = vsel %vm304, %v284, 0
    %v324 = vsel %vm304, %v285, 0
    %v327 = vsel %vm304, %v286, 0
    %329 = vmatprep.subr.mxu0 %v99
    %330 = vmatpush1.msra.mxu0 %v98
    %331 = vmatprep.subr.mxu0 %v102
    %332 = vmatpush1.msra.mxu0 %v101
    %333 = vmatprep.subr.mxu0 0.0
    %334 = vmatpush1.msra.mxu0 0.0
    %335 = vmatprep.subr.mxu0 0.0
    %336 = vmatpush1.msra.mxu0 0.0
    %337 = vmatprep.subr.mxu0 0.0
    %338 = vmatpush1.msra.mxu0 0.0
    %339 = vmatprep.subr.mxu0 0.0
    %340 = vmatpush1.msra.mxu0 0.0
    %341 = vmatprep.subr.mxu0 0.0
    %342 = vmatpush1.msra.mxu0 0.0
    %343 = vmatprep.subr.mxu0 0.0
    %344 = vmatpush1.msra.mxu0 0.0
    %345 = vmatprep.subr.mxu0 0.0
    %346 = vmatpush1.msra.mxu0 0.0
    %347 = vmatprep.subr.mxu0 0.0
    %348 = vmatpush1.msra.mxu0 0.0
    %349 = vmatprep.subr.mxu0 0.0
    %350 = vmatpush1.msra.mxu0 0.0
    %351 = vmatprep.subr.mxu0 0.0
    %352 = vmatpush1.msra.mxu0 0.0
    %353 = vmatprep.subr.mxu0 0.0
    %354 = vmatpush1.msra.mxu0 0.0
    %355 = vmatprep.subr.mxu0 0.0
    %356 = vmatpush1.msra.mxu0 0.0
    %357 = vmatprep.subr.mxu0 0.0
    %358 = vmatpush1.msra.mxu0 0.0
    %359 = vmatprep.subr.mxu0 0.0
    %360 = vmatpush1.msra.mxu0 0.0
    %361 = vmatprep.subr.mxu0 0.0
    %362 = vmatpush1.msra.mxu0 0.0
    %363 = vmatprep.subr.mxu0 0.0
    %364 = vmatpush1.msra.mxu0 0.0
    %365 = vmatprep.subr.mxu0 0.0
    %366 = vmatpush1.msra.mxu0 0.0
    %367 = vmatprep.subr.mxu0 0.0
    %368 = vmatpush1.msra.mxu0 0.0
    %369 = vmatprep.subr.mxu0 0.0
    %370 = vmatpush1.msra.mxu0 0.0
    %371 = vmatprep.subr.mxu0 0.0
    %372 = vmatpush1.msra.mxu0 0.0
    %373 = vmatprep.subr.mxu0 0.0
    %374 = vmatpush1.msra.mxu0 0.0
    %375 = vmatprep.subr.mxu0 0.0
    %376 = vmatpush1.msra.mxu0 0.0
    %377 = vmatprep.subr.mxu0 0.0
    %378 = vmatpush1.msra.mxu0 0.0
    %379 = vmatprep.subr.mxu0 0.0
    %380 = vmatpush1.msra.mxu0 0.0
    %381 = vmatprep.subr.mxu0 0.0
    %382 = vmatpush1.msra.mxu0 0.0
    %383 = vmatprep.subr.mxu0 0.0
    %384 = vmatpush1.msra.mxu0 0.0
    %385 = vmatprep.subr.mxu0 0.0
    %386 = vmatpush1.msra.mxu0 0.0
    %387 = vmatprep.subr.mxu0 0.0
    %388 = vmatpush1.msra.mxu0 0.0
    %389 = vmatprep.subr.mxu0 0.0
    %390 = vmatpush1.msra.mxu0 0.0
    %391 = vmatprep.subr.mxu0 0.0
    %392 = vmatpush1.msra.mxu0 0.0
    %393 = vmatprep.mubr.f32.mxu0 0.0
    %394 = vmatmul.mubr.f32.gmra.mrb[0].mxu0 %v306
    %v395 = vpop.f32.mrb[0].mxu0
    %v396 = vadd.f32 %v292, %v395
    %v397 = vpop.f32.mrb[0].mxu0
    %v398 = vadd.f32 %v296, %v397
    %399 = vmatprep.mubr.f32.mxu0 0.0
    %400 = vmatmul.mubr.f32.gmra.mrb[0].mxu0 %v309
    %v401 = vpop.f32.mrb[0].mxu0
    %v402 = vadd.f32 %v292, %v401
    %v403 = vpop.f32.mrb[0].mxu0
    %v404 = vadd.f32 %v296, %v403
    %405 = vmatprep.mubr.f32.mxu0 0.0
    %406 = vmatmul.mubr.f32.gmra.mrb[0].mxu0 %v312
    %v407 = vpop.f32.mrb[0].mxu0
    %v408 = vadd.f32 %v292, %v407
    %v409 = vpop.f32.mrb[0].mxu0
    %v410 = vadd.f32 %v296, %v409
    %411 = vmatprep.mubr.f32.mxu0 0.0
    %412 = vmatmul.mubr.f32.gmra.mrb[0].mxu0 %v315
    %v413 = vpop.f32.mrb[0].mxu0
    %v414 = vadd.f32 %v292, %v413
    %v415 = vpop.f32.mrb[0].mxu0
    %v416 = vadd.f32 %v296, %v415
    %417 = vmatprep.mubr.f32.mxu0 0.0
    %418 = vmatmul.mubr.f32.gmra.mrb[0].mxu0 %v318
    %v419 = vpop.f32.mrb[0].mxu0
    %v420 = vadd.f32 %v292, %v419
    %v421 = vpop.f32.mrb[0].mxu0
    %v422 = vadd.f32 %v296, %v421
    %423 = vmatprep.mubr.f32.mxu0 0.0
    %424 = vmatmul.mubr.f32.gmra.mrb[0].mxu0 %v321
    %v425 = vpop.f32.mrb[0].mxu0
    %v426 = vadd.f32 %v292, %v425
    %v427 = vpop.f32.mrb[0].mxu0
    %v428 = vadd.f32 %v296, %v427
    %429 = vmatprep.mubr.f32.mxu0 0.0
    %430 = vmatmul.mubr.f32.gmra.mrb[0].mxu0 %v324
    %v431 = vpop.f32.mrb[0].mxu0
    %v432 = vadd.f32 %v292, %v431
    %v433 = vpop.f32.mrb[0].mxu0
    %v434 = vadd.f32 %v296, %v433
    %435 = vmatprep.mubr.f32.mxu0 0.0
    %436 = vmatmul.mubr.f32.gmra.mrb[0].mxu0 %v327
    %v437 = vpop.f32.mrb[0].mxu0
    %v438 = vadd.f32 %v292, %v437
    %v439 = vpop.f32.mrb[0].mxu0
    %v440 = vadd.f32 %v296, %v439
    %441 = vdwg.mxu0
    %442 = vmatprep.subr.mxu0 0.0
    %443 = vmatpush1.msra.mxu0 %v100
    %444 = vmatprep.subr.mxu0 0.0
    %445 = vmatpush1.msra.mxu0 %v103
    %446 = vmatprep.subr.mxu0 0.0
    %447 = vmatpush1.msra.mxu0 0.0
    %448 = vmatprep.subr.mxu0 0.0
    %449 = vmatpush1.msra.mxu0 0.0
    %450 = vmatprep.subr.mxu0 0.0
    %451 = vmatpush1.msra.mxu0 0.0
    %452 = vmatprep.subr.mxu0 0.0
    %453 = vmatpush1.msra.mxu0 0.0
    %454 = vmatprep.subr.mxu0 0.0
    %455 = vmatpush1.msra.mxu0 0.0
    %456 = vmatprep.subr.mxu0 0.0
    %457 = vmatpush1.msra.mxu0 0.0
    %458 = vmatprep.subr.mxu0 0.0
    %459 = vmatpush1.msra.mxu0 0.0
    %460 = vmatprep.subr.mxu0 0.0
    %461 = vmatpush1.msra.mxu0 0.0
    %462 = vmatprep.subr.mxu0 0.0
    %463 = vmatpush1.msra.mxu0 0.0
    %464 = vmatprep.subr.mxu0 0.0
    %465 = vmatpush1.msra.mxu0 0.0
    %466 = vmatprep.subr.mxu0 0.0
    %467 = vmatpush1.msra.mxu0 0.0
    %468 = vmatprep.subr.mxu0 0.0
    %469 = vmatpush1.msra.mxu0 0.0
    %470 = vmatprep.subr.mxu0 0.0
    %471 = vmatpush1.msra.mxu0 0.0
    %472 = vmatprep.subr.mxu0 0.0
    %473 = vmatpush1.msra.mxu0 0.0
    %474 = vmatprep.subr.mxu0 0.0
    %475 = vmatpush1.msra.mxu0 0.0
    %476 = vmatprep.subr.mxu0 0.0
    %477 = vmatpush1.msra.mxu0 0.0
    %478 = vmatprep.subr.mxu0 0.0
    %479 = vmatpush1.msra.mxu0 0.0
    %480 = vmatprep.subr.mxu0 0.0
    %481 = vmatpush1.msra.mxu0 0.0
    %482 = vmatprep.subr.mxu0 0.0
    %483 = vmatpush1.msra.mxu0 0.0
    %484 = vmatprep.subr.mxu0 0.0
    %485 = vmatpush1.msra.mxu0 0.0
    %486 = vmatprep.subr.mxu0 0.0
    %487 = vmatpush1.msra.mxu0 0.0
    %488 = vmatprep.subr.mxu0 0.0
    %489 = vmatpush1.msra.mxu0 0.0
    %490 = vmatprep.subr.mxu0 0.0
    %491 = vmatpush1.msra.mxu0 0.0
    %492 = vmatprep.subr.mxu0 0.0
    %493 = vmatpush1.msra.mxu0 0.0
    %494 = vmatprep.subr.mxu0 0.0
    %495 = vmatpush1.msra.mxu0 0.0
    %496 = vmatprep.subr.mxu0 0.0
    %497 = vmatpush1.msra.mxu0 0.0
    %498 = vmatprep.subr.mxu0 0.0
    %499 = vmatpush1.msra.mxu0 0.0
    %500 = vmatprep.subr.mxu0 0.0
    %501 = vmatpush1.msra.mxu0 0.0
    %502 = vmatprep.subr.mxu0 0.0
    %503 = vmatpush1.msra.mxu0 0.0
    %504 = vmatprep.subr.mxu0 0.0
    %505 = vmatpush1.msra.mxu0 0.0
    %506 = vmatprep.mubr.f32.mxu0 0.0
    %507 = vmatmul.mubr.f32.gmra.mrb[0].mxu0 %v306
    %v508 = vpop.f32.mrb[0].mxu0
    %v509 = vadd.f32 %v300, %v508
    %v510 = vpop.f32.mrb[0].mxu0
    %511 = vmatprep.mubr.f32.mxu0 0.0
    %512 = vmatmul.mubr.f32.gmra.mrb[0].mxu0 %v309
    %v513 = vpop.f32.mrb[0].mxu0
    %v514 = vadd.f32 %v300, %v513
    %v515 = vpop.f32.mrb[0].mxu0
    %516 = vmatprep.mubr.f32.mxu0 0.0
    %517 = vmatmul.mubr.f32.gmra.mrb[0].mxu0 %v312
    %v518 = vpop.f32.mrb[0].mxu0
    %v519 = vadd.f32 %v300, %v518
    %v520 = vpop.f32.mrb[0].mxu0
    %521 = vmatprep.mubr.f32.mxu0 0.0
    %522 = vmatmul.mubr.f32.gmra.mrb[0].mxu0 %v315
    %v523 = vpop.f32.mrb[0].mxu0
    %v524 = vadd.f32 %v300, %v523
    %v525 = vpop.f32.mrb[0].mxu0
    %526 = vmatprep.mubr.f32.mxu0 0.0
    %527 = vmatmul.mubr.f32.gmra.mrb[0].mxu0 %v318
    %v528 = vpop.f32.mrb[0].mxu0
    %v529 = vadd.f32 %v300, %v528
    %v530 = vpop.f32.mrb[0].mxu0
    %531 = vmatprep.mubr.f32.mxu0 0.0
    %532 = vmatmul.mubr.f32.gmra.mrb[0].mxu0 %v321
    %v533 = vpop.f32.mrb[0].mxu0
    %v534 = vadd.f32 %v300, %v533
    %v535 = vpop.f32.mrb[0].mxu0
    %536 = vmatprep.mubr.f32.mxu0 0.0
    %537 = vmatmul.mubr.f32.gmra.mrb[0].mxu0 %v324
    %v538 = vpop.f32.mrb[0].mxu0
    %v539 = vadd.f32 %v300, %v538
    %v540 = vpop.f32.mrb[0].mxu0
    %541 = vmatprep.mubr.f32.mxu0 0.0
    %542 = vmatmul.mubr.f32.gmra.mrb[0].mxu0 %v327
    %v543 = vpop.f32.mrb[0].mxu0
    %v544 = vadd.f32 %v300, %v543
    %v545 = vpop.f32.mrb[0].mxu0
    %546 = vdwg.mxu0
    %v547 = vld [vmem:[%s1] sm:$0xff]
    %s548 = scalar_lea.vmem %s1, 8
    %v549 = vld [vmem:[%s548] sm:$0xff]
    %550 = vmatprep.subr.mxu0 %v153
    %551 = vmatpush1.msra.mxu0 %v152
    %552 = vmatprep.subr.mxu0 %v156
    %553 = vmatpush1.msra.mxu0 %v155
    %554 = vmatprep.subr.mxu0 %v159
    %555 = vmatpush1.msra.mxu0 %v158
    %556 = vmatprep.subr.mxu0 %v162
    %557 = vmatpush1.msra.mxu0 %v161
    %558 = vmatprep.subr.mxu0 %v165
    %559 = vmatpush1.msra.mxu0 %v164
    %560 = vmatprep.subr.mxu0 %v168
    %561 = vmatpush1.msra.mxu0 %v167
    %562 = vmatprep.subr.mxu0 %v171
    %563 = vmatpush1.msra.mxu0 %v170
    %564 = vmatprep.subr.mxu0 %v174
    %565 = vmatpush1.msra.mxu0 %v173
    %566 = vmatprep.subr.mxu0 %v177
    %567 = vmatpush1.msra.mxu0 %v176
    %568 = vmatprep.subr.mxu0 %v180
    %569 = vmatpush1.msra.mxu0 %v179
    %570 = vmatprep.subr.mxu0 %v183
    %571 = vmatpush1.msra.mxu0 %v182
    %572 = vmatprep.subr.mxu0 %v186
    %573 = vmatpush1.msra.mxu0 %v185
    %574 = vmatprep.subr.mxu0 %v189
    %575 = vmatpush1.msra.mxu0 %v188
    %576 = vmatprep.subr.mxu0 %v192
    %577 = vmatpush1.msra.mxu0 %v191
    %578 = vmatprep.subr.mxu0 %v195
    %579 = vmatpush1.msra.mxu0 %v194
    %580 = vmatprep.subr.mxu0 %v198
    %581 = vmatpush1.msra.mxu0 %v197
    %582 = vmatprep.subr.mxu0 0.0
    %583 = vmatpush1.msra.mxu0 0.0
    %584 = vmatprep.subr.mxu0 0.0
    %585 = vmatpush1.msra.mxu0 0.0
    %586 = vmatprep.subr.mxu0 0.0
    %587 = vmatpush1.msra.mxu0 0.0
    %588 = vmatprep.subr.mxu0 0.0
    %589 = vmatpush1.msra.mxu0 0.0
    %590 = vmatprep.subr.mxu0 0.0
    %591 = vmatpush1.msra.mxu0 0.0
    %592 = vmatprep.subr.mxu0 0.0
    %593 = vmatpush1.msra.mxu0 0.0
    %594 = vmatprep.subr.mxu0 0.0
    %595 = vmatpush1.msra.mxu0 0.0
    %596 = vmatprep.subr.mxu0 0.0
    %597 = vmatpush1.msra.mxu0 0.0
    %598 = vmatprep.subr.mxu0 0.0
    %599 = vmatpush1.msra.mxu0 0.0
    %600 = vmatprep.subr.mxu0 0.0
    %601 = vmatpush1.msra.mxu0 0.0
    %602 = vmatprep.subr.mxu0 0.0
    %603 = vmatpush1.msra.mxu0 0.0
    %604 = vmatprep.subr.mxu0 0.0
    %605 = vmatpush1.msra.mxu0 0.0
    %606 = vmatprep.subr.mxu0 0.0
    %607 = vmatpush1.msra.mxu0 0.0
    %608 = vmatprep.subr.mxu0 0.0
    %609 = vmatpush1.msra.mxu0 0.0
    %610 = vmatprep.subr.mxu0 0.0
    %611 = vmatpush1.msra.mxu0 0.0
    %612 = vmatprep.subr.mxu0 0.0
    %613 = vmatpush1.msra.mxu0 0.0
    %614 = vmatprep.mubr.f32.mxu0 0.0
    %615 = vmatmul.mubr.f32.gmra.mrb[0].mxu0 %v547
    %v616 = vpop.f32.mrb[0].mxu0
    %v617 = vadd.f32 0.0, %v616
    %v618 = vpop.f32.mrb[0].mxu0
    %v619 = vadd.f32 0.0, %v618
    %620 = vdwg.mxu0
    %621 = vmatprep.subr.mxu0 0.0
    %622 = vmatpush1.msra.mxu0 %v154
    %623 = vmatprep.subr.mxu0 0.0
    %624 = vmatpush1.msra.mxu0 %v157
    %625 = vmatprep.subr.mxu0 0.0
    %626 = vmatpush1.msra.mxu0 %v160
    %627 = vmatprep.subr.mxu0 0.0
    %628 = vmatpush1.msra.mxu0 %v163
    %629 = vmatprep.subr.mxu0 0.0
    %630 = vmatpush1.msra.mxu0 %v166
    %631 = vmatprep.subr.mxu0 0.0
    %632 = vmatpush1.msra.mxu0 %v169
    %633 = vmatprep.subr.mxu0 0.0
    %634 = vmatpush1.msra.mxu0 %v172
    %635 = vmatprep.subr.mxu0 0.0
    %636 = vmatpush1.msra.mxu0 %v175
    %637 = vmatprep.subr.mxu0 0.0
    %638 = vmatpush1.msra.mxu0 %v178
    %639 = vmatprep.subr.mxu0 0.0
    %640 = vmatpush1.msra.mxu0 %v181
    %641 = vmatprep.subr.mxu0 0.0
    %642 = vmatpush1.msra.mxu0 %v184
    %643 = vmatprep.subr.mxu0 0.0
    %644 = vmatpush1.msra.mxu0 %v187
    %645 = vmatprep.subr.mxu0 0.0
    %646 = vmatpush1.msra.mxu0 %v190
    %647 = vmatprep.subr.mxu0 0.0
    %648 = vmatpush1.msra.mxu0 %v193
    %649 = vmatprep.subr.mxu0 0.0
    %650 = vmatpush1.msra.mxu0 %v196
    %651 = vmatprep.subr.mxu0 0.0
    %652 = vmatpush1.msra.mxu0 %v199
    %653 = vmatprep.subr.mxu0 0.0
    %654 = vmatpush1.msra.mxu0 0.0
    %655 = vmatprep.subr.mxu0 0.0
    %656 = vmatpush1.msra.mxu0 0.0
    %657 = vmatprep.subr.mxu0 0.0
    %658 = vmatpush1.msra.mxu0 0.0
    %659 = vmatprep.subr.mxu0 0.0
    %660 = vmatpush1.msra.mxu0 0.0
    %661 = vmatprep.subr.mxu0 0.0
    %662 = vmatpush1.msra.mxu0 0.0
    %663 = vmatprep.subr.mxu0 0.0
    %664 = vmatpush1.msra.mxu0 0.0
    %665 = vmatprep.subr.mxu0 0.0
    %666 = vmatpush1.msra.mxu0 0.0
    %667 = vmatprep.subr.mxu0 0.0
    %668 = vmatpush1.msra.mxu0 0.0
    %669 = vmatprep.subr.mxu0 0.0
    %670 = vmatpush1.msra.mxu0 0.0
    %671 = vmatprep.subr.mxu0 0.0
    %672 = vmatpush1.msra.mxu0 0.0
    %673 = vmatprep.subr.mxu0 0.0
    %674 = vmatpush1.msra.mxu0 0.0
    %675 = vmatprep.subr.mxu0 0.0
    %676 = vmatpush1.msra.mxu0 0.0
    %677 = vmatprep.subr.mxu0 0.0
    %678 = vmatpush1.msra.mxu0 0.0
    %679 = vmatprep.subr.mxu0 0.0
    %680 = vmatpush1.msra.mxu0 0.0
    %681 = vmatprep.subr.mxu0 0.0
    %682 = vmatpush1.msra.mxu0 0.0
    %683 = vmatprep.subr.mxu0 0.0
    %684 = vmatpush1.msra.mxu0 0.0
    %685 = vmatprep.mubr.f32.mxu0 0.0
    %686 = vmatmul.mubr.f32.gmra.mrb[0].mxu0 %v547
    %v687 = vpop.f32.mrb[0].mxu0
    %v688 = vadd.f32 0.0, %v687
    %v689 = vpop.f32.mrb[0].mxu0
    %690 = vdwg.mxu0
    %v691 = vadd.f32 %v396, %v617
    %v692 = vadd.f32 %v398, %v619
    %v693 = vxor.u32 %v691, 2147483648
    %v694 = vxor.u32 %v692, 2147483648
    %v695 = vmul.f32 %v693, 1.442695
    %v696 = vpow.pop %v695
    %v697 = vmul.f32 %v694, 1.442695
    %v698 = vpow.pop %v697
    %v699 = vadd.f32 %v696, 1.0
    %v700 = vadd.f32 %v698, 1.0
    %v701 = vrcp.pop %v699
    %v702 = vmul.f32 1.0, %v701
    %v703 = vrcp.pop %v700
    %v704 = vmul.f32 1.0, %v703
    %v705 = vadd.f32 %v688, %v270
    %v706 = vmul.f32 %v702, %v705
    %v707 = vadd.f32 %v509, %v706
    %v708 = vtanh.pop %v707
    %v709 = vsub.f32 1.0, %v704
    %v710 = vmul.f32 %v709, %v708
    %v711 = vmul.f32 %v704, %v547
    %v712 = vadd.f32 %v710, %v711
    %713 = vmatprep.subr.mxu0 %v105
    %714 = vmatpush1.msra.mxu0 %v104
    %715 = vmatprep.subr.mxu0 %v108
    %716 = vmatpush1.msra.mxu0 %v107
    %717 = vmatprep.subr.mxu0 %v111
    %718 = vmatpush1.msra.mxu0 %v110
    %719 = vmatprep.subr.mxu0 %v114
    %720 = vmatpush1.msra.mxu0 %v113
    %721 = vmatprep.subr.mxu0 %v117
    %722 = vmatpush1.msra.mxu0 %v116
    %723 = vmatprep.subr.mxu0 %v120
    %724 = vmatpush1.msra.mxu0 %v119
    %725 = vmatprep.subr.mxu0 %v123
    %726 = vmatpush1.msra.mxu0 %v122
    %727 = vmatprep.subr.mxu0 %v126
    %728 = vmatpush1.msra.mxu0 %v125
    %729 = vmatprep.subr.mxu0 %v129
    %730 = vmatpush1.msra.mxu0 %v128
    %731 = vmatprep.subr.mxu0 %v132
    %732 = vmatpush1.msra.mxu0 %v131
    %733 = vmatprep.subr.mxu0 %v135
    %734 = vmatpush1.msra.mxu0 %v134
    %735 = vmatprep.subr.mxu0 %v138
    %736 = vmatpush1.msra.mxu0 %v137
    %737 = vmatprep.subr.mxu0 %v141
    %738 = vmatpush1.msra.mxu0 %v140
    %739 = vmatprep.subr.mxu0 %v144
    %740 = vmatpush1.msra.mxu0 %v143
    %741 = vmatprep.subr.mxu0 %v147
    %742 = vmatpush1.msra.mxu0 %v146
    %743 = vmatprep.subr.mxu0 %v150
    %744 = vmatpush1.msra.mxu0 %v149
    %745 = vmatprep.subr.mxu0 0.0
    %746 = vmatpush1.msra.mxu0 0.0
    %747 = vmatprep.subr.mxu0 0.0
    %748 = vmatpush1.msra.mxu0 0.0
    %749 = vmatprep.subr.mxu0 0.0
    %750 = vmatpush1.msra.mxu0 0.0
    %751 = vmatprep.subr.mxu0 0.0
    %752 = vmatpush1.msra.mxu0 0.0
    %753 = vmatprep.subr.mxu0 0.0
    %754 = vmatpush1.msra.mxu0 0.0
    %755 = vmatprep.subr.mxu0 0.0
    %756 = vmatpush1.msra.mxu0 0.0
    %757 = vmatprep.subr.mxu0 0.0
    %758 = vmatpush1.msra.mxu0 0.0
    %759 = vmatprep.subr.mxu0 0.0
    %760 = vmatpush1.msra.mxu0 0.0
    %761 = vmatprep.subr.mxu0 0.0
    %762 = vmatpush1.msra.mxu0 0.0
    %763 = vmatprep.subr.mxu0 0.0
    %764 = vmatpush1.msra.mxu0 0.0
    %765 = vmatprep.subr.mxu0 0.0
    %766 = vmatpush1.msra.mxu0 0.0
    %767 = vmatprep.subr.mxu0 0.0
    %768 = vmatpush1.msra.mxu0 0.0
    %769 = vmatprep.subr.mxu0 0.0
    %770 = vmatpush1.msra.mxu0 0.0
    %771 = vmatprep.subr.mxu0 0.0
    %772 = vmatpush1.msra.mxu0 0.0
    %773 = vmatprep.subr.mxu0 0.0
    %774 = vmatpush1.msra.mxu0 0.0
    %775 = vmatprep.subr.mxu0 0.0
    %776 = vmatpush1.msra.mxu0 0.0
    %777 = vmatprep.mubr.f32.mxu0 0.0
    %778 = vmatmul.mubr.f32.gmra.mrb[0].mxu0 %v712
    %v779 = vpop.f32.mrb[0].mxu0
    %v780 = vadd.f32 %v253, %v779
    %v781 = vpop.f32.mrb[0].mxu0
    %v782 = vadd.f32 %v257, %v781
    %783 = vdwg.mxu0
    %784 = vmatprep.subr.mxu0 0.0
    %785 = vmatpush1.msra.mxu0 %v106
    %786 = vmatprep.subr.mxu0 0.0
    %787 = vmatpush1.msra.mxu0 %v109
    %788 = vmatprep.subr.mxu0 0.0
    %789 = vmatpush1.msra.mxu0 %v112
    %790 = vmatprep.subr.mxu0 0.0
    %791 = vmatpush1.msra.mxu0 %v115
    %792 = vmatprep.subr.mxu0 0.0
    %793 = vmatpush1.msra.mxu0 %v118
    %794 = vmatprep.subr.mxu0 0.0
    %795 = vmatpush1.msra.mxu0 %v121
    %796 = vmatprep.subr.mxu0 0.0
    %797 = vmatpush1.msra.mxu0 %v124
    %798 = vmatprep.subr.mxu0 0.0
    %799 = vmatpush1.msra.mxu0 %v127
    %800 = vmatprep.subr.mxu0 0.0
    %801 = vmatpush1.msra.mxu0 %v130
    %802 = vmatprep.subr.mxu0 0.0
    %803 = vmatpush1.msra.mxu0 %v133
    %804 = vmatprep.subr.mxu0 0.0
    %805 = vmatpush1.msra.mxu0 %v136
    %806 = vmatprep.subr.mxu0 0.0
    %807 = vmatpush1.msra.mxu0 %v139
    %808 = vmatprep.subr.mxu0 0.0
    %809 = vmatpush1.msra.mxu0 %v142
    %810 = vmatprep.subr.mxu0 0.0
    %811 = vmatpush1.msra.mxu0 %v145
    %812 = vmatprep.subr.mxu0 0.0
    %813 = vmatpush1.msra.mxu0 %v148
    %814 = vmatprep.subr.mxu0 0.0
    %815 = vmatpush1.msra.mxu0 %v151
    %816 = vmatprep.subr.mxu0 0.0
    %817 = vmatpush1.msra.mxu0 0.0
    %818 = vmatprep.subr.mxu0 0.0
    %819 = vmatpush1.msra.mxu0 0.0
    %820 = vmatprep.subr.mxu0 0.0
    %821 = vmatpush1.msra.mxu0 0.0
    %822 = vmatprep.subr.mxu0 0.0
    %823 = vmatpush1.msra.mxu0 0.0
    %824 = vmatprep.subr.mxu0 0.0
    %825 = vmatpush1.msra.mxu0 0.0
    %826 = vmatprep.subr.mxu0 0.0
    %827 = vmatpush1.msra.mxu0 0.0
    %828 = vmatprep.subr.mxu0 0.0
    %829 = vmatpush1.msra.mxu0 0.0
    %830 = vmatprep.subr.mxu0 0.0
    %831 = vmatpush1.msra.mxu0 0.0
    %832 = vmatprep.subr.mxu0 0.0
    %833 = vmatpush1.msra.mxu0 0.0
    %834 = vmatprep.subr.mxu0 0.0
    %835 = vmatpush1.msra.mxu0 0.0
    %836 = vmatprep.subr.mxu0 0.0
    %837 = vmatpush1.msra.mxu0 0.0
    %838 = vmatprep.subr.mxu0 0.0
    %839 = vmatpush1.msra.mxu0 0.0
    %840 = vmatprep.subr.mxu0 0.0
    %841 = vmatpush1.msra.mxu0 0.0
    %842 = vmatprep.subr.mxu0 0.0
    %843 = vmatpush1.msra.mxu0 0.0
    %844 = vmatprep.subr.mxu0 0.0
    %845 = vmatpush1.msra.mxu0 0.0
    %846 = vmatprep.subr.mxu0 0.0
    %847 = vmatpush1.msra.mxu0 0.0
    %848 = vmatprep.mubr.f32.mxu0 0.0
    %849 = vmatmul.mubr.f32.gmra.mrb[0].mxu0 %v712
    %v850 = vpop.f32.mrb[0].mxu0
    %v851 = vadd.f32 %v261, %v850
    %v852 = vpop.f32.mrb[0].mxu0
    %853 = vdwg.mxu0
    %854 = vmatprep.subr.mxu0 %v201
    %855 = vmatpush1.msra.mxu0 %v200
    %856 = vmatprep.subr.mxu0 %v204
    %857 = vmatpush1.msra.mxu0 %v203
    %858 = vmatprep.subr.mxu0 %v207
    %859 = vmatpush1.msra.mxu0 %v206
    %860 = vmatprep.subr.mxu0 %v210
    %861 = vmatpush1.msra.mxu0 %v209
    %862 = vmatprep.subr.mxu0 %v213
    %863 = vmatpush1.msra.mxu0 %v212
    %864 = vmatprep.subr.mxu0 %v216
    %865 = vmatpush1.msra.mxu0 %v215
    %866 = vmatprep.subr.mxu0 %v219
    %867 = vmatpush1.msra.mxu0 %v218
    %868 = vmatprep.subr.mxu0 %v222
    %869 = vmatpush1.msra.mxu0 %v221
    %870 = vmatprep.subr.mxu0 %v225
    %871 = vmatpush1.msra.mxu0 %v224
    %872 = vmatprep.subr.mxu0 %v228
    %873 = vmatpush1.msra.mxu0 %v227
    %874 = vmatprep.subr.mxu0 %v231
    %875 = vmatpush1.msra.mxu0 %v230
    %876 = vmatprep.subr.mxu0 %v234
    %877 = vmatpush1.msra.mxu0 %v233
    %878 = vmatprep.subr.mxu0 %v237
    %879 = vmatpush1.msra.mxu0 %v236
    %880 = vmatprep.subr.mxu0 %v240
    %881 = vmatpush1.msra.mxu0 %v239
    %882 = vmatprep.subr.mxu0 %v243
    %883 = vmatpush1.msra.mxu0 %v242
    %884 = vmatprep.subr.mxu0 %v246
    %885 = vmatpush1.msra.mxu0 %v245
    %886 = vmatprep.subr.mxu0 0.0
    %887 = vmatpush1.msra.mxu0 0.0
    %888 = vmatprep.subr.mxu0 0.0
    %889 = vmatpush1.msra.mxu0 0.0
    %890 = vmatprep.subr.mxu0 0.0
    %891 = vmatpush1.msra.mxu0 0.0
    %892 = vmatprep.subr.mxu0 0.0
    %893 = vmatpush1.msra.mxu0 0.0
    %894 = vmatprep.subr.mxu0 0.0
    %895 = vmatpush1.msra.mxu0 0.0
    %896 = vmatprep.subr.mxu0 0.0
    %897 = vmatpush1.msra.mxu0 0.0
    %898 = vmatprep.subr.mxu0 0.0
    %899 = vmatpush1.msra.mxu0 0.0
    %900 = vmatprep.subr.mxu0 0.0
    %901 = vmatpush1.msra.mxu0 0.0
    %902 = vmatprep.subr.mxu0 0.0
    %903 = vmatpush1.msra.mxu0 0.0
    %904 = vmatprep.subr.mxu0 0.0
    %905 = vmatpush1.msra.mxu0 0.0
    %906 = vmatprep.subr.mxu0 0.0
    %907 = vmatpush1.msra.mxu0 0.0
    %908 = vmatprep.subr.mxu0 0.0
    %909 = vmatpush1.msra.mxu0 0.0
    %910 = vmatprep.subr.mxu0 0.0
    %911 = vmatpush1.msra.mxu0 0.0
    %912 = vmatprep.subr.mxu0 0.0
    %913 = vmatpush1.msra.mxu0 0.0
    %914 = vmatprep.subr.mxu0 0.0
    %915 = vmatpush1.msra.mxu0 0.0
    %916 = vmatprep.subr.mxu0 0.0
    %917 = vmatpush1.msra.mxu0 0.0
    %918 = vmatprep.mubr.f32.mxu0 0.0
    %919 = vmatmul.mubr.f32.gmra.mrb[0].mxu0 %v549
    %v920 = vpop.f32.mrb[0].mxu0
    %v921 = vadd.f32 0.0, %v920
    %v922 = vpop.f32.mrb[0].mxu0
    %v923 = vadd.f32 0.0, %v922
    %924 = vdwg.mxu0
    %925 = vmatprep.subr.mxu0 0.0
    %926 = vmatpush1.msra.mxu0 %v202
    %927 = vmatprep.subr.mxu0 0.0
    %928 = vmatpush1.msra.mxu0 %v205
    %929 = vmatprep.subr.mxu0 0.0
    %930 = vmatpush1.msra.mxu0 %v208
    %931 = vmatprep.subr.mxu0 0.0
    %932 = vmatpush1.msra.mxu0 %v211
    %933 = vmatprep.subr.mxu0 0.0
    %934 = vmatpush1.msra.mxu0 %v214
    %935 = vmatprep.subr.mxu0 0.0
    %936 = vmatpush1.msra.mxu0 %v217
    %937 = vmatprep.subr.mxu0 0.0
    %938 = vmatpush1.msra.mxu0 %v220
    %939 = vmatprep.subr.mxu0 0.0
    %940 = vmatpush1.msra.mxu0 %v223
    %941 = vmatprep.subr.mxu0 0.0
    %942 = vmatpush1.msra.mxu0 %v226
    %943 = vmatprep.subr.mxu0 0.0
    %944 = vmatpush1.msra.mxu0 %v229
    %945 = vmatprep.subr.mxu0 0.0
    %946 = vmatpush1.msra.mxu0 %v232
    %947 = vmatprep.subr.mxu0 0.0
    %948 = vmatpush1.msra.mxu0 %v235
    %949 = vmatprep.subr.mxu0 0.0
    %950 = vmatpush1.msra.mxu0 %v238
    %951 = vmatprep.subr.mxu0 0.0
    %952 = vmatpush1.msra.mxu0 %v241
    %953 = vmatprep.subr.mxu0 0.0
    %954 = vmatpush1.msra.mxu0 %v244
    %955 = vmatprep.subr.mxu0 0.0
    %956 = vmatpush1.msra.mxu0 %v247
    %957 = vmatprep.subr.mxu0 0.0
    %958 = vmatpush1.msra.mxu0 0.0
    %959 = vmatprep.subr.mxu0 0.0
    %960 = vmatpush1.msra.mxu0 0.0
    %961 = vmatprep.subr.mxu0 0.0
    %962 = vmatpush1.msra.mxu0 0.0
    %963 = vmatprep.subr.mxu0 0.0
    %964 = vmatpush1.msra.mxu0 0.0
    %965 = vmatprep.subr.mxu0 0.0
    %966 = vmatpush1.msra.mxu0 0.0
    %967 = vmatprep.subr.mxu0 0.0
    %968 = vmatpush1.msra.mxu0 0.0
    %969 = vmatprep.subr.mxu0 0.0
    %970 = vmatpush1.msra.mxu0 0.0
    %971 = vmatprep.subr.mxu0 0.0
    %972 = vmatpush1.msra.mxu0 0.0
    %973 = vmatprep.subr.mxu0 0.0
    %974 = vmatpush1.msra.mxu0 0.0
    %975 = vmatprep.subr.mxu0 0.0
    %976 = vmatpush1.msra.mxu0 0.0
    %977 = vmatprep.subr.mxu0 0.0
    %978 = vmatpush1.msra.mxu0 0.0
    %979 = vmatprep.subr.mxu0 0.0
    %980 = vmatpush1.msra.mxu0 0.0
    %981 = vmatprep.subr.mxu0 0.0
    %982 = vmatpush1.msra.mxu0 0.0
    %983 = vmatprep.subr.mxu0 0.0
    %984 = vmatpush1.msra.mxu0 0.0
    %985 = vmatprep.subr.mxu0 0.0
    %986 = vmatpush1.msra.mxu0 0.0
    %987 = vmatprep.subr.mxu0 0.0
    %988 = vmatpush1.msra.mxu0 0.0
    %989 = vmatprep.mubr.f32.mxu0 0.0
    %990 = vmatmul.mubr.f32.gmra.mrb[0].mxu0 %v549
    %v991 = vpop.f32.mrb[0].mxu0
    %v992 = vadd.f32 0.0, %v991
    %v993 = vpop.f32.mrb[0].mxu0
    %994 = vdwg.mxu0
    %v995 = vadd.f32 %v780, %v921
    %v996 = vadd.f32 %v782, %v923
    %v997 = vxor.u32 %v995, 2147483648
    %v998 = vxor.u32 %v996, 2147483648
    %v999 = vmul.f32 %v997, 1.442695
    %v1000 = vpow.pop %v999
    %v1001 = vmul.f32 %v998, 1.442695
    %v1002 = vpow.pop %v1001
    %v1003 = vadd.f32 %v1000, 1.0
    %v1004 = vadd.f32 %v1002, 1.0
    %v1005 = vrcp.pop %v1003
    %v1006 = vmul.f32 1.0, %v1005
    %v1007 = vrcp.pop %v1004
    %v1008 = vmul.f32 1.0, %v1007
    %v1009 = vadd.f32 %v992, %v277
    %v1010 = vmul.f32 %v1006, %v1009
    %v1011 = vadd.f32 %v851, %v1010
    %v1012 = vtanh.pop %v1011
    %v1013 = vsub.f32 1.0, %v1008
    %v1014 = vmul.f32 %v1013, %v1012
    %v1015 = vmul.f32 %v1008, %v549
    %v1016 = vadd.f32 %v1014, %v1015
    %1017 = vst [vmem:[#allocation2] sm:$0xff] %v1016
    %1018 = vmatprep.subr.mxu0 %v153
    %1019 = vmatpush1.msra.mxu0 %v152
    %1020 = vmatprep.subr.mxu0 %v156
    %1021 = vmatpush1.msra.mxu0 %v155
    %1022 = vmatprep.subr.mxu0 %v159
    %1023 = vmatpush1.msra.mxu0 %v158
    %1024 = vmatprep.subr.mxu0 %v162
    %1025 = vmatpush1.msra.mxu0 %v161
    %1026 = vmatprep.subr.mxu0 %v165
    %1027 = vmatpush1.msra.mxu0 %v164
    %1028 = vmatprep.subr.mxu0 %v168
    %1029 = vmatpush1.msra.mxu0 %v167
    %1030 = vmatprep.subr.mxu0 %v171
    %1031 = vmatpush1.msra.mxu0 %v170
    %1032 = vmatprep.subr.mxu0 %v174
    %1033 = vmatpush1.msra.mxu0 %v173
    %1034 = vmatprep.subr.mxu0 %v177
    %1035 = vmatpush1.msra.mxu0 %v176
    %1036 = vmatprep.subr.mxu0 %v180
    %1037 = vmatpush1.msra.mxu0 %v179
    %1038 = vmatprep.subr.mxu0 %v183
    %1039 = vmatpush1.msra.mxu0 %v182
    %1040 = vmatprep.subr.mxu0 %v186
    %1041 = vmatpush1.msra.mxu0 %v185
    %1042 = vmatprep.subr.mxu0 %v189
    %1043 = vmatpush1.msra.mxu0 %v188
    %1044 = vmatprep.subr.mxu0 %v192
    %1045 = vmatpush1.msra.mxu0 %v191
    %1046 = vmatprep.subr.mxu0 %v195
    %1047 = vmatpush1.msra.mxu0 %v194
    %1048 = vmatprep.subr.mxu0 %v198
    %1049 = vmatpush1.msra.mxu0 %v197
    %1050 = vmatprep.subr.mxu0 0.0
    %1051 = vmatpush1.msra.mxu0 0.0
    %1052 = vmatprep.subr.mxu0 0.0
    %1053 = vmatpush1.msra.mxu0 0.0
    %1054 = vmatprep.subr.mxu0 0.0
    %1055 = vmatpush1.msra.mxu0 0.0
    %1056 = vmatprep.subr.mxu0 0.0
    %1057 = vmatpush1.msra.mxu0 0.0
    %1058 = vmatprep.subr.mxu0 0.0
    %1059 = vmatpush1.msra.mxu0 0.0
    %1060 = vmatprep.subr.mxu0 0.0
    %1061 = vmatpush1.msra.mxu0 0.0
    %1062 = vmatprep.subr.mxu0 0.0
    %1063 = vmatpush1.msra.mxu0 0.0
    %1064 = vmatprep.subr.mxu0 0.0
    %1065 = vmatpush1.msra.mxu0 0.0
    %1066 = vmatprep.subr.mxu0 0.0
    %1067 = vmatpush1.msra.mxu0 0.0
    %1068 = vmatprep.subr.mxu0 0.0
    %1069 = vmatpush1.msra.mxu0 0.0
    %1070 = vmatprep.subr.mxu0 0.0
    %1071 = vmatpush1.msra.mxu0 0.0
    %1072 = vmatprep.subr.mxu0 0.0
    %1073 = vmatpush1.msra.mxu0 0.0
    %1074 = vmatprep.subr.mxu0 0.0
    %1075 = vmatpush1.msra.mxu0 0.0
    %1076 = vmatprep.subr.mxu0 0.0
    %1077 = vmatpush1.msra.mxu0 0.0
    %1078 = vmatprep.subr.mxu0 0.0
    %1079 = vmatpush1.msra.mxu0 0.0
    %1080 = vmatprep.subr.mxu0 0.0
    %1081 = vmatpush1.msra.mxu0 0.0
    %1082 = vmatprep.mubr.f32.mxu0 0.0
    %1083 = vmatmul.mubr.f32.gmra.mrb[0].mxu0 %v712
    %v1084 = vpop.f32.mrb[0].mxu0
    %v1085 = vadd.f32 0.0, %v1084
    %v1086 = vpop.f32.mrb[0].mxu0
    %v1087 = vadd.f32 0.0, %v1086
    %1088 = vdwg.mxu0
    %1089 = vmatprep.subr.mxu0 0.0
    %1090 = vmatpush1.msra.mxu0 %v154
    %1091 = vmatprep.subr.mxu0 0.0
    %1092 = vmatpush1.msra.mxu0 %v157
    %1093 = vmatprep.subr.mxu0 0.0
    %1094 = vmatpush1.msra.mxu0 %v160
    %1095 = vmatprep.subr.mxu0 0.0
    %1096 = vmatpush1.msra.mxu0 %v163
    %1097 = vmatprep.subr.mxu0 0.0
    %1098 = vmatpush1.msra.mxu0 %v166
    %1099 = vmatprep.subr.mxu0 0.0
    %1100 = vmatpush1.msra.mxu0 %v169
    %1101 = vmatprep.subr.mxu0 0.0
    %1102 = vmatpush1.msra.mxu0 %v172
    %1103 = vmatprep.subr.mxu0 0.0
    %1104 = vmatpush1.msra.mxu0 %v175
    %1105 = vmatprep.subr.mxu0 0.0
    %1106 = vmatpush1.msra.mxu0 %v178
    %1107 = vmatprep.subr.mxu0 0.0
    %1108 = vmatpush1.msra.mxu0 %v181
    %1109 = vmatprep.subr.mxu0 0.0
    %1110 = vmatpush1.msra.mxu0 %v184
    %1111 = vmatprep.subr.mxu0 0.0
    %1112 = vmatpush1.msra.mxu0 %v187
    %1113 = vmatprep.subr.mxu0 0.0
    %1114 = vmatpush1.msra.mxu0 %v190
    %1115 = vmatprep.subr.mxu0 0.0
    %1116 = vmatpush1.msra.mxu0 %v193
    %1117 = vmatprep.subr.mxu0 0.0
    %1118 = vmatpush1.msra.mxu0 %v196
    %1119 = vmatprep.subr.mxu0 0.0
    %1120 = vmatpush1.msra.mxu0 %v199
    %1121 = vmatprep.subr.mxu0 0.0
    %1122 = vmatpush1.msra.mxu0 0.0
    %1123 = vmatprep.subr.mxu0 0.0
    %1124 = vmatpush1.msra.mxu0 0.0
    %1125 = vmatprep.subr.mxu0 0.0
    %1126 = vmatpush1.msra.mxu0 0.0
    %1127 = vmatprep.subr.mxu0 0.0
    %1128 = vmatpush1.msra.mxu0 0.0
    %1129 = vmatprep.subr.mxu0 0.0
    %1130 = vmatpush1.msra.mxu0 0.0
    %1131 = vmatprep.subr.mxu0 0.0
    %1132 = vmatpush1.msra.mxu0 0.0
    %1133 = vmatprep.subr.mxu0 0.0
    %1134 = vmatpush1.msra.mxu0 0.0
    %1135 = vmatprep.subr.mxu0 0.0
    %1136 = vmatpush1.msra.mxu0 0.0
    %1137 = vmatprep.subr.mxu0 0.0
    %1138 = vmatpush1.msra.mxu0 0.0
    %1139 = vmatprep.subr.mxu0 0.0
    %1140 = vmatpush1.msra.mxu0 0.0
    %1141 = vmatprep.subr.mxu0 0.0
    %1142 = vmatpush1.msra.mxu0 0.0
    %1143 = vmatprep.subr.mxu0 0.0
    %1144 = vmatpush1.msra.mxu0 0.0
    %1145 = vmatprep.subr.mxu0 0.0
    %1146 = vmatpush1.msra.mxu0 0.0
    %1147 = vmatprep.subr.mxu0 0.0
    %1148 = vmatpush1.msra.mxu0 0.0
    %1149 = vmatprep.subr.mxu0 0.0
    %1150 = vmatpush1.msra.mxu0 0.0
    %1151 = vmatprep.subr.mxu0 0.0
    %1152 = vmatpush1.msra.mxu0 0.0
    %1153 = vmatprep.mubr.f32.mxu0 0.0
    %1154 = vmatmul.mubr.f32.gmra.mrb[0].mxu0 %v712
    %v1155 = vpop.f32.mrb[0].mxu0
    %v1156 = vadd.f32 0.0, %v1155
    %v1157 = vpop.f32.mrb[0].mxu0
    %1158 = vdwg.mxu0
    %v1159 = vadd.f32 %v402, %v1085
    %v1160 = vadd.f32 %v404, %v1087
    %v1161 = vxor.u32 %v1159, 2147483648
    %v1162 = vxor.u32 %v1160, 2147483648
    %v1163 = vmul.f32 %v1161, 1.442695
    %v1164 = vpow.pop %v1163
    %v1165 = vmul.f32 %v1162, 1.442695
    %v1166 = vpow.pop %v1165
    %v1167 = vadd.f32 %v1164, 1.0
    %v1168 = vadd.f32 %v1166, 1.0
    %v1169 = vrcp.pop %v1167
    %v1170 = vmul.f32 1.0, %v1169
    %v1171 = vrcp.pop %v1168
    %v1172 = vmul.f32 1.0, %v1171
    %v1173 = vadd.f32 %v1156, %v270
    %v1174 = vmul.f32 %v1170, %v1173
    %v1175 = vadd.f32 %v514, %v1174
    %v1176 = vtanh.pop %v1175
    %v1177 = vsub.f32 1.0, %v1172
    %v1178 = vmul.f32 %v1177, %v1176
    %v1179 = vmul.f32 %v1172, %v712
    %v1180 = vadd.f32 %v1178, %v1179
    %1181 = vmatprep.subr.mxu0 %v105
    %1182 = vmatpush1.msra.mxu0 %v104
    %1183 = vmatprep.subr.mxu0 %v108
    %1184 = vmatpush1.msra.mxu0 %v107
    %1185 = vmatprep.subr.mxu0 %v111
    %1186 = vmatpush1.msra.mxu0 %v110
    %1187 = vmatprep.subr.mxu0 %v114
    %1188 = vmatpush1.msra.mxu0 %v113
    %1189 = vmatprep.subr.mxu0 %v117
    %1190 = vmatpush1.msra.mxu0 %v116
    %1191 = vmatprep.subr.mxu0 %v120
    %1192 = vmatpush1.msra.mxu0 %v119
    %1193 = vmatprep.subr.mxu0 %v123
    %1194 = vmatpush1.msra.mxu0 %v122
    %1195 = vmatprep.subr.mxu0 %v126
    %1196 = vmatpush1.msra.mxu0 %v125
    %1197 = vmatprep.subr.mxu0 %v129
    %1198 = vmatpush1.msra.mxu0 %v128
    %1199 = vmatprep.subr.mxu0 %v132
    %1200 = vmatpush1.msra.mxu0 %v131
    %1201 = vmatprep.subr.mxu0 %v135
    %1202 = vmatpush1.msra.mxu0 %v134
    %1203 = vmatprep.subr.mxu0 %v138
    %1204 = vmatpush1.msra.mxu0 %v137
    %1205 = vmatprep.subr.mxu0 %v141
    %1206 = vmatpush1.msra.mxu0 %v140
    %1207 = vmatprep.subr.mxu0 %v144
    %1208 = vmatpush1.msra.mxu0 %v143
    %1209 = vmatprep.subr.mxu0 %v147
    %1210 = vmatpush1.msra.mxu0 %v146
    %1211 = vmatprep.subr.mxu0 %v150
    %1212 = vmatpush1.msra.mxu0 %v149
    %1213 = vmatprep.subr.mxu0 0.0
    %1214 = vmatpush1.msra.mxu0 0.0
    %1215 = vmatprep.subr.mxu0 0.0
    %1216 = vmatpush1.msra.mxu0 0.0
    %1217 = vmatprep.subr.mxu0 0.0
    %1218 = vmatpush1.msra.mxu0 0.0
    %1219 = vmatprep.subr.mxu0 0.0
    %1220 = vmatpush1.msra.mxu0 0.0
    %1221 = vmatprep.subr.mxu0 0.0
    %1222 = vmatpush1.msra.mxu0 0.0
    %1223 = vmatprep.subr.mxu0 0.0
    %1224 = vmatpush1.msra.mxu0 0.0
    %1225 = vmatprep.subr.mxu0 0.0
    %1226 = vmatpush1.msra.mxu0 0.0
    %1227 = vmatprep.subr.mxu0 0.0
    %1228 = vmatpush1.msra.mxu0 0.0
    %1229 = vmatprep.subr.mxu0 0.0
    %1230 = vmatpush1.msra.mxu0 0.0
    %1231 = vmatprep.subr.mxu0 0.0
    %1232 = vmatpush1.msra.mxu0 0.0
    %1233 = vmatprep.subr.mxu0 0.0
    %1234 = vmatpush1.msra.mxu0 0.0
    %1235 = vmatprep.subr.mxu0 0.0
    %1236 = vmatpush1.msra.mxu0 0.0
    %1237 = vmatprep.subr.mxu0 0.0
    %1238 = vmatpush1.msra.mxu0 0.0
    %1239 = vmatprep.subr.mxu0 0.0
    %1240 = vmatpush1.msra.mxu0 0.0
    %1241 = vmatprep.subr.mxu0 0.0
    %1242 = vmatpush1.msra.mxu0 0.0
    %1243 = vmatprep.subr.mxu0 0.0
    %1244 = vmatpush1.msra.mxu0 0.0
    %1245 = vmatprep.mubr.f32.mxu0 0.0
    %1246 = vmatmul.mubr.f32.gmra.mrb[0].mxu0 %v1180
    %v1247 = vpop.f32.mrb[0].mxu0
    %v1248 = vadd.f32 %v253, %v1247
    %v1249 = vpop.f32.mrb[0].mxu0
    %v1250 = vadd.f32 %v257, %v1249
    %1251 = vdwg.mxu0
    %1252 = vmatprep.subr.mxu0 0.0
    %1253 = vmatpush1.msra.mxu0 %v106
    %1254 = vmatprep.subr.mxu0 0.0
    %1255 = vmatpush1.msra.mxu0 %v109
    %1256 = vmatprep.subr.mxu0 0.0
    %1257 = vmatpush1.msra.mxu0 %v112
    %1258 = vmatprep.subr.mxu0 0.0
    %1259 = vmatpush1.msra.mxu0 %v115
    %1260 = vmatprep.subr.mxu0 0.0
    %1261 = vmatpush1.msra.mxu0 %v118
    %1262 = vmatprep.subr.mxu0 0.0
    %1263 = vmatpush1.msra.mxu0 %v121
    %1264 = vmatprep.subr.mxu0 0.0
    %1265 = vmatpush1.msra.mxu0 %v124
    %1266 = vmatprep.subr.mxu0 0.0
    %1267 = vmatpush1.msra.mxu0 %v127
    %1268 = vmatprep.subr.mxu0 0.0
    %1269 = vmatpush1.msra.mxu0 %v130
    %1270 = vmatprep.subr.mxu0 0.0
    %1271 = vmatpush1.msra.mxu0 %v133
    %1272 = vmatprep.subr.mxu0 0.0
    %1273 = vmatpush1.msra.mxu0 %v136
    %1274 = vmatprep.subr.mxu0 0.0
    %1275 = vmatpush1.msra.mxu0 %v139
    %1276 = vmatprep.subr.mxu0 0.0
    %1277 = vmatpush1.msra.mxu0 %v142
    %1278 = vmatprep.subr.mxu0 0.0
    %1279 = vmatpush1.msra.mxu0 %v145
    %1280 = vmatprep.subr.mxu0 0.0
    %1281 = vmatpush1.msra.mxu0 %v148
    %1282 = vmatprep.subr.mxu0 0.0
    %1283 = vmatpush1.msra.mxu0 %v151
    %1284 = vmatprep.subr.mxu0 0.0
    %1285 = vmatpush1.msra.mxu0 0.0
    %1286 = vmatprep.subr.mxu0 0.0
    %1287 = vmatpush1.msra.mxu0 0.0
    %1288 = vmatprep.subr.mxu0 0.0
    %1289 = vmatpush1.msra.mxu0 0.0
    %1290 = vmatprep.subr.mxu0 0.0
    %1291 = vmatpush1.msra.mxu0 0.0
    %1292 = vmatprep.subr.mxu0 0.0
    %1293 = vmatpush1.msra.mxu0 0.0
    %1294 = vmatprep.subr.mxu0 0.0
    %1295 = vmatpush1.msra.mxu0 0.0
    %1296 = vmatprep.subr.mxu0 0.0
    %1297 = vmatpush1.msra.mxu0 0.0
    %1298 = vmatprep.subr.mxu0 0.0
    %1299 = vmatpush1.msra.mxu0 0.0
    %1300 = vmatprep.subr.mxu0 0.0
    %1301 = vmatpush1.msra.mxu0 0.0
    %1302 = vmatprep.subr.mxu0 0.0
    %1303 = vmatpush1.msra.mxu0 0.0
    %1304 = vmatprep.subr.mxu0 0.0
    %1305 = vmatpush1.msra.mxu0 0.0
    %1306 = vmatprep.subr.mxu0 0.0
    %1307 = vmatpush1.msra.mxu0 0.0
    %1308 = vmatprep.subr.mxu0 0.0
    %1309 = vmatpush1.msra.mxu0 0.0
    %1310 = vmatprep.subr.mxu0 0.0
    %1311 = vmatpush1.msra.mxu0 0.0
    %1312 = vmatprep.subr.mxu0 0.0
    %1313 = vmatpush1.msra.mxu0 0.0
    %1314 = vmatprep.subr.mxu0 0.0
    %1315 = vmatpush1.msra.mxu0 0.0
    %1316 = vmatprep.mubr.f32.mxu0 0.0
    %1317 = vmatmul.mubr.f32.gmra.mrb[0].mxu0 %v1180
    %v1318 = vpop.f32.mrb[0].mxu0
    %v1319 = vadd.f32 %v261, %v1318
    %v1320 = vpop.f32.mrb[0].mxu0
    %1321 = vdwg.mxu0
    %1322 = vmatprep.subr.mxu0 %v201
    %1323 = vmatpush1.msra.mxu0 %v200
    %1324 = vmatprep.subr.mxu0 %v204
    %1325 = vmatpush1.msra.mxu0 %v203
    %1326 = vmatprep.subr.mxu0 %v207
    %1327 = vmatpush1.msra.mxu0 %v206
    %1328 = vmatprep.subr.mxu0 %v210
    %1329 = vmatpush1.msra.mxu0 %v209
    %1330 = vmatprep.subr.mxu0 %v213
    %1331 = vmatpush1.msra.mxu0 %v212
    %1332 = vmatprep.subr.mxu0 %v216
    %1333 = vmatpush1.msra.mxu0 %v215
    %1334 = vmatprep.subr.mxu0 %v219
    %1335 = vmatpush1.msra.mxu0 %v218
    %1336 = vmatprep.subr.mxu0 %v222
    %1337 = vmatpush1.msra.mxu0 %v221
    %1338 = vmatprep.subr.mxu0 %v225
    %1339 = vmatpush1.msra.mxu0 %v224
    %1340 = vmatprep.subr.mxu0 %v228
    %1341 = vmatpush1.msra.mxu0 %v227
    %1342 = vmatprep.subr.mxu0 %v231
    %1343 = vmatpush1.msra.mxu0 %v230
    %1344 = vmatprep.subr.mxu0 %v234
    %1345 = vmatpush1.msra.mxu0 %v233
    %1346 = vmatprep.subr.mxu0 %v237
    %1347 = vmatpush1.msra.mxu0 %v236
    %1348 = vmatprep.subr.mxu0 %v240
    %1349 = vmatpush1.msra.mxu0 %v239
    %1350 = vmatprep.subr.mxu0 %v243
    %1351 = vmatpush1.msra.mxu0 %v242
    %1352 = vmatprep.subr.mxu0 %v246
    %1353 = vmatpush1.msra.mxu0 %v245
    %1354 = vmatprep.subr.mxu0 0.0
    %1355 = vmatpush1.msra.mxu0 0.0
    %1356 = vmatprep.subr.mxu0 0.0
    %1357 = vmatpush1.msra.mxu0 0.0
    %1358 = vmatprep.subr.mxu0 0.0
    %1359 = vmatpush1.msra.mxu0 0.0
    %1360 = vmatprep.subr.mxu0 0.0
    %1361 = vmatpush1.msra.mxu0 0.0
    %1362 = vmatprep.subr.mxu0 0.0
    %1363 = vmatpush1.msra.mxu0 0.0
    %1364 = vmatprep.subr.mxu0 0.0
    %1365 = vmatpush1.msra.mxu0 0.0
    %1366 = vmatprep.subr.mxu0 0.0
    %1367 = vmatpush1.msra.mxu0 0.0
    %1368 = vmatprep.subr.mxu0 0.0
    %1369 = vmatpush1.msra.mxu0 0.0
    %1370 = vmatprep.subr.mxu0 0.0
    %1371 = vmatpush1.msra.mxu0 0.0
    %1372 = vmatprep.subr.mxu0 0.0
    %1373 = vmatpush1.msra.mxu0 0.0
    %1374 = vmatprep.subr.mxu0 0.0
    %1375 = vmatpush1.msra.mxu0 0.0
    %1376 = vmatprep.subr.mxu0 0.0
    %1377 = vmatpush1.msra.mxu0 0.0
    %1378 = vmatprep.subr.mxu0 0.0
    %1379 = vmatpush1.msra.mxu0 0.0
    %1380 = vmatprep.subr.mxu0 0.0
    %1381 = vmatpush1.msra.mxu0 0.0
    %1382 = vmatprep.subr.mxu0 0.0
    %1383 = vmatpush1.msra.mxu0 0.0
    %1384 = vmatprep.subr.mxu0 0.0
    %1385 = vmatpush1.msra.mxu0 0.0
    %1386 = vmatprep.mubr.f32.mxu0 0.0
    %1387 = vmatmul.mubr.f32.gmra.mrb[0].mxu0 %v1016
    %v1388 = vpop.f32.mrb[0].mxu0
    %v1389 = vadd.f32 0.0, %v1388
    %v1390 = vpop.f32.mrb[0].mxu0
    %v1391 = vadd.f32 0.0, %v1390
    %1392 = vdwg.mxu0
    %1393 = vmatprep.subr.mxu0 0.0
    %1394 = vmatpush1.msra.mxu0 %v202
    %1395 = vmatprep.subr.mxu0 0.0
    %1396 = vmatpush1.msra.mxu0 %v205
    %1397 = vmatprep.subr.mxu0 0.0
    %1398 = vmatpush1.msra.mxu0 %v208
    %1399 = vmatprep.subr.mxu0 0.0
    %1400 = vmatpush1.msra.mxu0 %v211
    %1401 = vmatprep.subr.mxu0 0.0
    %1402 = vmatpush1.msra.mxu0 %v214
    %1403 = vmatprep.subr.mxu0 0.0
    %1404 = vmatpush1.msra.mxu0 %v217
    %1405 = vmatprep.subr.mxu0 0.0
    %1406 = vmatpush1.msra.mxu0 %v220
    %1407 = vmatprep.subr.mxu0 0.0
    %1408 = vmatpush1.msra.mxu0 %v223
    %1409 = vmatprep.subr.mxu0 0.0
    %1410 = vmatpush1.msra.mxu0 %v226
    %1411 = vmatprep.subr.mxu0 0.0
    %1412 = vmatpush1.msra.mxu0 %v229
    %1413 = vmatprep.subr.mxu0 0.0
    %1414 = vmatpush1.msra.mxu0 %v232
    %1415 = vmatprep.subr.mxu0 0.0
    %1416 = vmatpush1.msra.mxu0 %v235
    %1417 = vmatprep.subr.mxu0 0.0
    %1418 = vmatpush1.msra.mxu0 %v238
    %1419 = vmatprep.subr.mxu0 0.0
    %1420 = vmatpush1.msra.mxu0 %v241
    %1421 = vmatprep.subr.mxu0 0.0
    %1422 = vmatpush1.msra.mxu0 %v244
    %1423 = vmatprep.subr.mxu0 0.0
    %1424 = vmatpush1.msra.mxu0 %v247
    %1425 = vmatprep.subr.mxu0 0.0
    %1426 = vmatpush1.msra.mxu0 0.0
    %1427 = vmatprep.subr.mxu0 0.0
    %1428 = vmatpush1.msra.mxu0 0.0
    %1429 = vmatprep.subr.mxu0 0.0
    %1430 = vmatpush1.msra.mxu0 0.0
    %1431 = vmatprep.subr.mxu0 0.0
    %1432 = vmatpush1.msra.mxu0 0.0
    %1433 = vmatprep.subr.mxu0 0.0
    %1434 = vmatpush1.msra.mxu0 0.0
    %1435 = vmatprep.subr.mxu0 0.0
    %1436 = vmatpush1.msra.mxu0 0.0
    %1437 = vmatprep.subr.mxu0 0.0
    %1438 = vmatpush1.msra.mxu0 0.0
    %1439 = vmatprep.subr.mxu0 0.0
    %1440 = vmatpush1.msra.mxu0 0.0
    %1441 = vmatprep.subr.mxu0 0.0
    %1442 = vmatpush1.msra.mxu0 0.0
    %1443 = vmatprep.subr.mxu0 0.0
    %1444 = vmatpush1.msra.mxu0 0.0
    %1445 = vmatprep.subr.mxu0 0.0
    %1446 = vmatpush1.msra.mxu0 0.0
    %1447 = vmatprep.subr.mxu0 0.0
    %1448 = vmatpush1.msra.mxu0 0.0
    %1449 = vmatprep.subr.mxu0 0.0
    %1450 = vmatpush1.msra.mxu0 0.0
    %1451 = vmatprep.subr.mxu0 0.0
    %1452 = vmatpush1.msra.mxu0 0.0
    %1453 = vmatprep.subr.mxu0 0.0
    %1454 = vmatpush1.msra.mxu0 0.0
    %1455 = vmatprep.subr.mxu0 0.0
    %1456 = vmatpush1.msra.mxu0 0.0
    %1457 = vmatprep.mubr.f32.mxu0 0.0
    %1458 = vmatmul.mubr.f32.gmra.mrb[0].mxu0 %v1016
    %v1459 = vpop.f32.mrb[0].mxu0
    %v1460 = vadd.f32 0.0, %v1459
    %v1461 = vpop.f32.mrb[0].mxu0
    %1462 = vdwg.mxu0
    %v1463 = vadd.f32 %v1248, %v1389
    %v1464 = vadd.f32 %v1250, %v1391
    %v1465 = vxor.u32 %v1463, 2147483648
    %v1466 = vxor.u32 %v1464, 2147483648
    %v1467 = vmul.f32 %v1465, 1.442695
    %v1468 = vpow.pop %v1467
    %v1469 = vmul.f32 %v1466, 1.442695
    %v1470 = vpow.pop %v1469
    %v1471 = vadd.f32 %v1468, 1.0
    %v1472 = vadd.f32 %v1470, 1.0
    %v1473 = vrcp.pop %v1471
    %v1474 = vmul.f32 1.0, %v1473
    %v1475 = vrcp.pop %v1472
    %v1476 = vmul.f32 1.0, %v1475
    %v1477 = vadd.f32 %v1460, %v277
    %v1478 = vmul.f32 %v1474, %v1477
    %v1479 = vadd.f32 %v1319, %v1478
    %v1480 = vtanh.pop %v1479
    %v1481 = vsub.f32 1.0, %v1476
    %v1482 = vmul.f32 %v1481, %v1480
    %v1483 = vmul.f32 %v1476, %v1016
    %v1484 = vadd.f32 %v1482, %v1483
    %1485 = vst [vmem:[#allocation2 + $0x8] sm:$0xff] %v1484
    %1486 = vmatprep.subr.mxu0 %v153
    %1487 = vmatpush1.msra.mxu0 %v152
    %1488 = vmatprep.subr.mxu0 %v156
    %1489 = vmatpush1.msra.mxu0 %v155
    %1490 = vmatprep.subr.mxu0 %v159
    %1491 = vmatpush1.msra.mxu0 %v158
    %1492 = vmatprep.subr.mxu0 %v162
    %1493 = vmatpush1.msra.mxu0 %v161
    %1494 = vmatprep.subr.mxu0 %v165
    %1495 = vmatpush1.msra.mxu0 %v164
    %1496 = vmatprep.subr.mxu0 %v168
    %1497 = vmatpush1.msra.mxu0 %v167
    %1498 = vmatprep.subr.mxu0 %v171
    %1499 = vmatpush1.msra.mxu0 %v170
    %1500 = vmatprep.subr.mxu0 %v174
    %1501 = vmatpush1.msra.mxu0 %v173
    %1502 = vmatprep.subr.mxu0 %v177
    %1503 = vmatpush1.msra.mxu0 %v176
    %1504 = vmatprep.subr.mxu0 %v180
    %1505 = vmatpush1.msra.mxu0 %v179
    %1506 = vmatprep.subr.mxu0 %v183
    %1507 = vmatpush1.msra.mxu0 %v182
    %1508 = vmatprep.subr.mxu0 %v186
    %1509 = vmatpush1.msra.mxu0 %v185
    %1510 = vmatprep.subr.mxu0 %v189
    %1511 = vmatpush1.msra.mxu0 %v188
    %1512 = vmatprep.subr.mxu0 %v192
    %1513 = vmatpush1.msra.mxu0 %v191
    %1514 = vmatprep.subr.mxu0 %v195
    %1515 = vmatpush1.msra.mxu0 %v194
    %1516 = vmatprep.subr.mxu0 %v198
    %1517 = vmatpush1.msra.mxu0 %v197
    %1518 = vmatprep.subr.mxu0 0.0
    %1519 = vmatpush1.msra.mxu0 0.0
    %1520 = vmatprep.subr.mxu0 0.0
    %1521 = vmatpush1.msra.mxu0 0.0
    %1522 = vmatprep.subr.mxu0 0.0
    %1523 = vmatpush1.msra.mxu0 0.0
    %1524 = vmatprep.subr.mxu0 0.0
    %1525 = vmatpush1.msra.mxu0 0.0
    %1526 = vmatprep.subr.mxu0 0.0
    %1527 = vmatpush1.msra.mxu0 0.0
    %1528 = vmatprep.subr.mxu0 0.0
    %1529 = vmatpush1.msra.mxu0 0.0
    %1530 = vmatprep.subr.mxu0 0.0
    %1531 = vmatpush1.msra.mxu0 0.0
    %1532 = vmatprep.subr.mxu0 0.0
    %1533 = vmatpush1.msra.mxu0 0.0
    %1534 = vmatprep.subr.mxu0 0.0
    %1535 = vmatpush1.msra.mxu0 0.0
    %1536 = vmatprep.subr.mxu0 0.0
    %1537 = vmatpush1.msra.mxu0 0.0
    %1538 = vmatprep.subr.mxu0 0.0
    %1539 = vmatpush1.msra.mxu0 0.0
    %1540 = vmatprep.subr.mxu0 0.0
    %1541 = vmatpush1.msra.mxu0 0.0
    %1542 = vmatprep.subr.mxu0 0.0
    %1543 = vmatpush1.msra.mxu0 0.0
    %1544 = vmatprep.subr.mxu0 0.0
    %1545 = vmatpush1.msra.mxu0 0.0
    %1546 = vmatprep.subr.mxu0 0.0
    %1547 = vmatpush1.msra.mxu0 0.0
    %1548 = vmatprep.subr.mxu0 0.0
    %1549 = vmatpush1.msra.mxu0 0.0
    %1550 = vmatprep.mubr.f32.mxu0 0.0
    %1551 = vmatmul.mubr.f32.gmra.mrb[0].mxu0 %v1180
    %v1552 = vpop.f32.mrb[0].mxu0
    %v1553 = vadd.f32 0.0, %v1552
    %v1554 = vpop.f32.mrb[0].mxu0
    %v1555 = vadd.f32 0.0, %v1554
    %1556 = vdwg.mxu0
    %1557 = vmatprep.subr.mxu0 0.0
    %1558 = vmatpush1.msra.mxu0 %v154
    %1559 = vmatprep.subr.mxu0 0.0
    %1560 = vmatpush1.msra.mxu0 %v157
    %1561 = vmatprep.subr.mxu0 0.0
    %1562 = vmatpush1.msra.mxu0 %v160
    %1563 = vmatprep.subr.mxu0 0.0
    %1564 = vmatpush1.msra.mxu0 %v163
    %1565 = vmatprep.subr.mxu0 0.0
    %1566 = vmatpush1.msra.mxu0 %v166
    %1567 = vmatprep.subr.mxu0 0.0
    %1568 = vmatpush1.msra.mxu0 %v169
    %1569 = vmatprep.subr.mxu0 0.0
    %1570 = vmatpush1.msra.mxu0 %v172
    %1571 = vmatprep.subr.mxu0 0.0
    %1572 = vmatpush1.msra.mxu0 %v175
    %1573 = vmatprep.subr.mxu0 0.0
    %1574 = vmatpush1.msra.mxu0 %v178
    %1575 = vmatprep.subr.mxu0 0.0
    %1576 = vmatpush1.msra.mxu0 %v181
    %1577 = vmatprep.subr.mxu0 0.0
    %1578 = vmatpush1.msra.mxu0 %v184
    %1579 = vmatprep.subr.mxu0 0.0
    %1580 = vmatpush1.msra.mxu0 %v187
    %1581 = vmatprep.subr.mxu0 0.0
    %1582 = vmatpush1.msra.mxu0 %v190
    %1583 = vmatprep.subr.mxu0 0.0
    %1584 = vmatpush1.msra.mxu0 %v193
    %1585 = vmatprep.subr.mxu0 0.0
    %1586 = vmatpush1.msra.mxu0 %v196
    %1587 = vmatprep.subr.mxu0 0.0
    %1588 = vmatpush1.msra.mxu0 %v199
    %1589 = vmatprep.subr.mxu0 0.0
    %1590 = vmatpush1.msra.mxu0 0.0
    %1591 = vmatprep.subr.mxu0 0.0
    %1592 = vmatpush1.msra.mxu0 0.0
    %1593 = vmatprep.subr.mxu0 0.0
    %1594 = vmatpush1.msra.mxu0 0.0
    %1595 = vmatprep.subr.mxu0 0.0
    %1596 = vmatpush1.msra.mxu0 0.0
    %1597 = vmatprep.subr.mxu0 0.0
    %1598 = vmatpush1.msra.mxu0 0.0
    %1599 = vmatprep.subr.mxu0 0.0
    %1600 = vmatpush1.msra.mxu0 0.0
    %1601 = vmatprep.subr.mxu0 0.0
    %1602 = vmatpush1.msra.mxu0 0.0
    %1603 = vmatprep.subr.mxu0 0.0
    %1604 = vmatpush1.msra.mxu0 0.0
    %1605 = vmatprep.subr.mxu0 0.0
    %1606 = vmatpush1.msra.mxu0 0.0
    %1607 = vmatprep.subr.mxu0 0.0
    %1608 = vmatpush1.msra.mxu0 0.0
    %1609 = vmatprep.subr.mxu0 0.0
    %1610 = vmatpush1.msra.mxu0 0.0
    %1611 = vmatprep.subr.mxu0 0.0
    %1612 = vmatpush1.msra.mxu0 0.0
    %1613 = vmatprep.subr.mxu0 0.0
    %1614 = vmatpush1.msra.mxu0 0.0
    %1615 = vmatprep.subr.mxu0 0.0
    %1616 = vmatpush1.msra.mxu0 0.0
    %1617 = vmatprep.subr.mxu0 0.0
    %1618 = vmatpush1.msra.mxu0 0.0
    %1619 = vmatprep.subr.mxu0 0.0
    %1620 = vmatpush1.msra.mxu0 0.0
    %1621 = vmatprep.mubr.f32.mxu0 0.0
    %1622 = vmatmul.mubr.f32.gmra.mrb[0].mxu0 %v1180
    %v1623 = vpop.f32.mrb[0].mxu0
    %v1624 = vadd.f32 0.0, %v1623
    %v1625 = vpop.f32.mrb[0].mxu0
    %1626 = vdwg.mxu0
    %v1627 = vadd.f32 %v408, %v1553
    %v1628 = vadd.f32 %v410, %v1555
    %v1629 = vxor.u32 %v1627, 2147483648
    %v1630 = vxor.u32 %v1628, 2147483648
    %v1631 = vmul.f32 %v1629, 1.442695
    %v1632 = vpow.pop %v1631
    %v1633 = vmul.f32 %v1630, 1.442695
    %v1634 = vpow.pop %v1633
    %v1635 = vadd.f32 %v1632, 1.0
    %v1636 = vadd.f32 %v1634, 1.0
    %v1637 = vrcp.pop %v1635
    %v1638 = vmul.f32 1.0, %v1637
    %v1639 = vrcp.pop %v1636
    %v1640 = vmul.f32 1.0, %v1639
    %v1641 = vadd.f32 %v1624, %v270
    %v1642 = vmul.f32 %v1638, %v1641
    %v1643 = vadd.f32 %v519, %v1642
    %v1644 = vtanh.pop %v1643
    %v1645 = vsub.f32 1.0, %v1640
    %v1646 = vmul.f32 %v1645, %v1644
    %v1647 = vmul.f32 %v1640, %v1180
    %v1648 = vadd.f32 %v1646, %v1647
    %1649 = vmatprep.subr.mxu0 %v105
    %1650 = vmatpush1.msra.mxu0 %v104
    %1651 = vmatprep.subr.mxu0 %v108
    %1652 = vmatpush1.msra.mxu0 %v107
    %1653 = vmatprep.subr.mxu0 %v111
    %1654 = vmatpush1.msra.mxu0 %v110
    %1655 = vmatprep.subr.mxu0 %v114
    %1656 = vmatpush1.msra.mxu0 %v113
    %1657 = vmatprep.subr.mxu0 %v117
    %1658 = vmatpush1.msra.mxu0 %v116
    %1659 = vmatprep.subr.mxu0 %v120
    %1660 = vmatpush1.msra.mxu0 %v119
    %1661 = vmatprep.subr.mxu0 %v123
    %1662 = vmatpush1.msra.mxu0 %v122
    %1663 = vmatprep.subr.mxu0 %v126
    %1664 = vmatpush1.msra.mxu0 %v125
    %1665 = vmatprep.subr.mxu0 %v129
    %1666 = vmatpush1.msra.mxu0 %v128
    %1667 = vmatprep.subr.mxu0 %v132
    %1668 = vmatpush1.msra.mxu0 %v131
    %1669 = vmatprep.subr.mxu0 %v135
    %1670 = vmatpush1.msra.mxu0 %v134
    %1671 = vmatprep.subr.mxu0 %v138
    %1672 = vmatpush1.msra.mxu0 %v137
    %1673 = vmatprep.subr.mxu0 %v141
    %1674 = vmatpush1.msra.mxu0 %v140
    %1675 = vmatprep.subr.mxu0 %v144
    %1676 = vmatpush1.msra.mxu0 %v143
    %1677 = vmatprep.subr.mxu0 %v147
    %1678 = vmatpush1.msra.mxu0 %v146
    %1679 = vmatprep.subr.mxu0 %v150
    %1680 = vmatpush1.msra.mxu0 %v149
    %1681 = vmatprep.subr.mxu0 0.0
    %1682 = vmatpush1.msra.mxu0 0.0
    %1683 = vmatprep.subr.mxu0 0.0
    %1684 = vmatpush1.msra.mxu0 0.0
    %1685 = vmatprep.subr.mxu0 0.0
    %1686 = vmatpush1.msra.mxu0 0.0
    %1687 = vmatprep.subr.mxu0 0.0
    %1688 = vmatpush1.msra.mxu0 0.0
    %1689 = vmatprep.subr.mxu0 0.0
    %1690 = vmatpush1.msra.mxu0 0.0
    %1691 = vmatprep.subr.mxu0 0.0
    %1692 = vmatpush1.msra.mxu0 0.0
    %1693 = vmatprep.subr.mxu0 0.0
    %1694 = vmatpush1.msra.mxu0 0.0
    %1695 = vmatprep.subr.mxu0 0.0
    %1696 = vmatpush1.msra.mxu0 0.0
    %1697 = vmatprep.subr.mxu0 0.0
    %1698 = vmatpush1.msra.mxu0 0.0
    %1699 = vmatprep.subr.mxu0 0.0
    %1700 = vmatpush1.msra.mxu0 0.0
    %1701 = vmatprep.subr.mxu0 0.0
    %1702 = vmatpush1.msra.mxu0 0.0
    %1703 = vmatprep.subr.mxu0 0.0
    %1704 = vmatpush1.msra.mxu0 0.0
    %1705 = vmatprep.subr.mxu0 0.0
    %1706 = vmatpush1.msra.mxu0 0.0
    %1707 = vmatprep.subr.mxu0 0.0
    %1708 = vmatpush1.msra.mxu0 0.0
    %1709 = vmatprep.subr.mxu0 0.0
    %1710 = vmatpush1.msra.mxu0 0.0
    %1711 = vmatprep.subr.mxu0 0.0
    %1712 = vmatpush1.msra.mxu0 0.0
    %1713 = vmatprep.mubr.f32.mxu0 0.0
    %1714 = vmatmul.mubr.f32.gmra.mrb[0].mxu0 %v1648
    %v1715 = vpop.f32.mrb[0].mxu0
    %v1716 = vadd.f32 %v253, %v1715
    %v1717 = vpop.f32.mrb[0].mxu0
    %v1718 = vadd.f32 %v257, %v1717
    %1719 = vdwg.mxu0
    %1720 = vmatprep.subr.mxu0 0.0
    %1721 = vmatpush1.msra.mxu0 %v106
    %1722 = vmatprep.subr.mxu0 0.0
    %1723 = vmatpush1.msra.mxu0 %v109
    %1724 = vmatprep.subr.mxu0 0.0
    %1725 = vmatpush1.msra.mxu0 %v112
    %1726 = vmatprep.subr.mxu0 0.0
    %1727 = vmatpush1.msra.mxu0 %v115
    %1728 = vmatprep.subr.mxu0 0.0
    %1729 = vmatpush1.msra.mxu0 %v118
    %1730 = vmatprep.subr.mxu0 0.0
    %1731 = vmatpush1.msra.mxu0 %v121
    %1732 = vmatprep.subr.mxu0 0.0
    %1733 = vmatpush1.msra.mxu0 %v124
    %1734 = vmatprep.subr.mxu0 0.0
    %1735 = vmatpush1.msra.mxu0 %v127
    %1736 = vmatprep.subr.mxu0 0.0
    %1737 = vmatpush1.msra.mxu0 %v130
    %1738 = vmatprep.subr.mxu0 0.0
    %1739 = vmatpush1.msra.mxu0 %v133
    %1740 = vmatprep.subr.mxu0 0.0
    %1741 = vmatpush1.msra.mxu0 %v136
    %1742 = vmatprep.subr.mxu0 0.0
    %1743 = vmatpush1.msra.mxu0 %v139
    %1744 = vmatprep.subr.mxu0 0.0
    %1745 = vmatpush1.msra.mxu0 %v142
    %1746 = vmatprep.subr.mxu0 0.0
    %1747 = vmatpush1.msra.mxu0 %v145
    %1748 = vmatprep.subr.mxu0 0.0
    %1749 = vmatpush1.msra.mxu0 %v148
    %1750 = vmatprep.subr.mxu0 0.0
    %1751 = vmatpush1.msra.mxu0 %v151
    %1752 = vmatprep.subr.mxu0 0.0
    %1753 = vmatpush1.msra.mxu0 0.0
    %1754 = vmatprep.subr.mxu0 0.0
    %1755 = vmatpush1.msra.mxu0 0.0
    %1756 = vmatprep.subr.mxu0 0.0
    %1757 = vmatpush1.msra.mxu0 0.0
    %1758 = vmatprep.subr.mxu0 0.0
    %1759 = vmatpush1.msra.mxu0 0.0
    %1760 = vmatprep.subr.mxu0 0.0
    %1761 = vmatpush1.msra.mxu0 0.0
    %1762 = vmatprep.subr.mxu0 0.0
    %1763 = vmatpush1.msra.mxu0 0.0
    %1764 = vmatprep.subr.mxu0 0.0
    %1765 = vmatpush1.msra.mxu0 0.0
    %1766 = vmatprep.subr.mxu0 0.0
    %1767 = vmatpush1.msra.mxu0 0.0
    %1768 = vmatprep.subr.mxu0 0.0
    %1769 = vmatpush1.msra.mxu0 0.0
    %1770 = vmatprep.subr.mxu0 0.0
    %1771 = vmatpush1.msra.mxu0 0.0
    %1772 = vmatprep.subr.mxu0 0.0
    %1773 = vmatpush1.msra.mxu0 0.0
    %1774 = vmatprep.subr.mxu0 0.0
    %1775 = vmatpush1.msra.mxu0 0.0
    %1776 = vmatprep.subr.mxu0 0.0
    %1777 = vmatpush1.msra.mxu0 0.0
    %1778 = vmatprep.subr.mxu0 0.0
    %1779 = vmatpush1.msra.mxu0 0.0
    %1780 = vmatprep.subr.mxu0 0.0
    %1781 = vmatpush1.msra.mxu0 0.0
    %1782 = vmatprep.subr.mxu0 0.0
    %1783 = vmatpush1.msra.mxu0 0.0
    %1784 = vmatprep.mubr.f32.mxu0 0.0
    %1785 = vmatmul.mubr.f32.gmra.mrb[0].mxu0 %v1648
    %v1786 = vpop.f32.mrb[0].mxu0
    %v1787 = vadd.f32 %v261, %v1786
    %v1788 = vpop.f32.mrb[0].mxu0
    %1789 = vdwg.mxu0
    %1790 = vmatprep.subr.mxu0 %v201
    %1791 = vmatpush1.msra.mxu0 %v200
    %1792 = vmatprep.subr.mxu0 %v204
    %1793 = vmatpush1.msra.mxu0 %v203
    %1794 = vmatprep.subr.mxu0 %v207
    %1795 = vmatpush1.msra.mxu0 %v206
    %1796 = vmatprep.subr.mxu0 %v210
    %1797 = vmatpush1.msra.mxu0 %v209
    %1798 = vmatprep.subr.mxu0 %v213
    %1799 = vmatpush1.msra.mxu0 %v212
    %1800 = vmatprep.subr.mxu0 %v216
    %1801 = vmatpush1.msra.mxu0 %v215
    %1802 = vmatprep.subr.mxu0 %v219
    %1803 = vmatpush1.msra.mxu0 %v218
    %1804 = vmatprep.subr.mxu0 %v222
    %1805 = vmatpush1.msra.mxu0 %v221
    %1806 = vmatprep.subr.mxu0 %v225
    %1807 = vmatpush1.msra.mxu0 %v224
    %1808 = vmatprep.subr.mxu0 %v228
    %1809 = vmatpush1.msra.mxu0 %v227
    %1810 = vmatprep.subr.mxu0 %v231
    %1811 = vmatpush1.msra.mxu0 %v230
    %1812 = vmatprep.subr.mxu0 %v234
    %1813 = vmatpush1.msra.mxu0 %v233
    %1814 = vmatprep.subr.mxu0 %v237
    %1815 = vmatpush1.msra.mxu0 %v236
    %1816 = vmatprep.subr.mxu0 %v240
    %1817 = vmatpush1.msra.mxu0 %v239
    %1818 = vmatprep.subr.mxu0 %v243
    %1819 = vmatpush1.msra.mxu0 %v242
    %1820 = vmatprep.subr.mxu0 %v246
    %1821 = vmatpush1.msra.mxu0 %v245
    %1822 = vmatprep.subr.mxu0 0.0
    %1823 = vmatpush1.msra.mxu0 0.0
    %1824 = vmatprep.subr.mxu0 0.0
    %1825 = vmatpush1.msra.mxu0 0.0
    %1826 = vmatprep.subr.mxu0 0.0
    %1827 = vmatpush1.msra.mxu0 0.0
    %1828 = vmatprep.subr.mxu0 0.0
    %1829 = vmatpush1.msra.mxu0 0.0
    %1830 = vmatprep.subr.mxu0 0.0
    %1831 = vmatpush1.msra.mxu0 0.0
    %1832 = vmatprep.subr.mxu0 0.0
    %1833 = vmatpush1.msra.mxu0 0.0
    %1834 = vmatprep.subr.mxu0 0.0
    %1835 = vmatpush1.msra.mxu0 0.0
    %1836 = vmatprep.subr.mxu0 0.0
    %1837 = vmatpush1.msra.mxu0 0.0
    %1838 = vmatprep.subr.mxu0 0.0
    %1839 = vmatpush1.msra.mxu0 0.0
    %1840 = vmatprep.subr.mxu0 0.0
    %1841 = vmatpush1.msra.mxu0 0.0
    %1842 = vmatprep.subr.mxu0 0.0
    %1843 = vmatpush1.msra.mxu0 0.0
    %1844 = vmatprep.subr.mxu0 0.0
    %1845 = vmatpush1.msra.mxu0 0.0
    %1846 = vmatprep.subr.mxu0 0.0
    %1847 = vmatpush1.msra.mxu0 0.0
    %1848 = vmatprep.subr.mxu0 0.0
    %1849 = vmatpush1.msra.mxu0 0.0
    %1850 = vmatprep.subr.mxu0 0.0
    %1851 = vmatpush1.msra.mxu0 0.0
    %1852 = vmatprep.subr.mxu0 0.0
    %1853 = vmatpush1.msra.mxu0 0.0
    %1854 = vmatprep.mubr.f32.mxu0 0.0
    %1855 = vmatmul.mubr.f32.gmra.mrb[0].mxu0 %v1484
    %v1856 = vpop.f32.mrb[0].mxu0
    %v1857 = vadd.f32 0.0, %v1856
    %v1858 = vpop.f32.mrb[0].mxu0
    %v1859 = vadd.f32 0.0, %v1858
    %1860 = vdwg.mxu0
    %1861 = vmatprep.subr.mxu0 0.0
    %1862 = vmatpush1.msra.mxu0 %v202
    %1863 = vmatprep.subr.mxu0 0.0
    %1864 = vmatpush1.msra.mxu0 %v205
    %1865 = vmatprep.subr.mxu0 0.0
    %1866 = vmatpush1.msra.mxu0 %v208
    %1867 = vmatprep.subr.mxu0 0.0
    %1868 = vmatpush1.msra.mxu0 %v211
    %1869 = vmatprep.subr.mxu0 0.0
    %1870 = vmatpush1.msra.mxu0 %v214
    %1871 = vmatprep.subr.mxu0 0.0
    %1872 = vmatpush1.msra.mxu0 %v217
    %1873 = vmatprep.subr.mxu0 0.0
    %1874 = vmatpush1.msra.mxu0 %v220
    %1875 = vmatprep.subr.mxu0 0.0
    %1876 = vmatpush1.msra.mxu0 %v223
    %1877 = vmatprep.subr.mxu0 0.0
    %1878 = vmatpush1.msra.mxu0 %v226
    %1879 = vmatprep.subr.mxu0 0.0
    %1880 = vmatpush1.msra.mxu0 %v229
    %1881 = vmatprep.subr.mxu0 0.0
    %1882 = vmatpush1.msra.mxu0 %v232
    %1883 = vmatprep.subr.mxu0 0.0
    %1884 = vmatpush1.msra.mxu0 %v235
    %1885 = vmatprep.subr.mxu0 0.0
    %1886 = vmatpush1.msra.mxu0 %v238
    %1887 = vmatprep.subr.mxu0 0.0
    %1888 = vmatpush1.msra.mxu0 %v241
    %1889 = vmatprep.subr.mxu0 0.0
    %1890 = vmatpush1.msra.mxu0 %v244
    %1891 = vmatprep.subr.mxu0 0.0
    %1892 = vmatpush1.msra.mxu0 %v247
    %1893 = vmatprep.subr.mxu0 0.0
    %1894 = vmatpush1.msra.mxu0 0.0
    %1895 = vmatprep.subr.mxu0 0.0
    %1896 = vmatpush1.msra.mxu0 0.0
    %1897 = vmatprep.subr.mxu0 0.0
    %1898 = vmatpush1.msra.mxu0 0.0
    %1899 = vmatprep.subr.mxu0 0.0
    %1900 = vmatpush1.msra.mxu0 0.0
    %1901 = vmatprep.subr.mxu0 0.0
    %1902 = vmatpush1.msra.mxu0 0.0
    %1903 = vmatprep.subr.mxu0 0.0
    %1904 = vmatpush1.msra.mxu0 0.0
    %1905 = vmatprep.subr.mxu0 0.0
    %1906 = vmatpush1.msra.mxu0 0.0
    %1907 = vmatprep.subr.mxu0 0.0
    %1908 = vmatpush1.msra.mxu0 0.0
    %1909 = vmatprep.subr.mxu0 0.0
    %1910 = vmatpush1.msra.mxu0 0.0
    %1911 = vmatprep.subr.mxu0 0.0
    %1912 = vmatpush1.msra.mxu0 0.0
    %1913 = vmatprep.subr.mxu0 0.0
    %1914 = vmatpush1.msra.mxu0 0.0
    %1915 = vmatprep.subr.mxu0 0.0
    %1916 = vmatpush1.msra.mxu0 0.0
    %1917 = vmatprep.subr.mxu0 0.0
    %1918 = vmatpush1.msra.mxu0 0.0
    %1919 = vmatprep.subr.mxu0 0.0
    %1920 = vmatpush1.msra.mxu0 0.0
    %1921 = vmatprep.subr.mxu0 0.0
    %1922 = vmatpush1.msra.mxu0 0.0
    %1923 = vmatprep.subr.mxu0 0.0
    %1924 = vmatpush1.msra.mxu0 0.0
    %1925 = vmatprep.mubr.f32.mxu0 0.0
    %1926 = vmatmul.mubr.f32.gmra.mrb[0].mxu0 %v1484
    %v1927 = vpop.f32.mrb[0].mxu0
    %v1928 = vadd.f32 0.0, %v1927
    %v1929 = vpop.f32.mrb[0].mxu0
    %1930 = vdwg.mxu0
    %v1931 = vadd.f32 %v1716, %v1857
    %v1932 = vadd.f32 %v1718, %v1859
    %v1933 = vxor.u32 %v1931, 2147483648
    %v1934 = vxor.u32 %v1932, 2147483648
    %v1935 = vmul.f32 %v1933, 1.442695
    %v1936 = vpow.pop %v1935
    %v1937 = vmul.f32 %v1934, 1.442695
    %v1938 = vpow.pop %v1937
    %v1939 = vadd.f32 %v1936, 1.0
    %v1940 = vadd.f32 %v1938, 1.0
    %v1941 = vrcp.pop %v1939
    %v1942 = vmul.f32 1.0, %v1941
    %v1943 = vrcp.pop %v1940
    %v1944 = vmul.f32 1.0, %v1943
    %v1945 = vadd.f32 %v1928, %v277
    %v1946 = vmul.f32 %v1942, %v1945
    %v1947 = vadd.f32 %v1787, %v1946
    %v1948 = vtanh.pop %v1947
    %v1949 = vsub.f32 1.0, %v1944
    %v1950 = vmul.f32 %v1949, %v1948
    %v1951 = vmul.f32 %v1944, %v1484
    %v1952 = vadd.f32 %v1950, %v1951
    %1953 = vst [vmem:[#allocation2 + $0x10] sm:$0xff] %v1952
    %1954 = vmatprep.subr.mxu0 %v153
    %1955 = vmatpush1.msra.mxu0 %v152
    %1956 = vmatprep.subr.mxu0 %v156
    %1957 = vmatpush1.msra.mxu0 %v155
    %1958 = vmatprep.subr.mxu0 %v159
    %1959 = vmatpush1.msra.mxu0 %v158
    %1960 = vmatprep.subr.mxu0 %v162
    %1961 = vmatpush1.msra.mxu0 %v161
    %1962 = vmatprep.subr.mxu0 %v165
    %1963 = vmatpush1.msra.mxu0 %v164
    %1964 = vmatprep.subr.mxu0 %v168
    %1965 = vmatpush1.msra.mxu0 %v167
    %1966 = vmatprep.subr.mxu0 %v171
    %1967 = vmatpush1.msra.mxu0 %v170
    %1968 = vmatprep.subr.mxu0 %v174
    %1969 = vmatpush1.msra.mxu0 %v173
    %1970 = vmatprep.subr.mxu0 %v177
    %1971 = vmatpush1.msra.mxu0 %v176
    %1972 = vmatprep.subr.mxu0 %v180
    %1973 = vmatpush1.msra.mxu0 %v179
    %1974 = vmatprep.subr.mxu0 %v183
    %1975 = vmatpush1.msra.mxu0 %v182
    %1976 = vmatprep.subr.mxu0 %v186
    %1977 = vmatpush1.msra.mxu0 %v185
    %1978 = vmatprep.subr.mxu0 %v189
    %1979 = vmatpush1.msra.mxu0 %v188
    %1980 = vmatprep.subr.mxu0 %v192
    %1981 = vmatpush1.msra.mxu0 %v191
    %1982 = vmatprep.subr.mxu0 %v195
    %1983 = vmatpush1.msra.mxu0 %v194
    %1984 = vmatprep.subr.mxu0 %v198
    %1985 = vmatpush1.msra.mxu0 %v197
    %1986 = vmatprep.subr.mxu0 0.0
    %1987 = vmatpush1.msra.mxu0 0.0
    %1988 = vmatprep.subr.mxu0 0.0
    %1989 = vmatpush1.msra.mxu0 0.0
    %1990 = vmatprep.subr.mxu0 0.0
    %1991 = vmatpush1.msra.mxu0 0.0
    %1992 = vmatprep.subr.mxu0 0.0
    %1993 = vmatpush1.msra.mxu0 0.0
    %1994 = vmatprep.subr.mxu0 0.0
    %1995 = vmatpush1.msra.mxu0 0.0
    %1996 = vmatprep.subr.mxu0 0.0
    %1997 = vmatpush1.msra.mxu0 0.0
    %1998 = vmatprep.subr.mxu0 0.0
    %1999 = vmatpush1.msra.mxu0 0.0
    %2000 = vmatprep.subr.mxu0 0.0
    %2001 = vmatpush1.msra.mxu0 0.0
    %2002 = vmatprep.subr.mxu0 0.0
    %2003 = vmatpush1.msra.mxu0 0.0
    %2004 = vmatprep.subr.mxu0 0.0
    %2005 = vmatpush1.msra.mxu0 0.0
    %2006 = vmatprep.subr.mxu0 0.0
    %2007 = vmatpush1.msra.mxu0 0.0
    %2008 = vmatprep.subr.mxu0 0.0
    %2009 = vmatpush1.msra.mxu0 0.0
    %2010 = vmatprep.subr.mxu0 0.0
    %2011 = vmatpush1.msra.mxu0 0.0
    %2012 = vmatprep.subr.mxu0 0.0
    %2013 = vmatpush1.msra.mxu0 0.0
    %2014 = vmatprep.subr.mxu0 0.0
    %2015 = vmatpush1.msra.mxu0 0.0
    %2016 = vmatprep.subr.mxu0 0.0
    %2017 = vmatpush1.msra.mxu0 0.0
    %2018 = vmatprep.mubr.f32.mxu0 0.0
    %2019 = vmatmul.mubr.f32.gmra.mrb[0].mxu0 %v1648
    %v2020 = vpop.f32.mrb[0].mxu0
    %v2021 = vadd.f32 0.0, %v2020
    %v2022 = vpop.f32.mrb[0].mxu0
    %v2023 = vadd.f32 0.0, %v2022
    %2024 = vdwg.mxu0
    %2025 = vmatprep.subr.mxu0 0.0
    %2026 = vmatpush1.msra.mxu0 %v154
    %2027 = vmatprep.subr.mxu0 0.0
    %2028 = vmatpush1.msra.mxu0 %v157
    %2029 = vmatprep.subr.mxu0 0.0
    %2030 = vmatpush1.msra.mxu0 %v160
    %2031 = vmatprep.subr.mxu0 0.0
    %2032 = vmatpush1.msra.mxu0 %v163
    %2033 = vmatprep.subr.mxu0 0.0
    %2034 = vmatpush1.msra.mxu0 %v166
    %2035 = vmatprep.subr.mxu0 0.0
    %2036 = vmatpush1.msra.mxu0 %v169
    %2037 = vmatprep.subr.mxu0 0.0
    %2038 = vmatpush1.msra.mxu0 %v172
    %2039 = vmatprep.subr.mxu0 0.0
    %2040 = vmatpush1.msra.mxu0 %v175
    %2041 = vmatprep.subr.mxu0 0.0
    %2042 = vmatpush1.msra.mxu0 %v178
    %2043 = vmatprep.subr.mxu0 0.0
    %2044 = vmatpush1.msra.mxu0 %v181
    %2045 = vmatprep.subr.mxu0 0.0
    %2046 = vmatpush1.msra.mxu0 %v184
    %2047 = vmatprep.subr.mxu0 0.0
    %2048 = vmatpush1.msra.mxu0 %v187
    %2049 = vmatprep.subr.mxu0 0.0
    %2050 = vmatpush1.msra.mxu0 %v190
    %2051 = vmatprep.subr.mxu0 0.0
    %2052 = vmatpush1.msra.mxu0 %v193
    %2053 = vmatprep.subr.mxu0 0.0
    %2054 = vmatpush1.msra.mxu0 %v196
    %2055 = vmatprep.subr.mxu0 0.0
    %2056 = vmatpush1.msra.mxu0 %v199
    %2057 = vmatprep.subr.mxu0 0.0
    %2058 = vmatpush1.msra.mxu0 0.0
    %2059 = vmatprep.subr.mxu0 0.0
    %2060 = vmatpush1.msra.mxu0 0.0
    %2061 = vmatprep.subr.mxu0 0.0
    %2062 = vmatpush1.msra.mxu0 0.0
    %2063 = vmatprep.subr.mxu0 0.0
    %2064 = vmatpush1.msra.mxu0 0.0
    %2065 = vmatprep.subr.mxu0 0.0
    %2066 = vmatpush1.msra.mxu0 0.0
    %2067 = vmatprep.subr.mxu0 0.0
    %2068 = vmatpush1.msra.mxu0 0.0
    %2069 = vmatprep.subr.mxu0 0.0
    %2070 = vmatpush1.msra.mxu0 0.0
    %2071 = vmatprep.subr.mxu0 0.0
    %2072 = vmatpush1.msra.mxu0 0.0
    %2073 = vmatprep.subr.mxu0 0.0
    %2074 = vmatpush1.msra.mxu0 0.0
    %2075 = vmatprep.subr.mxu0 0.0
    %2076 = vmatpush1.msra.mxu0 0.0
    %2077 = vmatprep.subr.mxu0 0.0
    %2078 = vmatpush1.msra.mxu0 0.0
    %2079 = vmatprep.subr.mxu0 0.0
    %2080 = vmatpush1.msra.mxu0 0.0
    %2081 = vmatprep.subr.mxu0 0.0
    %2082 = vmatpush1.msra.mxu0 0.0
    %2083 = vmatprep.subr.mxu0 0.0
    %2084 = vmatpush1.msra.mxu0 0.0
    %2085 = vmatprep.subr.mxu0 0.0
    %2086 = vmatpush1.msra.mxu0 0.0
    %2087 = vmatprep.subr.mxu0 0.0
    %2088 = vmatpush1.msra.mxu0 0.0
    %2089 = vmatprep.mubr.f32.mxu0 0.0
    %2090 = vmatmul.mubr.f32.gmra.mrb[0].mxu0 %v1648
    %v2091 = vpop.f32.mrb[0].mxu0
    %v2092 = vadd.f32 0.0, %v2091
    %v2093 = vpop.f32.mrb[0].mxu0
    %2094 = vdwg.mxu0
    %v2095 = vadd.f32 %v414, %v2021
    %v2096 = vadd.f32 %v416, %v2023
    %v2097 = vxor.u32 %v2095, 2147483648
    %v2098 = vxor.u32 %v2096, 2147483648
    %v2099 = vmul.f32 %v2097, 1.442695
    %v2100 = vpow.pop %v2099
    %v2101 = vmul.f32 %v2098, 1.442695
    %v2102 = vpow.pop %v2101
    %v2103 = vadd.f32 %v2100, 1.0
    %v2104 = vadd.f32 %v2102, 1.0
    %v2105 = vrcp.pop %v2103
    %v2106 = vmul.f32 1.0, %v2105
    %v2107 = vrcp.pop %v2104
    %v2108 = vmul.f32 1.0, %v2107
    %v2109 = vadd.f32 %v2092, %v270
    %v2110 = vmul.f32 %v2106, %v2109
    %v2111 = vadd.f32 %v524, %v2110
    %v2112 = vtanh.pop %v2111
    %v2113 = vsub.f32 1.0, %v2108
    %v2114 = vmul.f32 %v2113, %v2112
    %v2115 = vmul.f32 %v2108, %v1648
    %v2116 = vadd.f32 %v2114, %v2115
    %2117 = vmatprep.subr.mxu0 %v105
    %2118 = vmatpush1.msra.mxu0 %v104
    %2119 = vmatprep.subr.mxu0 %v108
    %2120 = vmatpush1.msra.mxu0 %v107
    %2121 = vmatprep.subr.mxu0 %v111
    %2122 = vmatpush1.msra.mxu0 %v110
    %2123 = vmatprep.subr.mxu0 %v114
    %2124 = vmatpush1.msra.mxu0 %v113
    %2125 = vmatprep.subr.mxu0 %v117
    %2126 = vmatpush1.msra.mxu0 %v116
    %2127 = vmatprep.subr.mxu0 %v120
    %2128 = vmatpush1.msra.mxu0 %v119
    %2129 = vmatprep.subr.mxu0 %v123
    %2130 = vmatpush1.msra.mxu0 %v122
    %2131 = vmatprep.subr.mxu0 %v126
    %2132 = vmatpush1.msra.mxu0 %v125
    %2133 = vmatprep.subr.mxu0 %v129
    %2134 = vmatpush1.msra.mxu0 %v128
    %2135 = vmatprep.subr.mxu0 %v132
    %2136 = vmatpush1.msra.mxu0 %v131
    %2137 = vmatprep.subr.mxu0 %v135
    %2138 = vmatpush1.msra.mxu0 %v134
    %2139 = vmatprep.subr.mxu0 %v138
    %2140 = vmatpush1.msra.mxu0 %v137
    %2141 = vmatprep.subr.mxu0 %v141
    %2142 = vmatpush1.msra.mxu0 %v140
    %2143 = vmatprep.subr.mxu0 %v144
    %2144 = vmatpush1.msra.mxu0 %v143
    %2145 = vmatprep.subr.mxu0 %v147
    %2146 = vmatpush1.msra.mxu0 %v146
    %2147 = vmatprep.subr.mxu0 %v150
    %2148 = vmatpush1.msra.mxu0 %v149
    %2149 = vmatprep.subr.mxu0 0.0
    %2150 = vmatpush1.msra.mxu0 0.0
    %2151 = vmatprep.subr.mxu0 0.0
    %2152 = vmatpush1.msra.mxu0 0.0
    %2153 = vmatprep.subr.mxu0 0.0
    %2154 = vmatpush1.msra.mxu0 0.0
    %2155 = vmatprep.subr.mxu0 0.0
    %2156 = vmatpush1.msra.mxu0 0.0
    %2157 = vmatprep.subr.mxu0 0.0
    %2158 = vmatpush1.msra.mxu0 0.0
    %2159 = vmatprep.subr.mxu0 0.0
    %2160 = vmatpush1.msra.mxu0 0.0
    %2161 = vmatprep.subr.mxu0 0.0
    %2162 = vmatpush1.msra.mxu0 0.0
    %2163 = vmatprep.subr.mxu0 0.0
    %2164 = vmatpush1.msra.mxu0 0.0
    %2165 = vmatprep.subr.mxu0 0.0
    %2166 = vmatpush1.msra.mxu0 0.0
    %2167 = vmatprep.subr.mxu0 0.0
    %2168 = vmatpush1.msra.mxu0 0.0
    %2169 = vmatprep.subr.mxu0 0.0
    %2170 = vmatpush1.msra.mxu0 0.0
    %2171 = vmatprep.subr.mxu0 0.0
    %2172 = vmatpush1.msra.mxu0 0.0
    %2173 = vmatprep.subr.mxu0 0.0
    %2174 = vmatpush1.msra.mxu0 0.0
    %2175 = vmatprep.subr.mxu0 0.0
    %2176 = vmatpush1.msra.mxu0 0.0
    %2177 = vmatprep.subr.mxu0 0.0
    %2178 = vmatpush1.msra.mxu0 0.0
    %2179 = vmatprep.subr.mxu0 0.0
    %2180 = vmatpush1.msra.mxu0 0.0
    %2181 = vmatprep.mubr.f32.mxu0 0.0
    %2182 = vmatmul.mubr.f32.gmra.mrb[0].mxu0 %v2116
    %v2183 = vpop.f32.mrb[0].mxu0
    %v2184 = vadd.f32 %v253, %v2183
    %v2185 = vpop.f32.mrb[0].mxu0
    %v2186 = vadd.f32 %v257, %v2185
    %2187 = vdwg.mxu0
    %2188 = vmatprep.subr.mxu0 0.0
    %2189 = vmatpush1.msra.mxu0 %v106
    %2190 = vmatprep.subr.mxu0 0.0
    %2191 = vmatpush1.msra.mxu0 %v109
    %2192 = vmatprep.subr.mxu0 0.0
    %2193 = vmatpush1.msra.mxu0 %v112
    %2194 = vmatprep.subr.mxu0 0.0
    %2195 = vmatpush1.msra.mxu0 %v115
    %2196 = vmatprep.subr.mxu0 0.0
    %2197 = vmatpush1.msra.mxu0 %v118
    %2198 = vmatprep.subr.mxu0 0.0
    %2199 = vmatpush1.msra.mxu0 %v121
    %2200 = vmatprep.subr.mxu0 0.0
    %2201 = vmatpush1.msra.mxu0 %v124
    %2202 = vmatprep.subr.mxu0 0.0
    %2203 = vmatpush1.msra.mxu0 %v127
    %2204 = vmatprep.subr.mxu0 0.0
    %2205 = vmatpush1.msra.mxu0 %v130
    %2206 = vmatprep.subr.mxu0 0.0
    %2207 = vmatpush1.msra.mxu0 %v133
    %2208 = vmatprep.subr.mxu0 0.0
    %2209 = vmatpush1.msra.mxu0 %v136
    %2210 = vmatprep.subr.mxu0 0.0
    %2211 = vmatpush1.msra.mxu0 %v139
    %2212 = vmatprep.subr.mxu0 0.0
    %2213 = vmatpush1.msra.mxu0 %v142
    %2214 = vmatprep.subr.mxu0 0.0
    %2215 = vmatpush1.msra.mxu0 %v145
    %2216 = vmatprep.subr.mxu0 0.0
    %2217 = vmatpush1.msra.mxu0 %v148
    %2218 = vmatprep.subr.mxu0 0.0
    %2219 = vmatpush1.msra.mxu0 %v151
    %2220 = vmatprep.subr.mxu0 0.0
    %2221 = vmatpush1.msra.mxu0 0.0
    %2222 = vmatprep.subr.mxu0 0.0
    %2223 = vmatpush1.msra.mxu0 0.0
    %2224 = vmatprep.subr.mxu0 0.0
    %2225 = vmatpush1.msra.mxu0 0.0
    %2226 = vmatprep.subr.mxu0 0.0
    %2227 = vmatpush1.msra.mxu0 0.0
    %2228 = vmatprep.subr.mxu0 0.0
    %2229 = vmatpush1.msra.mxu0 0.0
    %2230 = vmatprep.subr.mxu0 0.0
    %2231 = vmatpush1.msra.mxu0 0.0
    %2232 = vmatprep.subr.mxu0 0.0
    %2233 = vmatpush1.msra.mxu0 0.0
    %2234 = vmatprep.subr.mxu0 0.0
    %2235 = vmatpush1.msra.mxu0 0.0
    %2236 = vmatprep.subr.mxu0 0.0
    %2237 = vmatpush1.msra.mxu0 0.0
    %2238 = vmatprep.subr.mxu0 0.0
    %2239 = vmatpush1.msra.mxu0 0.0
    %2240 = vmatprep.subr.mxu0 0.0
    %2241 = vmatpush1.msra.mxu0 0.0
    %2242 = vmatprep.subr.mxu0 0.0
    %2243 = vmatpush1.msra.mxu0 0.0
    %2244 = vmatprep.subr.mxu0 0.0
    %2245 = vmatpush1.msra.mxu0 0.0
    %2246 = vmatprep.subr.mxu0 0.0
    %2247 = vmatpush1.msra.mxu0 0.0
    %2248 = vmatprep.subr.mxu0 0.0
    %2249 = vmatpush1.msra.mxu0 0.0
    %2250 = vmatprep.subr.mxu0 0.0
    %2251 = vmatpush1.msra.mxu0 0.0
    %2252 = vmatprep.mubr.f32.mxu0 0.0
    %2253 = vmatmul.mubr.f32.gmra.mrb[0].mxu0 %v2116
    %v2254 = vpop.f32.mrb[0].mxu0
    %v2255 = vadd.f32 %v261, %v2254
    %v2256 = vpop.f32.mrb[0].mxu0
    %2257 = vdwg.mxu0
    %2258 = vmatprep.subr.mxu0 %v201
    %2259 = vmatpush1.msra.mxu0 %v200
    %2260 = vmatprep.subr.mxu0 %v204
    %2261 = vmatpush1.msra.mxu0 %v203
    %2262 = vmatprep.subr.mxu0 %v207
    %2263 = vmatpush1.msra.mxu0 %v206
    %2264 = vmatprep.subr.mxu0 %v210
    %2265 = vmatpush1.msra.mxu0 %v209
    %2266 = vmatprep.subr.mxu0 %v213
    %2267 = vmatpush1.msra.mxu0 %v212
    %2268 = vmatprep.subr.mxu0 %v216
    %2269 = vmatpush1.msra.mxu0 %v215
    %2270 = vmatprep.subr.mxu0 %v219
    %2271 = vmatpush1.msra.mxu0 %v218
    %2272 = vmatprep.subr.mxu0 %v222
    %2273 = vmatpush1.msra.mxu0 %v221
    %2274 = vmatprep.subr.mxu0 %v225
    %2275 = vmatpush1.msra.mxu0 %v224
    %2276 = vmatprep.subr.mxu0 %v228
    %2277 = vmatpush1.msra.mxu0 %v227
    %2278 = vmatprep.subr.mxu0 %v231
    %2279 = vmatpush1.msra.mxu0 %v230
    %2280 = vmatprep.subr.mxu0 %v234
    %2281 = vmatpush1.msra.mxu0 %v233
    %2282 = vmatprep.subr.mxu0 %v237
    %2283 = vmatpush1.msra.mxu0 %v236
    %2284 = vmatprep.subr.mxu0 %v240
    %2285 = vmatpush1.msra.mxu0 %v239
    %2286 = vmatprep.subr.mxu0 %v243
    %2287 = vmatpush1.msra.mxu0 %v242
    %2288 = vmatprep.subr.mxu0 %v246
    %2289 = vmatpush1.msra.mxu0 %v245
    %2290 = vmatprep.subr.mxu0 0.0
    %2291 = vmatpush1.msra.mxu0 0.0
    %2292 = vmatprep.subr.mxu0 0.0
    %2293 = vmatpush1.msra.mxu0 0.0
    %2294 = vmatprep.subr.mxu0 0.0
    %2295 = vmatpush1.msra.mxu0 0.0
    %2296 = vmatprep.subr.mxu0 0.0
    %2297 = vmatpush1.msra.mxu0 0.0
    %2298 = vmatprep.subr.mxu0 0.0
    %2299 = vmatpush1.msra.mxu0 0.0
    %2300 = vmatprep.subr.mxu0 0.0
    %2301 = vmatpush1.msra.mxu0 0.0
    %2302 = vmatprep.subr.mxu0 0.0
    %2303 = vmatpush1.msra.mxu0 0.0
    %2304 = vmatprep.subr.mxu0 0.0
    %2305 = vmatpush1.msra.mxu0 0.0
    %2306 = vmatprep.subr.mxu0 0.0
    %2307 = vmatpush1.msra.mxu0 0.0
    %2308 = vmatprep.subr.mxu0 0.0
    %2309 = vmatpush1.msra.mxu0 0.0
    %2310 = vmatprep.subr.mxu0 0.0
    %2311 = vmatpush1.msra.mxu0 0.0
    %2312 = vmatprep.subr.mxu0 0.0
    %2313 = vmatpush1.msra.mxu0 0.0
    %2314 = vmatprep.subr.mxu0 0.0
    %2315 = vmatpush1.msra.mxu0 0.0
    %2316 = vmatprep.subr.mxu0 0.0
    %2317 = vmatpush1.msra.mxu0 0.0
    %2318 = vmatprep.subr.mxu0 0.0
    %2319 = vmatpush1.msra.mxu0 0.0
    %2320 = vmatprep.subr.mxu0 0.0
    %2321 = vmatpush1.msra.mxu0 0.0
    %2322 = vmatprep.mubr.f32.mxu0 0.0
    %2323 = vmatmul.mubr.f32.gmra.mrb[0].mxu0 %v1952
    %v2324 = vpop.f32.mrb[0].mxu0
    %v2325 = vadd.f32 0.0, %v2324
    %v2326 = vpop.f32.mrb[0].mxu0
    %v2327 = vadd.f32 0.0, %v2326
    %2328 = vdwg.mxu0
    %2329 = vmatprep.subr.mxu0 0.0
    %2330 = vmatpush1.msra.mxu0 %v202
    %2331 = vmatprep.subr.mxu0 0.0
    %2332 = vmatpush1.msra.mxu0 %v205
    %2333 = vmatprep.subr.mxu0 0.0
    %2334 = vmatpush1.msra.mxu0 %v208
    %2335 = vmatprep.subr.mxu0 0.0
    %2336 = vmatpush1.msra.mxu0 %v211
    %2337 = vmatprep.subr.mxu0 0.0
    %2338 = vmatpush1.msra.mxu0 %v214
    %2339 = vmatprep.subr.mxu0 0.0
    %2340 = vmatpush1.msra.mxu0 %v217
    %2341 = vmatprep.subr.mxu0 0.0
    %2342 = vmatpush1.msra.mxu0 %v220
    %2343 = vmatprep.subr.mxu0 0.0
    %2344 = vmatpush1.msra.mxu0 %v223
    %2345 = vmatprep.subr.mxu0 0.0
    %2346 = vmatpush1.msra.mxu0 %v226
    %2347 = vmatprep.subr.mxu0 0.0
    %2348 = vmatpush1.msra.mxu0 %v229
    %2349 = vmatprep.subr.mxu0 0.0
    %2350 = vmatpush1.msra.mxu0 %v232
    %2351 = vmatprep.subr.mxu0 0.0
    %2352 = vmatpush1.msra.mxu0 %v235
    %2353 = vmatprep.subr.mxu0 0.0
    %2354 = vmatpush1.msra.mxu0 %v238
    %2355 = vmatprep.subr.mxu0 0.0
    %2356 = vmatpush1.msra.mxu0 %v241
    %2357 = vmatprep.subr.mxu0 0.0
    %2358 = vmatpush1.msra.mxu0 %v244
    %2359 = vmatprep.subr.mxu0 0.0
    %2360 = vmatpush1.msra.mxu0 %v247
    %2361 = vmatprep.subr.mxu0 0.0
    %2362 = vmatpush1.msra.mxu0 0.0
    %2363 = vmatprep.subr.mxu0 0.0
    %2364 = vmatpush1.msra.mxu0 0.0
    %2365 = vmatprep.subr.mxu0 0.0
    %2366 = vmatpush1.msra.mxu0 0.0
    %2367 = vmatprep.subr.mxu0 0.0
    %2368 = vmatpush1.msra.mxu0 0.0
    %2369 = vmatprep.subr.mxu0 0.0
    %2370 = vmatpush1.msra.mxu0 0.0
    %2371 = vmatprep.subr.mxu0 0.0
    %2372 = vmatpush1.msra.mxu0 0.0
    %2373 = vmatprep.subr.mxu0 0.0
    %2374 = vmatpush1.msra.mxu0 0.0
    %2375 = vmatprep.subr.mxu0 0.0
    %2376 = vmatpush1.msra.mxu0 0.0
    %2377 = vmatprep.subr.mxu0 0.0
    %2378 = vmatpush1.msra.mxu0 0.0
    %2379 = vmatprep.subr.mxu0 0.0
    %2380 = vmatpush1.msra.mxu0 0.0
    %2381 = vmatprep.subr.mxu0 0.0
    %2382 = vmatpush1.msra.mxu0 0.0
    %2383 = vmatprep.subr.mxu0 0.0
    %2384 = vmatpush1.msra.mxu0 0.0
    %2385 = vmatprep.subr.mxu0 0.0
    %2386 = vmatpush1.msra.mxu0 0.0
    %2387 = vmatprep.subr.mxu0 0.0
    %2388 = vmatpush1.msra.mxu0 0.0
    %2389 = vmatprep.subr.mxu0 0.0
    %2390 = vmatpush1.msra.mxu0 0.0
    %2391 = vmatprep.subr.mxu0 0.0
    %2392 = vmatpush1.msra.mxu0 0.0
    %2393 = vmatprep.mubr.f32.mxu0 0.0
    %2394 = vmatmul.mubr.f32.gmra.mrb[0].mxu0 %v1952
    %v2395 = vpop.f32.mrb[0].mxu0
    %v2396 = vadd.f32 0.0, %v2395
    %v2397 = vpop.f32.mrb[0].mxu0
    %2398 = vdwg.mxu0
    %v2399 = vadd.f32 %v2184, %v2325
    %v2400 = vadd.f32 %v2186, %v2327
    %v2401 = vxor.u32 %v2399, 2147483648
    %v2402 = vxor.u32 %v2400, 2147483648
    %v2403 = vmul.f32 %v2401, 1.442695
    %v2404 = vpow.pop %v2403
    %v2405 = vmul.f32 %v2402, 1.442695
    %v2406 = vpow.pop %v2405
    %v2407 = vadd.f32 %v2404, 1.0
    %v2408 = vadd.f32 %v2406, 1.0
    %v2409 = vrcp.pop %v2407
    %v2410 = vmul.f32 1.0, %v2409
    %v2411 = vrcp.pop %v2408
    %v2412 = vmul.f32 1.0, %v2411
    %v2413 = vadd.f32 %v2396, %v277
    %v2414 = vmul.f32 %v2410, %v2413
    %v2415 = vadd.f32 %v2255, %v2414
    %v2416 = vtanh.pop %v2415
    %v2417 = vsub.f32 1.0, %v2412
    %v2418 = vmul.f32 %v2417, %v2416
    %v2419 = vmul.f32 %v2412, %v1952
    %v2420 = vadd.f32 %v2418, %v2419
    %2421 = vst [vmem:[#allocation2 + $0x18] sm:$0xff] %v2420
    %2422 = vmatprep.subr.mxu0 %v153
    %2423 = vmatpush1.msra.mxu0 %v152
    %2424 = vmatprep.subr.mxu0 %v156
    %2425 = vmatpush1.msra.mxu0 %v155
    %2426 = vmatprep.subr.mxu0 %v159
    %2427 = vmatpush1.msra.mxu0 %v158
    %2428 = vmatprep.subr.mxu0 %v162
    %2429 = vmatpush1.msra.mxu0 %v161
    %2430 = vmatprep.subr.mxu0 %v165
    %2431 = vmatpush1.msra.mxu0 %v164
    %2432 = vmatprep.subr.mxu0 %v168
    %2433 = vmatpush1.msra.mxu0 %v167
    %2434 = vmatprep.subr.mxu0 %v171
    %2435 = vmatpush1.msra.mxu0 %v170
    %2436 = vmatprep.subr.mxu0 %v174
    %2437 = vmatpush1.msra.mxu0 %v173
    %2438 = vmatprep.subr.mxu0 %v177
    %2439 = vmatpush1.msra.mxu0 %v176
    %2440 = vmatprep.subr.mxu0 %v180
    %2441 = vmatpush1.msra.mxu0 %v179
    %2442 = vmatprep.subr.mxu0 %v183
    %2443 = vmatpush1.msra.mxu0 %v182
    %2444 = vmatprep.subr.mxu0 %v186
    %2445 = vmatpush1.msra.mxu0 %v185
    %2446 = vmatprep.subr.mxu0 %v189
    %2447 = vmatpush1.msra.mxu0 %v188
    %2448 = vmatprep.subr.mxu0 %v192
    %2449 = vmatpush1.msra.mxu0 %v191
    %2450 = vmatprep.subr.mxu0 %v195
    %2451 = vmatpush1.msra.mxu0 %v194
    %2452 = vmatprep.subr.mxu0 %v198
    %2453 = vmatpush1.msra.mxu0 %v197
    %2454 = vmatprep.subr.mxu0 0.0
    %2455 = vmatpush1.msra.mxu0 0.0
    %2456 = vmatprep.subr.mxu0 0.0
    %2457 = vmatpush1.msra.mxu0 0.0
    %2458 = vmatprep.subr.mxu0 0.0
    %2459 = vmatpush1.msra.mxu0 0.0
    %2460 = vmatprep.subr.mxu0 0.0
    %2461 = vmatpush1.msra.mxu0 0.0
    %2462 = vmatprep.subr.mxu0 0.0
    %2463 = vmatpush1.msra.mxu0 0.0
    %2464 = vmatprep.subr.mxu0 0.0
    %2465 = vmatpush1.msra.mxu0 0.0
    %2466 = vmatprep.subr.mxu0 0.0
    %2467 = vmatpush1.msra.mxu0 0.0
    %2468 = vmatprep.subr.mxu0 0.0
    %2469 = vmatpush1.msra.mxu0 0.0
    %2470 = vmatprep.subr.mxu0 0.0
    %2471 = vmatpush1.msra.mxu0 0.0
    %2472 = vmatprep.subr.mxu0 0.0
    %2473 = vmatpush1.msra.mxu0 0.0
    %2474 = vmatprep.subr.mxu0 0.0
    %2475 = vmatpush1.msra.mxu0 0.0
    %2476 = vmatprep.subr.mxu0 0.0
    %2477 = vmatpush1.msra.mxu0 0.0
    %2478 = vmatprep.subr.mxu0 0.0
    %2479 = vmatpush1.msra.mxu0 0.0
    %2480 = vmatprep.subr.mxu0 0.0
    %2481 = vmatpush1.msra.mxu0 0.0
    %2482 = vmatprep.subr.mxu0 0.0
    %2483 = vmatpush1.msra.mxu0 0.0
    %2484 = vmatprep.subr.mxu0 0.0
    %2485 = vmatpush1.msra.mxu0 0.0
    %2486 = vmatprep.mubr.f32.mxu0 0.0
    %2487 = vmatmul.mubr.f32.gmra.mrb[0].mxu0 %v2116
    %v2488 = vpop.f32.mrb[0].mxu0
    %v2489 = vadd.f32 0.0, %v2488
    %v2490 = vpop.f32.mrb[0].mxu0
    %v2491 = vadd.f32 0.0, %v2490
    %2492 = vdwg.mxu0
    %2493 = vmatprep.subr.mxu0 0.0
    %2494 = vmatpush1.msra.mxu0 %v154
    %2495 = vmatprep.subr.mxu0 0.0
    %2496 = vmatpush1.msra.mxu0 %v157
    %2497 = vmatprep.subr.mxu0 0.0
    %2498 = vmatpush1.msra.mxu0 %v160
    %2499 = vmatprep.subr.mxu0 0.0
    %2500 = vmatpush1.msra.mxu0 %v163
    %2501 = vmatprep.subr.mxu0 0.0
    %2502 = vmatpush1.msra.mxu0 %v166
    %2503 = vmatprep.subr.mxu0 0.0
    %2504 = vmatpush1.msra.mxu0 %v169
    %2505 = vmatprep.subr.mxu0 0.0
    %2506 = vmatpush1.msra.mxu0 %v172
    %2507 = vmatprep.subr.mxu0 0.0
    %2508 = vmatpush1.msra.mxu0 %v175
    %2509 = vmatprep.subr.mxu0 0.0
    %2510 = vmatpush1.msra.mxu0 %v178
    %2511 = vmatprep.subr.mxu0 0.0
    %2512 = vmatpush1.msra.mxu0 %v181
    %2513 = vmatprep.subr.mxu0 0.0
    %2514 = vmatpush1.msra.mxu0 %v184
    %2515 = vmatprep.subr.mxu0 0.0
    %2516 = vmatpush1.msra.mxu0 %v187
    %2517 = vmatprep.subr.mxu0 0.0
    %2518 = vmatpush1.msra.mxu0 %v190
    %2519 = vmatprep.subr.mxu0 0.0
    %2520 = vmatpush1.msra.mxu0 %v193
    %2521 = vmatprep.subr.mxu0 0.0
    %2522 = vmatpush1.msra.mxu0 %v196
    %2523 = vmatprep.subr.mxu0 0.0
    %2524 = vmatpush1.msra.mxu0 %v199
    %2525 = vmatprep.subr.mxu0 0.0
    %2526 = vmatpush1.msra.mxu0 0.0
    %2527 = vmatprep.subr.mxu0 0.0
    %2528 = vmatpush1.msra.mxu0 0.0
    %2529 = vmatprep.subr.mxu0 0.0
    %2530 = vmatpush1.msra.mxu0 0.0
    %2531 = vmatprep.subr.mxu0 0.0
    %2532 = vmatpush1.msra.mxu0 0.0
    %2533 = vmatprep.subr.mxu0 0.0
    %2534 = vmatpush1.msra.mxu0 0.0
    %2535 = vmatprep.subr.mxu0 0.0
    %2536 = vmatpush1.msra.mxu0 0.0
    %2537 = vmatprep.subr.mxu0 0.0
    %2538 = vmatpush1.msra.mxu0 0.0
    %2539 = vmatprep.subr.mxu0 0.0
    %2540 = vmatpush1.msra.mxu0 0.0
    %2541 = vmatprep.subr.mxu0 0.0
    %2542 = vmatpush1.msra.mxu0 0.0
    %2543 = vmatprep.subr.mxu0 0.0
    %2544 = vmatpush1.msra.mxu0 0.0
    %2545 = vmatprep.subr.mxu0 0.0
    %2546 = vmatpush1.msra.mxu0 0.0
    %2547 = vmatprep.subr.mxu0 0.0
    %2548 = vmatpush1.msra.mxu0 0.0
    %2549 = vmatprep.subr.mxu0 0.0
    %2550 = vmatpush1.msra.mxu0 0.0
    %2551 = vmatprep.subr.mxu0 0.0
    %2552 = vmatpush1.msra.mxu0 0.0
    %2553 = vmatprep.subr.mxu0 0.0
    %2554 = vmatpush1.msra.mxu0 0.0
    %2555 = vmatprep.subr.mxu0 0.0
    %2556 = vmatpush1.msra.mxu0 0.0
    %2557 = vmatprep.mubr.f32.mxu0 0.0
    %2558 = vmatmul.mubr.f32.gmra.mrb[0].mxu0 %v2116
    %v2559 = vpop.f32.mrb[0].mxu0
    %v2560 = vadd.f32 0.0, %v2559
    %v2561 = vpop.f32.mrb[0].mxu0
    %2562 = vdwg.mxu0
    %v2563 = vadd.f32 %v420, %v2489
    %v2564 = vadd.f32 %v422, %v2491
    %v2565 = vxor.u32 %v2563, 2147483648
    %v2566 = vxor.u32 %v2564, 2147483648
    %v2567 = vmul.f32 %v2565, 1.442695
    %v2568 = vpow.pop %v2567
    %v2569 = vmul.f32 %v2566, 1.442695
    %v2570 = vpow.pop %v2569
    %v2571 = vadd.f32 %v2568, 1.0
    %v2572 = vadd.f32 %v2570, 1.0
    %v2573 = vrcp.pop %v2571
    %v2574 = vmul.f32 1.0, %v2573
    %v2575 = vrcp.pop %v2572
    %v2576 = vmul.f32 1.0, %v2575
    %v2577 = vadd.f32 %v2560, %v270
    %v2578 = vmul.f32 %v2574, %v2577
    %v2579 = vadd.f32 %v529, %v2578
    %v2580 = vtanh.pop %v2579
    %v2581 = vsub.f32 1.0, %v2576
    %v2582 = vmul.f32 %v2581, %v2580
    %v2583 = vmul.f32 %v2576, %v2116
    %v2584 = vadd.f32 %v2582, %v2583
    %2585 = vmatprep.subr.mxu0 %v105
    %2586 = vmatpush1.msra.mxu0 %v104
    %2587 = vmatprep.subr.mxu0 %v108
    %2588 = vmatpush1.msra.mxu0 %v107
    %2589 = vmatprep.subr.mxu0 %v111
    %2590 = vmatpush1.msra.mxu0 %v110
    %2591 = vmatprep.subr.mxu0 %v114
    %2592 = vmatpush1.msra.mxu0 %v113
    %2593 = vmatprep.subr.mxu0 %v117
    %2594 = vmatpush1.msra.mxu0 %v116
    %2595 = vmatprep.subr.mxu0 %v120
    %2596 = vmatpush1.msra.mxu0 %v119
    %2597 = vmatprep.subr.mxu0 %v123
    %2598 = vmatpush1.msra.mxu0 %v122
    %2599 = vmatprep.subr.mxu0 %v126
    %2600 = vmatpush1.msra.mxu0 %v125
    %2601 = vmatprep.subr.mxu0 %v129
    %2602 = vmatpush1.msra.mxu0 %v128
    %2603 = vmatprep.subr.mxu0 %v132
    %2604 = vmatpush1.msra.mxu0 %v131
    %2605 = vmatprep.subr.mxu0 %v135
    %2606 = vmatpush1.msra.mxu0 %v134
    %2607 = vmatprep.subr.mxu0 %v138
    %2608 = vmatpush1.msra.mxu0 %v137
    %2609 = vmatprep.subr.mxu0 %v141
    %2610 = vmatpush1.msra.mxu0 %v140
    %2611 = vmatprep.subr.mxu0 %v144
    %2612 = vmatpush1.msra.mxu0 %v143
    %2613 = vmatprep.subr.mxu0 %v147
    %2614 = vmatpush1.msra.mxu0 %v146
    %2615 = vmatprep.subr.mxu0 %v150
    %2616 = vmatpush1.msra.mxu0 %v149
    %2617 = vmatprep.subr.mxu0 0.0
    %2618 = vmatpush1.msra.mxu0 0.0
    %2619 = vmatprep.subr.mxu0 0.0
    %2620 = vmatpush1.msra.mxu0 0.0
    %2621 = vmatprep.subr.mxu0 0.0
    %2622 = vmatpush1.msra.mxu0 0.0
    %2623 = vmatprep.subr.mxu0 0.0
    %2624 = vmatpush1.msra.mxu0 0.0
    %2625 = vmatprep.subr.mxu0 0.0
    %2626 = vmatpush1.msra.mxu0 0.0
    %2627 = vmatprep.subr.mxu0 0.0
    %2628 = vmatpush1.msra.mxu0 0.0
    %2629 = vmatprep.subr.mxu0 0.0
    %2630 = vmatpush1.msra.mxu0 0.0
    %2631 = vmatprep.subr.mxu0 0.0
    %2632 = vmatpush1.msra.mxu0 0.0
    %2633 = vmatprep.subr.mxu0 0.0
    %2634 = vmatpush1.msra.mxu0 0.0
    %2635 = vmatprep.subr.mxu0 0.0
    %2636 = vmatpush1.msra.mxu0 0.0
    %2637 = vmatprep.subr.mxu0 0.0
    %2638 = vmatpush1.msra.mxu0 0.0
    %2639 = vmatprep.subr.mxu0 0.0
    %2640 = vmatpush1.msra.mxu0 0.0
    %2641 = vmatprep.subr.mxu0 0.0
    %2642 = vmatpush1.msra.mxu0 0.0
    %2643 = vmatprep.subr.mxu0 0.0
    %2644 = vmatpush1.msra.mxu0 0.0
    %2645 = vmatprep.subr.mxu0 0.0
    %2646 = vmatpush1.msra.mxu0 0.0
    %2647 = vmatprep.subr.mxu0 0.0
    %2648 = vmatpush1.msra.mxu0 0.0
    %2649 = vmatprep.mubr.f32.mxu0 0.0
    %2650 = vmatmul.mubr.f32.gmra.mrb[0].mxu0 %v2584
    %v2651 = vpop.f32.mrb[0].mxu0
    %v2652 = vadd.f32 %v253, %v2651
    %v2653 = vpop.f32.mrb[0].mxu0
    %v2654 = vadd.f32 %v257, %v2653
    %2655 = vdwg.mxu0
    %2656 = vmatprep.subr.mxu0 0.0
    %2657 = vmatpush1.msra.mxu0 %v106
    %2658 = vmatprep.subr.mxu0 0.0
    %2659 = vmatpush1.msra.mxu0 %v109
    %2660 = vmatprep.subr.mxu0 0.0
    %2661 = vmatpush1.msra.mxu0 %v112
    %2662 = vmatprep.subr.mxu0 0.0
    %2663 = vmatpush1.msra.mxu0 %v115
    %2664 = vmatprep.subr.mxu0 0.0
    %2665 = vmatpush1.msra.mxu0 %v118
    %2666 = vmatprep.subr.mxu0 0.0
    %2667 = vmatpush1.msra.mxu0 %v121
    %2668 = vmatprep.subr.mxu0 0.0
    %2669 = vmatpush1.msra.mxu0 %v124
    %2670 = vmatprep.subr.mxu0 0.0
    %2671 = vmatpush1.msra.mxu0 %v127
    %2672 = vmatprep.subr.mxu0 0.0
    %2673 = vmatpush1.msra.mxu0 %v130
    %2674 = vmatprep.subr.mxu0 0.0
    %2675 = vmatpush1.msra.mxu0 %v133
    %2676 = vmatprep.subr.mxu0 0.0
    %2677 = vmatpush1.msra.mxu0 %v136
    %2678 = vmatprep.subr.mxu0 0.0
    %2679 = vmatpush1.msra.mxu0 %v139
    %2680 = vmatprep.subr.mxu0 0.0
    %2681 = vmatpush1.msra.mxu0 %v142
    %2682 = vmatprep.subr.mxu0 0.0
    %2683 = vmatpush1.msra.mxu0 %v145
    %2684 = vmatprep.subr.mxu0 0.0
    %2685 = vmatpush1.msra.mxu0 %v148
    %2686 = vmatprep.subr.mxu0 0.0
    %2687 = vmatpush1.msra.mxu0 %v151
    %2688 = vmatprep.subr.mxu0 0.0
    %2689 = vmatpush1.msra.mxu0 0.0
    %2690 = vmatprep.subr.mxu0 0.0
    %2691 = vmatpush1.msra.mxu0 0.0
    %2692 = vmatprep.subr.mxu0 0.0
    %2693 = vmatpush1.msra.mxu0 0.0
    %2694 = vmatprep.subr.mxu0 0.0
    %2695 = vmatpush1.msra.mxu0 0.0
    %2696 = vmatprep.subr.mxu0 0.0
    %2697 = vmatpush1.msra.mxu0 0.0
    %2698 = vmatprep.subr.mxu0 0.0
    %2699 = vmatpush1.msra.mxu0 0.0
    %2700 = vmatprep.subr.mxu0 0.0
    %2701 = vmatpush1.msra.mxu0 0.0
    %2702 = vmatprep.subr.mxu0 0.0
    %2703 = vmatpush1.msra.mxu0 0.0
    %2704 = vmatprep.subr.mxu0 0.0
    %2705 = vmatpush1.msra.mxu0 0.0
    %2706 = vmatprep.subr.mxu0 0.0
    %2707 = vmatpush1.msra.mxu0 0.0
    %2708 = vmatprep.subr.mxu0 0.0
    %2709 = vmatpush1.msra.mxu0 0.0
    %2710 = vmatprep.subr.mxu0 0.0
    %2711 = vmatpush1.msra.mxu0 0.0
    %2712 = vmatprep.subr.mxu0 0.0
    %2713 = vmatpush1.msra.mxu0 0.0
    %2714 = vmatprep.subr.mxu0 0.0
    %2715 = vmatpush1.msra.mxu0 0.0
    %2716 = vmatprep.subr.mxu0 0.0
    %2717 = vmatpush1.msra.mxu0 0.0
    %2718 = vmatprep.subr.mxu0 0.0
    %2719 = vmatpush1.msra.mxu0 0.0
    %2720 = vmatprep.mubr.f32.mxu0 0.0
    %2721 = vmatmul.mubr.f32.gmra.mrb[0].mxu0 %v2584
    %v2722 = vpop.f32.mrb[0].mxu0
    %v2723 = vadd.f32 %v261, %v2722
    %v2724 = vpop.f32.mrb[0].mxu0
    %2725 = vdwg.mxu0
    %2726 = vmatprep.subr.mxu0 %v201
    %2727 = vmatpush1.msra.mxu0 %v200
    %2728 = vmatprep.subr.mxu0 %v204
    %2729 = vmatpush1.msra.mxu0 %v203
    %2730 = vmatprep.subr.mxu0 %v207
    %2731 = vmatpush1.msra.mxu0 %v206
    %2732 = vmatprep.subr.mxu0 %v210
    %2733 = vmatpush1.msra.mxu0 %v209
    %2734 = vmatprep.subr.mxu0 %v213
    %2735 = vmatpush1.msra.mxu0 %v212
    %2736 = vmatprep.subr.mxu0 %v216
    %2737 = vmatpush1.msra.mxu0 %v215
    %2738 = vmatprep.subr.mxu0 %v219
    %2739 = vmatpush1.msra.mxu0 %v218
    %2740 = vmatprep.subr.mxu0 %v222
    %2741 = vmatpush1.msra.mxu0 %v221
    %2742 = vmatprep.subr.mxu0 %v225
    %2743 = vmatpush1.msra.mxu0 %v224
    %2744 = vmatprep.subr.mxu0 %v228
    %2745 = vmatpush1.msra.mxu0 %v227
    %2746 = vmatprep.subr.mxu0 %v231
    %2747 = vmatpush1.msra.mxu0 %v230
    %2748 = vmatprep.subr.mxu0 %v234
    %2749 = vmatpush1.msra.mxu0 %v233
    %2750 = vmatprep.subr.mxu0 %v237
    %2751 = vmatpush1.msra.mxu0 %v236
    %2752 = vmatprep.subr.mxu0 %v240
    %2753 = vmatpush1.msra.mxu0 %v239
    %2754 = vmatprep.subr.mxu0 %v243
    %2755 = vmatpush1.msra.mxu0 %v242
    %2756 = vmatprep.subr.mxu0 %v246
    %2757 = vmatpush1.msra.mxu0 %v245
    %2758 = vmatprep.subr.mxu0 0.0
    %2759 = vmatpush1.msra.mxu0 0.0
    %2760 = vmatprep.subr.mxu0 0.0
    %2761 = vmatpush1.msra.mxu0 0.0
    %2762 = vmatprep.subr.mxu0 0.0
    %2763 = vmatpush1.msra.mxu0 0.0
    %2764 = vmatprep.subr.mxu0 0.0
    %2765 = vmatpush1.msra.mxu0 0.0
    %2766 = vmatprep.subr.mxu0 0.0
    %2767 = vmatpush1.msra.mxu0 0.0
    %2768 = vmatprep.subr.mxu0 0.0
    %2769 = vmatpush1.msra.mxu0 0.0
    %2770 = vmatprep.subr.mxu0 0.0
    %2771 = vmatpush1.msra.mxu0 0.0
    %2772 = vmatprep.subr.mxu0 0.0
    %2773 = vmatpush1.msra.mxu0 0.0
    %2774 = vmatprep.subr.mxu0 0.0
    %2775 = vmatpush1.msra.mxu0 0.0
    %2776 = vmatprep.subr.mxu0 0.0
    %2777 = vmatpush1.msra.mxu0 0.0
    %2778 = vmatprep.subr.mxu0 0.0
    %2779 = vmatpush1.msra.mxu0 0.0
    %2780 = vmatprep.subr.mxu0 0.0
    %2781 = vmatpush1.msra.mxu0 0.0
    %2782 = vmatprep.subr.mxu0 0.0
    %2783 = vmatpush1.msra.mxu0 0.0
    %2784 = vmatprep.subr.mxu0 0.0
    %2785 = vmatpush1.msra.mxu0 0.0
    %2786 = vmatprep.subr.mxu0 0.0
    %2787 = vmatpush1.msra.mxu0 0.0
    %2788 = vmatprep.subr.mxu0 0.0
    %2789 = vmatpush1.msra.mxu0 0.0
    %2790 = vmatprep.mubr.f32.mxu0 0.0
    %2791 = vmatmul.mubr.f32.gmra.mrb[0].mxu0 %v2420
    %v2792 = vpop.f32.mrb[0].mxu0
    %v2793 = vadd.f32 0.0, %v2792
    %v2794 = vpop.f32.mrb[0].mxu0
    %v2795 = vadd.f32 0.0, %v2794
    %2796 = vdwg.mxu0
    %2797 = vmatprep.subr.mxu0 0.0
    %2798 = vmatpush1.msra.mxu0 %v202
    %2799 = vmatprep.subr.mxu0 0.0
    %2800 = vmatpush1.msra.mxu0 %v205
    %2801 = vmatprep.subr.mxu0 0.0
    %2802 = vmatpush1.msra.mxu0 %v208
    %2803 = vmatprep.subr.mxu0 0.0
    %2804 = vmatpush1.msra.mxu0 %v211
    %2805 = vmatprep.subr.mxu0 0.0
    %2806 = vmatpush1.msra.mxu0 %v214
    %2807 = vmatprep.subr.mxu0 0.0
    %2808 = vmatpush1.msra.mxu0 %v217
    %2809 = vmatprep.subr.mxu0 0.0
    %2810 = vmatpush1.msra.mxu0 %v220
    %2811 = vmatprep.subr.mxu0 0.0
    %2812 = vmatpush1.msra.mxu0 %v223
    %2813 = vmatprep.subr.mxu0 0.0
    %2814 = vmatpush1.msra.mxu0 %v226
    %2815 = vmatprep.subr.mxu0 0.0
    %2816 = vmatpush1.msra.mxu0 %v229
    %2817 = vmatprep.subr.mxu0 0.0
    %2818 = vmatpush1.msra.mxu0 %v232
    %2819 = vmatprep.subr.mxu0 0.0
    %2820 = vmatpush1.msra.mxu0 %v235
    %2821 = vmatprep.subr.mxu0 0.0
    %2822 = vmatpush1.msra.mxu0 %v238
    %2823 = vmatprep.subr.mxu0 0.0
    %2824 = vmatpush1.msra.mxu0 %v241
    %2825 = vmatprep.subr.mxu0 0.0
    %2826 = vmatpush1.msra.mxu0 %v244
    %2827 = vmatprep.subr.mxu0 0.0
    %2828 = vmatpush1.msra.mxu0 %v247
    %2829 = vmatprep.subr.mxu0 0.0
    %2830 = vmatpush1.msra.mxu0 0.0
    %2831 = vmatprep.subr.mxu0 0.0
    %2832 = vmatpush1.msra.mxu0 0.0
    %2833 = vmatprep.subr.mxu0 0.0
    %2834 = vmatpush1.msra.mxu0 0.0
    %2835 = vmatprep.subr.mxu0 0.0
    %2836 = vmatpush1.msra.mxu0 0.0
    %2837 = vmatprep.subr.mxu0 0.0
    %2838 = vmatpush1.msra.mxu0 0.0
    %2839 = vmatprep.subr.mxu0 0.0
    %2840 = vmatpush1.msra.mxu0 0.0
    %2841 = vmatprep.subr.mxu0 0.0
    %2842 = vmatpush1.msra.mxu0 0.0
    %2843 = vmatprep.subr.mxu0 0.0
    %2844 = vmatpush1.msra.mxu0 0.0
    %2845 = vmatprep.subr.mxu0 0.0
    %2846 = vmatpush1.msra.mxu0 0.0
    %2847 = vmatprep.subr.mxu0 0.0
    %2848 = vmatpush1.msra.mxu0 0.0
    %2849 = vmatprep.subr.mxu0 0.0
    %2850 = vmatpush1.msra.mxu0 0.0
    %2851 = vmatprep.subr.mxu0 0.0
    %2852 = vmatpush1.msra.mxu0 0.0
    %2853 = vmatprep.subr.mxu0 0.0
    %2854 = vmatpush1.msra.mxu0 0.0
    %2855 = vmatprep.subr.mxu0 0.0
    %2856 = vmatpush1.msra.mxu0 0.0
    %2857 = vmatprep.subr.mxu0 0.0
    %2858 = vmatpush1.msra.mxu0 0.0
    %2859 = vmatprep.subr.mxu0 0.0
    %2860 = vmatpush1.msra.mxu0 0.0
    %2861 = vmatprep.mubr.f32.mxu0 0.0
    %2862 = vmatmul.mubr.f32.gmra.mrb[0].mxu0 %v2420
    %v2863 = vpop.f32.mrb[0].mxu0
    %v2864 = vadd.f32 0.0, %v2863
    %v2865 = vpop.f32.mrb[0].mxu0
    %2866 = vdwg.mxu0
    %v2867 = vadd.f32 %v2652, %v2793
    %v2868 = vadd.f32 %v2654, %v2795
    %v2869 = vxor.u32 %v2867, 2147483648
    %v2870 = vxor.u32 %v2868, 2147483648
    %v2871 = vmul.f32 %v2869, 1.442695
    %v2872 = vpow.pop %v2871
    %v2873 = vmul.f32 %v2870, 1.442695
    %v2874 = vpow.pop %v2873
    %v2875 = vadd.f32 %v2872, 1.0
    %v2876 = vadd.f32 %v2874, 1.0
    %v2877 = vrcp.pop %v2875
    %v2878 = vmul.f32 1.0, %v2877
    %v2879 = vrcp.pop %v2876
    %v2880 = vmul.f32 1.0, %v2879
    %v2881 = vadd.f32 %v2864, %v277
    %v2882 = vmul.f32 %v2878, %v2881
    %v2883 = vadd.f32 %v2723, %v2882
    %v2884 = vtanh.pop %v2883
    %v2885 = vsub.f32 1.0, %v2880
    %v2886 = vmul.f32 %v2885, %v2884
    %v2887 = vmul.f32 %v2880, %v2420
    %v2888 = vadd.f32 %v2886, %v2887
    %2889 = vst [vmem:[#allocation2 + $0x20] sm:$0xff] %v2888
    %2890 = vmatprep.subr.mxu0 %v153
    %2891 = vmatpush1.msra.mxu0 %v152
    %2892 = vmatprep.subr.mxu0 %v156
    %2893 = vmatpush1.msra.mxu0 %v155
    %2894 = vmatprep.subr.mxu0 %v159
    %2895 = vmatpush1.msra.mxu0 %v158
    %2896 = vmatprep.subr.mxu0 %v162
    %2897 = vmatpush1.msra.mxu0 %v161
    %2898 = vmatprep.subr.mxu0 %v165
    %2899 = vmatpush1.msra.mxu0 %v164
    %2900 = vmatprep.subr.mxu0 %v168
    %2901 = vmatpush1.msra.mxu0 %v167
    %2902 = vmatprep.subr.mxu0 %v171
    %2903 = vmatpush1.msra.mxu0 %v170
    %2904 = vmatprep.subr.mxu0 %v174
    %2905 = vmatpush1.msra.mxu0 %v173
    %2906 = vmatprep.subr.mxu0 %v177
    %2907 = vmatpush1.msra.mxu0 %v176
    %2908 = vmatprep.subr.mxu0 %v180
    %2909 = vmatpush1.msra.mxu0 %v179
    %2910 = vmatprep.subr.mxu0 %v183
    %2911 = vmatpush1.msra.mxu0 %v182
    %2912 = vmatprep.subr.mxu0 %v186
    %2913 = vmatpush1.msra.mxu0 %v185
    %2914 = vmatprep.subr.mxu0 %v189
    %2915 = vmatpush1.msra.mxu0 %v188
    %2916 = vmatprep.subr.mxu0 %v192
    %2917 = vmatpush1.msra.mxu0 %v191
    %2918 = vmatprep.subr.mxu0 %v195
    %2919 = vmatpush1.msra.mxu0 %v194
    %2920 = vmatprep.subr.mxu0 %v198
    %2921 = vmatpush1.msra.mxu0 %v197
    %2922 = vmatprep.subr.mxu0 0.0
    %2923 = vmatpush1.msra.mxu0 0.0
    %2924 = vmatprep.subr.mxu0 0.0
    %2925 = vmatpush1.msra.mxu0 0.0
    %2926 = vmatprep.subr.mxu0 0.0
    %2927 = vmatpush1.msra.mxu0 0.0
    %2928 = vmatprep.subr.mxu0 0.0
    %2929 = vmatpush1.msra.mxu0 0.0
    %2930 = vmatprep.subr.mxu0 0.0
    %2931 = vmatpush1.msra.mxu0 0.0
    %2932 = vmatprep.subr.mxu0 0.0
    %2933 = vmatpush1.msra.mxu0 0.0
    %2934 = vmatprep.subr.mxu0 0.0
    %2935 = vmatpush1.msra.mxu0 0.0
    %2936 = vmatprep.subr.mxu0 0.0
    %2937 = vmatpush1.msra.mxu0 0.0
    %2938 = vmatprep.subr.mxu0 0.0
    %2939 = vmatpush1.msra.mxu0 0.0
    %2940 = vmatprep.subr.mxu0 0.0
    %2941 = vmatpush1.msra.mxu0 0.0
    %2942 = vmatprep.subr.mxu0 0.0
    %2943 = vmatpush1.msra.mxu0 0.0
    %2944 = vmatprep.subr.mxu0 0.0
    %2945 = vmatpush1.msra.mxu0 0.0
    %2946 = vmatprep.subr.mxu0 0.0
    %2947 = vmatpush1.msra.mxu0 0.0
    %2948 = vmatprep.subr.mxu0 0.0
    %2949 = vmatpush1.msra.mxu0 0.0
    %2950 = vmatprep.subr.mxu0 0.0
    %2951 = vmatpush1.msra.mxu0 0.0
    %2952 = vmatprep.subr.mxu0 0.0
    %2953 = vmatpush1.msra.mxu0 0.0
    %2954 = vmatprep.mubr.f32.mxu0 0.0
    %2955 = vmatmul.mubr.f32.gmra.mrb[0].mxu0 %v2584
    %v2956 = vpop.f32.mrb[0].mxu0
    %v2957 = vadd.f32 0.0, %v2956
    %v2958 = vpop.f32.mrb[0].mxu0
    %v2959 = vadd.f32 0.0, %v2958
    %2960 = vdwg.mxu0
    %2961 = vmatprep.subr.mxu0 0.0
    %2962 = vmatpush1.msra.mxu0 %v154
    %2963 = vmatprep.subr.mxu0 0.0
    %2964 = vmatpush1.msra.mxu0 %v157
    %2965 = vmatprep.subr.mxu0 0.0
    %2966 = vmatpush1.msra.mxu0 %v160
    %2967 = vmatprep.subr.mxu0 0.0
    %2968 = vmatpush1.msra.mxu0 %v163
    %2969 = vmatprep.subr.mxu0 0.0
    %2970 = vmatpush1.msra.mxu0 %v166
    %2971 = vmatprep.subr.mxu0 0.0
    %2972 = vmatpush1.msra.mxu0 %v169
    %2973 = vmatprep.subr.mxu0 0.0
    %2974 = vmatpush1.msra.mxu0 %v172
    %2975 = vmatprep.subr.mxu0 0.0
    %2976 = vmatpush1.msra.mxu0 %v175
    %2977 = vmatprep.subr.mxu0 0.0
    %2978 = vmatpush1.msra.mxu0 %v178
    %2979 = vmatprep.subr.mxu0 0.0
    %2980 = vmatpush1.msra.mxu0 %v181
    %2981 = vmatprep.subr.mxu0 0.0
    %2982 = vmatpush1.msra.mxu0 %v184
    %2983 = vmatprep.subr.mxu0 0.0
    %2984 = vmatpush1.msra.mxu0 %v187
    %2985 = vmatprep.subr.mxu0 0.0
    %2986 = vmatpush1.msra.mxu0 %v190
    %2987 = vmatprep.subr.mxu0 0.0
    %2988 = vmatpush1.msra.mxu0 %v193
    %2989 = vmatprep.subr.mxu0 0.0
    %2990 = vmatpush1.msra.mxu0 %v196
    %2991 = vmatprep.subr.mxu0 0.0
    %2992 = vmatpush1.msra.mxu0 %v199
    %2993 = vmatprep.subr.mxu0 0.0
    %2994 = vmatpush1.msra.mxu0 0.0
    %2995 = vmatprep.subr.mxu0 0.0
    %2996 = vmatpush1.msra.mxu0 0.0
    %2997 = vmatprep.subr.mxu0 0.0
    %2998 = vmatpush1.msra.mxu0 0.0
    %2999 = vmatprep.subr.mxu0 0.0
    %3000 = vmatpush1.msra.mxu0 0.0
    %3001 = vmatprep.subr.mxu0 0.0
    %3002 = vmatpush1.msra.mxu0 0.0
    %3003 = vmatprep.subr.mxu0 0.0
    %3004 = vmatpush1.msra.mxu0 0.0
    %3005 = vmatprep.subr.mxu0 0.0
    %3006 = vmatpush1.msra.mxu0 0.0
    %3007 = vmatprep.subr.mxu0 0.0
    %3008 = vmatpush1.msra.mxu0 0.0
    %3009 = vmatprep.subr.mxu0 0.0
    %3010 = vmatpush1.msra.mxu0 0.0
    %3011 = vmatprep.subr.mxu0 0.0
    %3012 = vmatpush1.msra.mxu0 0.0
    %3013 = vmatprep.subr.mxu0 0.0
    %3014 = vmatpush1.msra.mxu0 0.0
    %3015 = vmatprep.subr.mxu0 0.0
    %3016 = vmatpush1.msra.mxu0 0.0
    %3017 = vmatprep.subr.mxu0 0.0
    %3018 = vmatpush1.msra.mxu0 0.0
    %3019 = vmatprep.subr.mxu0 0.0
    %3020 = vmatpush1.msra.mxu0 0.0
    %3021 = vmatprep.subr.mxu0 0.0
    %3022 = vmatpush1.msra.mxu0 0.0
    %3023 = vmatprep.subr.mxu0 0.0
    %3024 = vmatpush1.msra.mxu0 0.0
    %3025 = vmatprep.mubr.f32.mxu0 0.0
    %3026 = vmatmul.mubr.f32.gmra.mrb[0].mxu0 %v2584
    %v3027 = vpop.f32.mrb[0].mxu0
    %v3028 = vadd.f32 0.0, %v3027
    %v3029 = vpop.f32.mrb[0].mxu0
    %3030 = vdwg.mxu0
    %v3031 = vadd.f32 %v426, %v2957
    %v3032 = vadd.f32 %v428, %v2959
    %v3033 = vxor.u32 %v3031, 2147483648
    %v3034 = vxor.u32 %v3032, 2147483648
    %v3035 = vmul.f32 %v3033, 1.442695
    %v3036 = vpow.pop %v3035
    %v3037 = vmul.f32 %v3034, 1.442695
    %v3038 = vpow.pop %v3037
    %v3039 = vadd.f32 %v3036, 1.0
    %v3040 = vadd.f32 %v3038, 1.0
    %v3041 = vrcp.pop %v3039
    %v3042 = vmul.f32 1.0, %v3041
    %v3043 = vrcp.pop %v3040
    %v3044 = vmul.f32 1.0, %v3043
    %v3045 = vadd.f32 %v3028, %v270
    %v3046 = vmul.f32 %v3042, %v3045
    %v3047 = vadd.f32 %v534, %v3046
    %v3048 = vtanh.pop %v3047
    %v3049 = vsub.f32 1.0, %v3044
    %v3050 = vmul.f32 %v3049, %v3048
    %v3051 = vmul.f32 %v3044, %v2584
    %v3052 = vadd.f32 %v3050, %v3051
    %3053 = vmatprep.subr.mxu0 %v105
    %3054 = vmatpush1.msra.mxu0 %v104
    %3055 = vmatprep.subr.mxu0 %v108
    %3056 = vmatpush1.msra.mxu0 %v107
    %3057 = vmatprep.subr.mxu0 %v111
    %3058 = vmatpush1.msra.mxu0 %v110
    %3059 = vmatprep.subr.mxu0 %v114
    %3060 = vmatpush1.msra.mxu0 %v113
    %3061 = vmatprep.subr.mxu0 %v117
    %3062 = vmatpush1.msra.mxu0 %v116
    %3063 = vmatprep.subr.mxu0 %v120
    %3064 = vmatpush1.msra.mxu0 %v119
    %3065 = vmatprep.subr.mxu0 %v123
    %3066 = vmatpush1.msra.mxu0 %v122
    %3067 = vmatprep.subr.mxu0 %v126
    %3068 = vmatpush1.msra.mxu0 %v125
    %3069 = vmatprep.subr.mxu0 %v129
    %3070 = vmatpush1.msra.mxu0 %v128
    %3071 = vmatprep.subr.mxu0 %v132
    %3072 = vmatpush1.msra.mxu0 %v131
    %3073 = vmatprep.subr.mxu0 %v135
    %3074 = vmatpush1.msra.mxu0 %v134
    %3075 = vmatprep.subr.mxu0 %v138
    %3076 = vmatpush1.msra.mxu0 %v137
    %3077 = vmatprep.subr.mxu0 %v141
    %3078 = vmatpush1.msra.mxu0 %v140
    %3079 = vmatprep.subr.mxu0 %v144
    %3080 = vmatpush1.msra.mxu0 %v143
    %3081 = vmatprep.subr.mxu0 %v147
    %3082 = vmatpush1.msra.mxu0 %v146
    %3083 = vmatprep.subr.mxu0 %v150
    %3084 = vmatpush1.msra.mxu0 %v149
    %3085 = vmatprep.subr.mxu0 0.0
    %3086 = vmatpush1.msra.mxu0 0.0
    %3087 = vmatprep.subr.mxu0 0.0
    %3088 = vmatpush1.msra.mxu0 0.0
    %3089 = vmatprep.subr.mxu0 0.0
    %3090 = vmatpush1.msra.mxu0 0.0
    %3091 = vmatprep.subr.mxu0 0.0
    %3092 = vmatpush1.msra.mxu0 0.0
    %3093 = vmatprep.subr.mxu0 0.0
    %3094 = vmatpush1.msra.mxu0 0.0
    %3095 = vmatprep.subr.mxu0 0.0
    %3096 = vmatpush1.msra.mxu0 0.0
    %3097 = vmatprep.subr.mxu0 0.0
    %3098 = vmatpush1.msra.mxu0 0.0
    %3099 = vmatprep.subr.mxu0 0.0
    %3100 = vmatpush1.msra.mxu0 0.0
    %3101 = vmatprep.subr.mxu0 0.0
    %3102 = vmatpush1.msra.mxu0 0.0
    %3103 = vmatprep.subr.mxu0 0.0
    %3104 = vmatpush1.msra.mxu0 0.0
    %3105 = vmatprep.subr.mxu0 0.0
    %3106 = vmatpush1.msra.mxu0 0.0
    %3107 = vmatprep.subr.mxu0 0.0
    %3108 = vmatpush1.msra.mxu0 0.0
    %3109 = vmatprep.subr.mxu0 0.0
    %3110 = vmatpush1.msra.mxu0 0.0
    %3111 = vmatprep.subr.mxu0 0.0
    %3112 = vmatpush1.msra.mxu0 0.0
    %3113 = vmatprep.subr.mxu0 0.0
    %3114 = vmatpush1.msra.mxu0 0.0
    %3115 = vmatprep.subr.mxu0 0.0
    %3116 = vmatpush1.msra.mxu0 0.0
    %3117 = vmatprep.mubr.f32.mxu0 0.0
    %3118 = vmatmul.mubr.f32.gmra.mrb[0].mxu0 %v3052
    %v3119 = vpop.f32.mrb[0].mxu0
    %v3120 = vadd.f32 %v253, %v3119
    %v3121 = vpop.f32.mrb[0].mxu0
    %v3122 = vadd.f32 %v257, %v3121
    %3123 = vdwg.mxu0
    %3124 = vmatprep.subr.mxu0 0.0
    %3125 = vmatpush1.msra.mxu0 %v106
    %3126 = vmatprep.subr.mxu0 0.0
    %3127 = vmatpush1.msra.mxu0 %v109
    %3128 = vmatprep.subr.mxu0 0.0
    %3129 = vmatpush1.msra.mxu0 %v112
    %3130 = vmatprep.subr.mxu0 0.0
    %3131 = vmatpush1.msra.mxu0 %v115
    %3132 = vmatprep.subr.mxu0 0.0
    %3133 = vmatpush1.msra.mxu0 %v118
    %3134 = vmatprep.subr.mxu0 0.0
    %3135 = vmatpush1.msra.mxu0 %v121
    %3136 = vmatprep.subr.mxu0 0.0
    %3137 = vmatpush1.msra.mxu0 %v124
    %3138 = vmatprep.subr.mxu0 0.0
    %3139 = vmatpush1.msra.mxu0 %v127
    %3140 = vmatprep.subr.mxu0 0.0
    %3141 = vmatpush1.msra.mxu0 %v130
    %3142 = vmatprep.subr.mxu0 0.0
    %3143 = vmatpush1.msra.mxu0 %v133
    %3144 = vmatprep.subr.mxu0 0.0
    %3145 = vmatpush1.msra.mxu0 %v136
    %3146 = vmatprep.subr.mxu0 0.0
    %3147 = vmatpush1.msra.mxu0 %v139
    %3148 = vmatprep.subr.mxu0 0.0
    %3149 = vmatpush1.msra.mxu0 %v142
    %3150 = vmatprep.subr.mxu0 0.0
    %3151 = vmatpush1.msra.mxu0 %v145
    %3152 = vmatprep.subr.mxu0 0.0
    %3153 = vmatpush1.msra.mxu0 %v148
    %3154 = vmatprep.subr.mxu0 0.0
    %3155 = vmatpush1.msra.mxu0 %v151
    %3156 = vmatprep.subr.mxu0 0.0
    %3157 = vmatpush1.msra.mxu0 0.0
    %3158 = vmatprep.subr.mxu0 0.0
    %3159 = vmatpush1.msra.mxu0 0.0
    %3160 = vmatprep.subr.mxu0 0.0
    %3161 = vmatpush1.msra.mxu0 0.0
    %3162 = vmatprep.subr.mxu0 0.0
    %3163 = vmatpush1.msra.mxu0 0.0
    %3164 = vmatprep.subr.mxu0 0.0
    %3165 = vmatpush1.msra.mxu0 0.0
    %3166 = vmatprep.subr.mxu0 0.0
    %3167 = vmatpush1.msra.mxu0 0.0
    %3168 = vmatprep.subr.mxu0 0.0
    %3169 = vmatpush1.msra.mxu0 0.0
    %3170 = vmatprep.subr.mxu0 0.0
    %3171 = vmatpush1.msra.mxu0 0.0
    %3172 = vmatprep.subr.mxu0 0.0
    %3173 = vmatpush1.msra.mxu0 0.0
    %3174 = vmatprep.subr.mxu0 0.0
    %3175 = vmatpush1.msra.mxu0 0.0
    %3176 = vmatprep.subr.mxu0 0.0
    %3177 = vmatpush1.msra.mxu0 0.0
    %3178 = vmatprep.subr.mxu0 0.0
    %3179 = vmatpush1.msra.mxu0 0.0
    %3180 = vmatprep.subr.mxu0 0.0
    %3181 = vmatpush1.msra.mxu0 0.0
    %3182 = vmatprep.subr.mxu0 0.0
    %3183 = vmatpush1.msra.mxu0 0.0
    %3184 = vmatprep.subr.mxu0 0.0
    %3185 = vmatpush1.msra.mxu0 0.0
    %3186 = vmatprep.subr.mxu0 0.0
    %3187 = vmatpush1.msra.mxu0 0.0
    %3188 = vmatprep.mubr.f32.mxu0 0.0
    %3189 = vmatmul.mubr.f32.gmra.mrb[0].mxu0 %v3052
    %v3190 = vpop.f32.mrb[0].mxu0
    %v3191 = vadd.f32 %v261, %v3190
    %v3192 = vpop.f32.mrb[0].mxu0
    %3193 = vdwg.mxu0
    %3194 = vmatprep.subr.mxu0 %v201
    %3195 = vmatpush1.msra.mxu0 %v200
    %3196 = vmatprep.subr.mxu0 %v204
    %3197 = vmatpush1.msra.mxu0 %v203
    %3198 = vmatprep.subr.mxu0 %v207
    %3199 = vmatpush1.msra.mxu0 %v206
    %3200 = vmatprep.subr.mxu0 %v210
    %3201 = vmatpush1.msra.mxu0 %v209
    %3202 = vmatprep.subr.mxu0 %v213
    %3203 = vmatpush1.msra.mxu0 %v212
    %3204 = vmatprep.subr.mxu0 %v216
    %3205 = vmatpush1.msra.mxu0 %v215
    %3206 = vmatprep.subr.mxu0 %v219
    %3207 = vmatpush1.msra.mxu0 %v218
    %3208 = vmatprep.subr.mxu0 %v222
    %3209 = vmatpush1.msra.mxu0 %v221
    %3210 = vmatprep.subr.mxu0 %v225
    %3211 = vmatpush1.msra.mxu0 %v224
    %3212 = vmatprep.subr.mxu0 %v228
    %3213 = vmatpush1.msra.mxu0 %v227
    %3214 = vmatprep.subr.mxu0 %v231
    %3215 = vmatpush1.msra.mxu0 %v230
    %3216 = vmatprep.subr.mxu0 %v234
    %3217 = vmatpush1.msra.mxu0 %v233
    %3218 = vmatprep.subr.mxu0 %v237
    %3219 = vmatpush1.msra.mxu0 %v236
    %3220 = vmatprep.subr.mxu0 %v240
    %3221 = vmatpush1.msra.mxu0 %v239
    %3222 = vmatprep.subr.mxu0 %v243
    %3223 = vmatpush1.msra.mxu0 %v242
    %3224 = vmatprep.subr.mxu0 %v246
    %3225 = vmatpush1.msra.mxu0 %v245
    %3226 = vmatprep.subr.mxu0 0.0
    %3227 = vmatpush1.msra.mxu0 0.0
    %3228 = vmatprep.subr.mxu0 0.0
    %3229 = vmatpush1.msra.mxu0 0.0
    %3230 = vmatprep.subr.mxu0 0.0
    %3231 = vmatpush1.msra.mxu0 0.0
    %3232 = vmatprep.subr.mxu0 0.0
    %3233 = vmatpush1.msra.mxu0 0.0
    %3234 = vmatprep.subr.mxu0 0.0
    %3235 = vmatpush1.msra.mxu0 0.0
    %3236 = vmatprep.subr.mxu0 0.0
    %3237 = vmatpush1.msra.mxu0 0.0
    %3238 = vmatprep.subr.mxu0 0.0
    %3239 = vmatpush1.msra.mxu0 0.0
    %3240 = vmatprep.subr.mxu0 0.0
    %3241 = vmatpush1.msra.mxu0 0.0
    %3242 = vmatprep.subr.mxu0 0.0
    %3243 = vmatpush1.msra.mxu0 0.0
    %3244 = vmatprep.subr.mxu0 0.0
    %3245 = vmatpush1.msra.mxu0 0.0
    %3246 = vmatprep.subr.mxu0 0.0
    %3247 = vmatpush1.msra.mxu0 0.0
    %3248 = vmatprep.subr.mxu0 0.0
    %3249 = vmatpush1.msra.mxu0 0.0
    %3250 = vmatprep.subr.mxu0 0.0
    %3251 = vmatpush1.msra.mxu0 0.0
    %3252 = vmatprep.subr.mxu0 0.0
    %3253 = vmatpush1.msra.mxu0 0.0
    %3254 = vmatprep.subr.mxu0 0.0
    %3255 = vmatpush1.msra.mxu0 0.0
    %3256 = vmatprep.subr.mxu0 0.0
    %3257 = vmatpush1.msra.mxu0 0.0
    %3258 = vmatprep.mubr.f32.mxu0 0.0
    %3259 = vmatmul.mubr.f32.gmra.mrb[0].mxu0 %v2888
    %v3260 = vpop.f32.mrb[0].mxu0
    %v3261 = vadd.f32 0.0, %v3260
    %v3262 = vpop.f32.mrb[0].mxu0
    %v3263 = vadd.f32 0.0, %v3262
    %3264 = vdwg.mxu0
    %3265 = vmatprep.subr.mxu0 0.0
    %3266 = vmatpush1.msra.mxu0 %v202
    %3267 = vmatprep.subr.mxu0 0.0
    %3268 = vmatpush1.msra.mxu0 %v205
    %3269 = vmatprep.subr.mxu0 0.0
    %3270 = vmatpush1.msra.mxu0 %v208
    %3271 = vmatprep.subr.mxu0 0.0
    %3272 = vmatpush1.msra.mxu0 %v211
    %3273 = vmatprep.subr.mxu0 0.0
    %3274 = vmatpush1.msra.mxu0 %v214
    %3275 = vmatprep.subr.mxu0 0.0
    %3276 = vmatpush1.msra.mxu0 %v217
    %3277 = vmatprep.subr.mxu0 0.0
    %3278 = vmatpush1.msra.mxu0 %v220
    %3279 = vmatprep.subr.mxu0 0.0
    %3280 = vmatpush1.msra.mxu0 %v223
    %3281 = vmatprep.subr.mxu0 0.0
    %3282 = vmatpush1.msra.mxu0 %v226
    %3283 = vmatprep.subr.mxu0 0.0
    %3284 = vmatpush1.msra.mxu0 %v229
    %3285 = vmatprep.subr.mxu0 0.0
    %3286 = vmatpush1.msra.mxu0 %v232
    %3287 = vmatprep.subr.mxu0 0.0
    %3288 = vmatpush1.msra.mxu0 %v235
    %3289 = vmatprep.subr.mxu0 0.0
    %3290 = vmatpush1.msra.mxu0 %v238
    %3291 = vmatprep.subr.mxu0 0.0
    %3292 = vmatpush1.msra.mxu0 %v241
    %3293 = vmatprep.subr.mxu0 0.0
    %3294 = vmatpush1.msra.mxu0 %v244
    %3295 = vmatprep.subr.mxu0 0.0
    %3296 = vmatpush1.msra.mxu0 %v247
    %3297 = vmatprep.subr.mxu0 0.0
    %3298 = vmatpush1.msra.mxu0 0.0
    %3299 = vmatprep.subr.mxu0 0.0
    %3300 = vmatpush1.msra.mxu0 0.0
    %3301 = vmatprep.subr.mxu0 0.0
    %3302 = vmatpush1.msra.mxu0 0.0
    %3303 = vmatprep.subr.mxu0 0.0
    %3304 = vmatpush1.msra.mxu0 0.0
    %3305 = vmatprep.subr.mxu0 0.0
    %3306 = vmatpush1.msra.mxu0 0.0
    %3307 = vmatprep.subr.mxu0 0.0
    %3308 = vmatpush1.msra.mxu0 0.0
    %3309 = vmatprep.subr.mxu0 0.0
    %3310 = vmatpush1.msra.mxu0 0.0
    %3311 = vmatprep.subr.mxu0 0.0
    %3312 = vmatpush1.msra.mxu0 0.0
    %3313 = vmatprep.subr.mxu0 0.0
    %3314 = vmatpush1.msra.mxu0 0.0
    %3315 = vmatprep.subr.mxu0 0.0
    %3316 = vmatpush1.msra.mxu0 0.0
    %3317 = vmatprep.subr.mxu0 0.0
    %3318 = vmatpush1.msra.mxu0 0.0
    %3319 = vmatprep.subr.mxu0 0.0
    %3320 = vmatpush1.msra.mxu0 0.0
    %3321 = vmatprep.subr.mxu0 0.0
    %3322 = vmatpush1.msra.mxu0 0.0
    %3323 = vmatprep.subr.mxu0 0.0
    %3324 = vmatpush1.msra.mxu0 0.0
    %3325 = vmatprep.subr.mxu0 0.0
    %3326 = vmatpush1.msra.mxu0 0.0
    %3327 = vmatprep.subr.mxu0 0.0
    %3328 = vmatpush1.msra.mxu0 0.0
    %3329 = vmatprep.mubr.f32.mxu0 0.0
    %3330 = vmatmul.mubr.f32.gmra.mrb[0].mxu0 %v2888
    %v3331 = vpop.f32.mrb[0].mxu0
    %v3332 = vadd.f32 0.0, %v3331
    %v3333 = vpop.f32.mrb[0].mxu0
    %3334 = vdwg.mxu0
    %v3335 = vadd.f32 %v3120, %v3261
    %v3336 = vadd.f32 %v3122, %v3263
    %v3337 = vxor.u32 %v3335, 2147483648
    %v3338 = vxor.u32 %v3336, 2147483648
    %v3339 = vmul.f32 %v3337, 1.442695
    %v3340 = vpow.pop %v3339
    %v3341 = vmul.f32 %v3338, 1.442695
    %v3342 = vpow.pop %v3341
    %v3343 = vadd.f32 %v3340, 1.0
    %v3344 = vadd.f32 %v3342, 1.0
    %v3345 = vrcp.pop %v3343
    %v3346 = vmul.f32 1.0, %v3345
    %v3347 = vrcp.pop %v3344
    %v3348 = vmul.f32 1.0, %v3347
    %v3349 = vadd.f32 %v3332, %v277
    %v3350 = vmul.f32 %v3346, %v3349
    %v3351 = vadd.f32 %v3191, %v3350
    %v3352 = vtanh.pop %v3351
    %v3353 = vsub.f32 1.0, %v3348
    %v3354 = vmul.f32 %v3353, %v3352
    %v3355 = vmul.f32 %v3348, %v2888
    %v3356 = vadd.f32 %v3354, %v3355
    %3357 = vst [vmem:[#allocation2 + $0x28] sm:$0xff] %v3356
    %3358 = vmatprep.subr.mxu0 %v153
    %3359 = vmatpush1.msra.mxu0 %v152
    %3360 = vmatprep.subr.mxu0 %v156
    %3361 = vmatpush1.msra.mxu0 %v155
    %3362 = vmatprep.subr.mxu0 %v159
    %3363 = vmatpush1.msra.mxu0 %v158
    %3364 = vmatprep.subr.mxu0 %v162
    %3365 = vmatpush1.msra.mxu0 %v161
    %3366 = vmatprep.subr.mxu0 %v165
    %3367 = vmatpush1.msra.mxu0 %v164
    %3368 = vmatprep.subr.mxu0 %v168
    %3369 = vmatpush1.msra.mxu0 %v167
    %3370 = vmatprep.subr.mxu0 %v171
    %3371 = vmatpush1.msra.mxu0 %v170
    %3372 = vmatprep.subr.mxu0 %v174
    %3373 = vmatpush1.msra.mxu0 %v173
    %3374 = vmatprep.subr.mxu0 %v177
    %3375 = vmatpush1.msra.mxu0 %v176
    %3376 = vmatprep.subr.mxu0 %v180
    %3377 = vmatpush1.msra.mxu0 %v179
    %3378 = vmatprep.subr.mxu0 %v183
    %3379 = vmatpush1.msra.mxu0 %v182
    %3380 = vmatprep.subr.mxu0 %v186
    %3381 = vmatpush1.msra.mxu0 %v185
    %3382 = vmatprep.subr.mxu0 %v189
    %3383 = vmatpush1.msra.mxu0 %v188
    %3384 = vmatprep.subr.mxu0 %v192
    %3385 = vmatpush1.msra.mxu0 %v191
    %3386 = vmatprep.subr.mxu0 %v195
    %3387 = vmatpush1.msra.mxu0 %v194
    %3388 = vmatprep.subr.mxu0 %v198
    %3389 = vmatpush1.msra.mxu0 %v197
    %3390 = vmatprep.subr.mxu0 0.0
    %3391 = vmatpush1.msra.mxu0 0.0
    %3392 = vmatprep.subr.mxu0 0.0
    %3393 = vmatpush1.msra.mxu0 0.0
    %3394 = vmatprep.subr.mxu0 0.0
    %3395 = vmatpush1.msra.mxu0 0.0
    %3396 = vmatprep.subr.mxu0 0.0
    %3397 = vmatpush1.msra.mxu0 0.0
    %3398 = vmatprep.subr.mxu0 0.0
    %3399 = vmatpush1.msra.mxu0 0.0
    %3400 = vmatprep.subr.mxu0 0.0
    %3401 = vmatpush1.msra.mxu0 0.0
    %3402 = vmatprep.subr.mxu0 0.0
    %3403 = vmatpush1.msra.mxu0 0.0
    %3404 = vmatprep.subr.mxu0 0.0
    %3405 = vmatpush1.msra.mxu0 0.0
    %3406 = vmatprep.subr.mxu0 0.0
    %3407 = vmatpush1.msra.mxu0 0.0
    %3408 = vmatprep.subr.mxu0 0.0
    %3409 = vmatpush1.msra.mxu0 0.0
    %3410 = vmatprep.subr.mxu0 0.0
    %3411 = vmatpush1.msra.mxu0 0.0
    %3412 = vmatprep.subr.mxu0 0.0
    %3413 = vmatpush1.msra.mxu0 0.0
    %3414 = vmatprep.subr.mxu0 0.0
    %3415 = vmatpush1.msra.mxu0 0.0
    %3416 = vmatprep.subr.mxu0 0.0
    %3417 = vmatpush1.msra.mxu0 0.0
    %3418 = vmatprep.subr.mxu0 0.0
    %3419 = vmatpush1.msra.mxu0 0.0
    %3420 = vmatprep.subr.mxu0 0.0
    %3421 = vmatpush1.msra.mxu0 0.0
    %3422 = vmatprep.mubr.f32.mxu0 0.0
    %3423 = vmatmul.mubr.f32.gmra.mrb[0].mxu0 %v3052
    %v3424 = vpop.f32.mrb[0].mxu0
    %v3425 = vadd.f32 0.0, %v3424
    %v3426 = vpop.f32.mrb[0].mxu0
    %v3427 = vadd.f32 0.0, %v3426
    %3428 = vdwg.mxu0
    %3429 = vmatprep.subr.mxu0 0.0
    %3430 = vmatpush1.msra.mxu0 %v154
    %3431 = vmatprep.subr.mxu0 0.0
    %3432 = vmatpush1.msra.mxu0 %v157
    %3433 = vmatprep.subr.mxu0 0.0
    %3434 = vmatpush1.msra.mxu0 %v160
    %3435 = vmatprep.subr.mxu0 0.0
    %3436 = vmatpush1.msra.mxu0 %v163
    %3437 = vmatprep.subr.mxu0 0.0
    %3438 = vmatpush1.msra.mxu0 %v166
    %3439 = vmatprep.subr.mxu0 0.0
    %3440 = vmatpush1.msra.mxu0 %v169
    %3441 = vmatprep.subr.mxu0 0.0
    %3442 = vmatpush1.msra.mxu0 %v172
    %3443 = vmatprep.subr.mxu0 0.0
    %3444 = vmatpush1.msra.mxu0 %v175
    %3445 = vmatprep.subr.mxu0 0.0
    %3446 = vmatpush1.msra.mxu0 %v178
    %3447 = vmatprep.subr.mxu0 0.0
    %3448 = vmatpush1.msra.mxu0 %v181
    %3449 = vmatprep.subr.mxu0 0.0
    %3450 = vmatpush1.msra.mxu0 %v184
    %3451 = vmatprep.subr.mxu0 0.0
    %3452 = vmatpush1.msra.mxu0 %v187
    %3453 = vmatprep.subr.mxu0 0.0
    %3454 = vmatpush1.msra.mxu0 %v190
    %3455 = vmatprep.subr.mxu0 0.0
    %3456 = vmatpush1.msra.mxu0 %v193
    %3457 = vmatprep.subr.mxu0 0.0
    %3458 = vmatpush1.msra.mxu0 %v196
    %3459 = vmatprep.subr.mxu0 0.0
    %3460 = vmatpush1.msra.mxu0 %v199
    %3461 = vmatprep.subr.mxu0 0.0
    %3462 = vmatpush1.msra.mxu0 0.0
    %3463 = vmatprep.subr.mxu0 0.0
    %3464 = vmatpush1.msra.mxu0 0.0
    %3465 = vmatprep.subr.mxu0 0.0
    %3466 = vmatpush1.msra.mxu0 0.0
    %3467 = vmatprep.subr.mxu0 0.0
    %3468 = vmatpush1.msra.mxu0 0.0
    %3469 = vmatprep.subr.mxu0 0.0
    %3470 = vmatpush1.msra.mxu0 0.0
    %3471 = vmatprep.subr.mxu0 0.0
    %3472 = vmatpush1.msra.mxu0 0.0
    %3473 = vmatprep.subr.mxu0 0.0
    %3474 = vmatpush1.msra.mxu0 0.0
    %3475 = vmatprep.subr.mxu0 0.0
    %3476 = vmatpush1.msra.mxu0 0.0
    %3477 = vmatprep.subr.mxu0 0.0
    %3478 = vmatpush1.msra.mxu0 0.0
    %3479 = vmatprep.subr.mxu0 0.0
    %3480 = vmatpush1.msra.mxu0 0.0
    %3481 = vmatprep.subr.mxu0 0.0
    %3482 = vmatpush1.msra.mxu0 0.0
    %3483 = vmatprep.subr.mxu0 0.0
    %3484 = vmatpush1.msra.mxu0 0.0
    %3485 = vmatprep.subr.mxu0 0.0
    %3486 = vmatpush1.msra.mxu0 0.0
    %3487 = vmatprep.subr.mxu0 0.0
    %3488 = vmatpush1.msra.mxu0 0.0
    %3489 = vmatprep.subr.mxu0 0.0
    %3490 = vmatpush1.msra.mxu0 0.0
    %3491 = vmatprep.subr.mxu0 0.0
    %3492 = vmatpush1.msra.mxu0 0.0
    %3493 = vmatprep.mubr.f32.mxu0 0.0
    %3494 = vmatmul.mubr.f32.gmra.mrb[0].mxu0 %v3052
    %v3495 = vpop.f32.mrb[0].mxu0
    %v3496 = vadd.f32 0.0, %v3495
    %v3497 = vpop.f32.mrb[0].mxu0
    %3498 = vdwg.mxu0
    %v3499 = vadd.f32 %v432, %v3425
    %v3500 = vadd.f32 %v434, %v3427
    %v3501 = vxor.u32 %v3499, 2147483648
    %v3502 = vxor.u32 %v3500, 2147483648
    %v3503 = vmul.f32 %v3501, 1.442695
    %v3504 = vpow.pop %v3503
    %v3505 = vmul.f32 %v3502, 1.442695
    %v3506 = vpow.pop %v3505
    %v3507 = vadd.f32 %v3504, 1.0
    %v3508 = vadd.f32 %v3506, 1.0
    %v3509 = vrcp.pop %v3507
    %v3510 = vmul.f32 1.0, %v3509
    %v3511 = vrcp.pop %v3508
    %v3512 = vmul.f32 1.0, %v3511
    %v3513 = vadd.f32 %v3496, %v270
    %v3514 = vmul.f32 %v3510, %v3513
    %v3515 = vadd.f32 %v539, %v3514
    %v3516 = vtanh.pop %v3515
    %v3517 = vsub.f32 1.0, %v3512
    %v3518 = vmul.f32 %v3517, %v3516
    %v3519 = vmul.f32 %v3512, %v3052
    %v3520 = vadd.f32 %v3518, %v3519
    %3521 = vmatprep.subr.mxu0 %v105
    %3522 = vmatpush1.msra.mxu0 %v104
    %3523 = vmatprep.subr.mxu0 %v108
    %3524 = vmatpush1.msra.mxu0 %v107
    %3525 = vmatprep.subr.mxu0 %v111
    %3526 = vmatpush1.msra.mxu0 %v110
    %3527 = vmatprep.subr.mxu0 %v114
    %3528 = vmatpush1.msra.mxu0 %v113
    %3529 = vmatprep.subr.mxu0 %v117
    %3530 = vmatpush1.msra.mxu0 %v116
    %3531 = vmatprep.subr.mxu0 %v120
    %3532 = vmatpush1.msra.mxu0 %v119
    %3533 = vmatprep.subr.mxu0 %v123
    %3534 = vmatpush1.msra.mxu0 %v122
    %3535 = vmatprep.subr.mxu0 %v126
    %3536 = vmatpush1.msra.mxu0 %v125
    %3537 = vmatprep.subr.mxu0 %v129
    %3538 = vmatpush1.msra.mxu0 %v128
    %3539 = vmatprep.subr.mxu0 %v132
    %3540 = vmatpush1.msra.mxu0 %v131
    %3541 = vmatprep.subr.mxu0 %v135
    %3542 = vmatpush1.msra.mxu0 %v134
    %3543 = vmatprep.subr.mxu0 %v138
    %3544 = vmatpush1.msra.mxu0 %v137
    %3545 = vmatprep.subr.mxu0 %v141
    %3546 = vmatpush1.msra.mxu0 %v140
    %3547 = vmatprep.subr.mxu0 %v144
    %3548 = vmatpush1.msra.mxu0 %v143
    %3549 = vmatprep.subr.mxu0 %v147
    %3550 = vmatpush1.msra.mxu0 %v146
    %3551 = vmatprep.subr.mxu0 %v150
    %3552 = vmatpush1.msra.mxu0 %v149
    %3553 = vmatprep.subr.mxu0 0.0
    %3554 = vmatpush1.msra.mxu0 0.0
    %3555 = vmatprep.subr.mxu0 0.0
    %3556 = vmatpush1.msra.mxu0 0.0
    %3557 = vmatprep.subr.mxu0 0.0
    %3558 = vmatpush1.msra.mxu0 0.0
    %3559 = vmatprep.subr.mxu0 0.0
    %3560 = vmatpush1.msra.mxu0 0.0
    %3561 = vmatprep.subr.mxu0 0.0
    %3562 = vmatpush1.msra.mxu0 0.0
    %3563 = vmatprep.subr.mxu0 0.0
    %3564 = vmatpush1.msra.mxu0 0.0
    %3565 = vmatprep.subr.mxu0 0.0
    %3566 = vmatpush1.msra.mxu0 0.0
    %3567 = vmatprep.subr.mxu0 0.0
    %3568 = vmatpush1.msra.mxu0 0.0
    %3569 = vmatprep.subr.mxu0 0.0
    %3570 = vmatpush1.msra.mxu0 0.0
    %3571 = vmatprep.subr.mxu0 0.0
    %3572 = vmatpush1.msra.mxu0 0.0
    %3573 = vmatprep.subr.mxu0 0.0
    %3574 = vmatpush1.msra.mxu0 0.0
    %3575 = vmatprep.subr.mxu0 0.0
    %3576 = vmatpush1.msra.mxu0 0.0
    %3577 = vmatprep.subr.mxu0 0.0
    %3578 = vmatpush1.msra.mxu0 0.0
    %3579 = vmatprep.subr.mxu0 0.0
    %3580 = vmatpush1.msra.mxu0 0.0
    %3581 = vmatprep.subr.mxu0 0.0
    %3582 = vmatpush1.msra.mxu0 0.0
    %3583 = vmatprep.subr.mxu0 0.0
    %3584 = vmatpush1.msra.mxu0 0.0
    %3585 = vmatprep.mubr.f32.mxu0 0.0
    %3586 = vmatmul.mubr.f32.gmra.mrb[0].mxu0 %v3520
    %v3587 = vpop.f32.mrb[0].mxu0
    %v3588 = vadd.f32 %v253, %v3587
    %v3589 = vpop.f32.mrb[0].mxu0
    %v3590 = vadd.f32 %v257, %v3589
    %3591 = vdwg.mxu0
    %3592 = vmatprep.subr.mxu0 0.0
    %3593 = vmatpush1.msra.mxu0 %v106
    %3594 = vmatprep.subr.mxu0 0.0
    %3595 = vmatpush1.msra.mxu0 %v109
    %3596 = vmatprep.subr.mxu0 0.0
    %3597 = vmatpush1.msra.mxu0 %v112
    %3598 = vmatprep.subr.mxu0 0.0
    %3599 = vmatpush1.msra.mxu0 %v115
    %3600 = vmatprep.subr.mxu0 0.0
    %3601 = vmatpush1.msra.mxu0 %v118
    %3602 = vmatprep.subr.mxu0 0.0
    %3603 = vmatpush1.msra.mxu0 %v121
    %3604 = vmatprep.subr.mxu0 0.0
    %3605 = vmatpush1.msra.mxu0 %v124
    %3606 = vmatprep.subr.mxu0 0.0
    %3607 = vmatpush1.msra.mxu0 %v127
    %3608 = vmatprep.subr.mxu0 0.0
    %3609 = vmatpush1.msra.mxu0 %v130
    %3610 = vmatprep.subr.mxu0 0.0
    %3611 = vmatpush1.msra.mxu0 %v133
    %3612 = vmatprep.subr.mxu0 0.0
    %3613 = vmatpush1.msra.mxu0 %v136
    %3614 = vmatprep.subr.mxu0 0.0
    %3615 = vmatpush1.msra.mxu0 %v139
    %3616 = vmatprep.subr.mxu0 0.0
    %3617 = vmatpush1.msra.mxu0 %v142
    %3618 = vmatprep.subr.mxu0 0.0
    %3619 = vmatpush1.msra.mxu0 %v145
    %3620 = vmatprep.subr.mxu0 0.0
    %3621 = vmatpush1.msra.mxu0 %v148
    %3622 = vmatprep.subr.mxu0 0.0
    %3623 = vmatpush1.msra.mxu0 %v151
    %3624 = vmatprep.subr.mxu0 0.0
    %3625 = vmatpush1.msra.mxu0 0.0
    %3626 = vmatprep.subr.mxu0 0.0
    %3627 = vmatpush1.msra.mxu0 0.0
    %3628 = vmatprep.subr.mxu0 0.0
    %3629 = vmatpush1.msra.mxu0 0.0
    %3630 = vmatprep.subr.mxu0 0.0
    %3631 = vmatpush1.msra.mxu0 0.0
    %3632 = vmatprep.subr.mxu0 0.0
    %3633 = vmatpush1.msra.mxu0 0.0
    %3634 = vmatprep.subr.mxu0 0.0
    %3635 = vmatpush1.msra.mxu0 0.0
    %3636 = vmatprep.subr.mxu0 0.0
    %3637 = vmatpush1.msra.mxu0 0.0
    %3638 = vmatprep.subr.mxu0 0.0
    %3639 = vmatpush1.msra.mxu0 0.0
    %3640 = vmatprep.subr.mxu0 0.0
    %3641 = vmatpush1.msra.mxu0 0.0
    %3642 = vmatprep.subr.mxu0 0.0
    %3643 = vmatpush1.msra.mxu0 0.0
    %3644 = vmatprep.subr.mxu0 0.0
    %3645 = vmatpush1.msra.mxu0 0.0
    %3646 = vmatprep.subr.mxu0 0.0
    %3647 = vmatpush1.msra.mxu0 0.0
    %3648 = vmatprep.subr.mxu0 0.0
    %3649 = vmatpush1.msra.mxu0 0.0
    %3650 = vmatprep.subr.mxu0 0.0
    %3651 = vmatpush1.msra.mxu0 0.0
    %3652 = vmatprep.subr.mxu0 0.0
    %3653 = vmatpush1.msra.mxu0 0.0
    %3654 = vmatprep.subr.mxu0 0.0
    %3655 = vmatpush1.msra.mxu0 0.0
    %3656 = vmatprep.mubr.f32.mxu0 0.0
    %3657 = vmatmul.mubr.f32.gmra.mrb[0].mxu0 %v3520
    %v3658 = vpop.f32.mrb[0].mxu0
    %v3659 = vadd.f32 %v261, %v3658
    %v3660 = vpop.f32.mrb[0].mxu0
    %3661 = vdwg.mxu0
    %3662 = vmatprep.subr.mxu0 %v201
    %3663 = vmatpush1.msra.mxu0 %v200
    %3664 = vmatprep.subr.mxu0 %v204
    %3665 = vmatpush1.msra.mxu0 %v203
    %3666 = vmatprep.subr.mxu0 %v207
    %3667 = vmatpush1.msra.mxu0 %v206
    %3668 = vmatprep.subr.mxu0 %v210
    %3669 = vmatpush1.msra.mxu0 %v209
    %3670 = vmatprep.subr.mxu0 %v213
    %3671 = vmatpush1.msra.mxu0 %v212
    %3672 = vmatprep.subr.mxu0 %v216
    %3673 = vmatpush1.msra.mxu0 %v215
    %3674 = vmatprep.subr.mxu0 %v219
    %3675 = vmatpush1.msra.mxu0 %v218
    %3676 = vmatprep.subr.mxu0 %v222
    %3677 = vmatpush1.msra.mxu0 %v221
    %3678 = vmatprep.subr.mxu0 %v225
    %3679 = vmatpush1.msra.mxu0 %v224
    %3680 = vmatprep.subr.mxu0 %v228
    %3681 = vmatpush1.msra.mxu0 %v227
    %3682 = vmatprep.subr.mxu0 %v231
    %3683 = vmatpush1.msra.mxu0 %v230
    %3684 = vmatprep.subr.mxu0 %v234
    %3685 = vmatpush1.msra.mxu0 %v233
    %3686 = vmatprep.subr.mxu0 %v237
    %3687 = vmatpush1.msra.mxu0 %v236
    %3688 = vmatprep.subr.mxu0 %v240
    %3689 = vmatpush1.msra.mxu0 %v239
    %3690 = vmatprep.subr.mxu0 %v243
    %3691 = vmatpush1.msra.mxu0 %v242
    %3692 = vmatprep.subr.mxu0 %v246
    %3693 = vmatpush1.msra.mxu0 %v245
    %3694 = vmatprep.subr.mxu0 0.0
    %3695 = vmatpush1.msra.mxu0 0.0
    %3696 = vmatprep.subr.mxu0 0.0
    %3697 = vmatpush1.msra.mxu0 0.0
    %3698 = vmatprep.subr.mxu0 0.0
    %3699 = vmatpush1.msra.mxu0 0.0
    %3700 = vmatprep.subr.mxu0 0.0
    %3701 = vmatpush1.msra.mxu0 0.0
    %3702 = vmatprep.subr.mxu0 0.0
    %3703 = vmatpush1.msra.mxu0 0.0
    %3704 = vmatprep.subr.mxu0 0.0
    %3705 = vmatpush1.msra.mxu0 0.0
    %3706 = vmatprep.subr.mxu0 0.0
    %3707 = vmatpush1.msra.mxu0 0.0
    %3708 = vmatprep.subr.mxu0 0.0
    %3709 = vmatpush1.msra.mxu0 0.0
    %3710 = vmatprep.subr.mxu0 0.0
    %3711 = vmatpush1.msra.mxu0 0.0
    %3712 = vmatprep.subr.mxu0 0.0
    %3713 = vmatpush1.msra.mxu0 0.0
    %3714 = vmatprep.subr.mxu0 0.0
    %3715 = vmatpush1.msra.mxu0 0.0
    %3716 = vmatprep.subr.mxu0 0.0
    %3717 = vmatpush1.msra.mxu0 0.0
    %3718 = vmatprep.subr.mxu0 0.0
    %3719 = vmatpush1.msra.mxu0 0.0
    %3720 = vmatprep.subr.mxu0 0.0
    %3721 = vmatpush1.msra.mxu0 0.0
    %3722 = vmatprep.subr.mxu0 0.0
    %3723 = vmatpush1.msra.mxu0 0.0
    %3724 = vmatprep.subr.mxu0 0.0
    %3725 = vmatpush1.msra.mxu0 0.0
    %3726 = vmatprep.mubr.f32.mxu0 0.0
    %3727 = vmatmul.mubr.f32.gmra.mrb[0].mxu0 %v3356
    %v3728 = vpop.f32.mrb[0].mxu0
    %v3729 = vadd.f32 0.0, %v3728
    %v3730 = vpop.f32.mrb[0].mxu0
    %v3731 = vadd.f32 0.0, %v3730
    %3732 = vdwg.mxu0
    %3733 = vmatprep.subr.mxu0 0.0
    %3734 = vmatpush1.msra.mxu0 %v202
    %3735 = vmatprep.subr.mxu0 0.0
    %3736 = vmatpush1.msra.mxu0 %v205
    %3737 = vmatprep.subr.mxu0 0.0
    %3738 = vmatpush1.msra.mxu0 %v208
    %3739 = vmatprep.subr.mxu0 0.0
    %3740 = vmatpush1.msra.mxu0 %v211
    %3741 = vmatprep.subr.mxu0 0.0
    %3742 = vmatpush1.msra.mxu0 %v214
    %3743 = vmatprep.subr.mxu0 0.0
    %3744 = vmatpush1.msra.mxu0 %v217
    %3745 = vmatprep.subr.mxu0 0.0
    %3746 = vmatpush1.msra.mxu0 %v220
    %3747 = vmatprep.subr.mxu0 0.0
    %3748 = vmatpush1.msra.mxu0 %v223
    %3749 = vmatprep.subr.mxu0 0.0
    %3750 = vmatpush1.msra.mxu0 %v226
    %3751 = vmatprep.subr.mxu0 0.0
    %3752 = vmatpush1.msra.mxu0 %v229
    %3753 = vmatprep.subr.mxu0 0.0
    %3754 = vmatpush1.msra.mxu0 %v232
    %3755 = vmatprep.subr.mxu0 0.0
    %3756 = vmatpush1.msra.mxu0 %v235
    %3757 = vmatprep.subr.mxu0 0.0
    %3758 = vmatpush1.msra.mxu0 %v238
    %3759 = vmatprep.subr.mxu0 0.0
    %3760 = vmatpush1.msra.mxu0 %v241
    %3761 = vmatprep.subr.mxu0 0.0
    %3762 = vmatpush1.msra.mxu0 %v244
    %3763 = vmatprep.subr.mxu0 0.0
    %3764 = vmatpush1.msra.mxu0 %v247
    %3765 = vmatprep.subr.mxu0 0.0
    %3766 = vmatpush1.msra.mxu0 0.0
    %3767 = vmatprep.subr.mxu0 0.0
    %3768 = vmatpush1.msra.mxu0 0.0
    %3769 = vmatprep.subr.mxu0 0.0
    %3770 = vmatpush1.msra.mxu0 0.0
    %3771 = vmatprep.subr.mxu0 0.0
    %3772 = vmatpush1.msra.mxu0 0.0
    %3773 = vmatprep.subr.mxu0 0.0
    %3774 = vmatpush1.msra.mxu0 0.0
    %3775 = vmatprep.subr.mxu0 0.0
    %3776 = vmatpush1.msra.mxu0 0.0
    %3777 = vmatprep.subr.mxu0 0.0
    %3778 = vmatpush1.msra.mxu0 0.0
    %3779 = vmatprep.subr.mxu0 0.0
    %3780 = vmatpush1.msra.mxu0 0.0
    %3781 = vmatprep.subr.mxu0 0.0
    %3782 = vmatpush1.msra.mxu0 0.0
    %3783 = vmatprep.subr.mxu0 0.0
    %3784 = vmatpush1.msra.mxu0 0.0
    %3785 = vmatprep.subr.mxu0 0.0
    %3786 = vmatpush1.msra.mxu0 0.0
    %3787 = vmatprep.subr.mxu0 0.0
    %3788 = vmatpush1.msra.mxu0 0.0
    %3789 = vmatprep.subr.mxu0 0.0
    %3790 = vmatpush1.msra.mxu0 0.0
    %3791 = vmatprep.subr.mxu0 0.0
    %3792 = vmatpush1.msra.mxu0 0.0
    %3793 = vmatprep.subr.mxu0 0.0
    %3794 = vmatpush1.msra.mxu0 0.0
    %3795 = vmatprep.subr.mxu0 0.0
    %3796 = vmatpush1.msra.mxu0 0.0
    %3797 = vmatprep.mubr.f32.mxu0 0.0
    %3798 = vmatmul.mubr.f32.gmra.mrb[0].mxu0 %v3356
    %v3799 = vpop.f32.mrb[0].mxu0
    %v3800 = vadd.f32 0.0, %v3799
    %v3801 = vpop.f32.mrb[0].mxu0
    %3802 = vdwg.mxu0
    %v3803 = vadd.f32 %v3588, %v3729
    %v3804 = vadd.f32 %v3590, %v3731
    %v3805 = vxor.u32 %v3803, 2147483648
    %v3806 = vxor.u32 %v3804, 2147483648
    %v3807 = vmul.f32 %v3805, 1.442695
    %v3808 = vpow.pop %v3807
    %v3809 = vmul.f32 %v3806, 1.442695
    %v3810 = vpow.pop %v3809
    %v3811 = vadd.f32 %v3808, 1.0
    %v3812 = vadd.f32 %v3810, 1.0
    %v3813 = vrcp.pop %v3811
    %v3814 = vmul.f32 1.0, %v3813
    %v3815 = vrcp.pop %v3812
    %v3816 = vmul.f32 1.0, %v3815
    %v3817 = vadd.f32 %v3800, %v277
    %v3818 = vmul.f32 %v3814, %v3817
    %v3819 = vadd.f32 %v3659, %v3818
    %v3820 = vtanh.pop %v3819
    %v3821 = vsub.f32 1.0, %v3816
    %v3822 = vmul.f32 %v3821, %v3820
    %v3823 = vmul.f32 %v3816, %v3356
    %v3824 = vadd.f32 %v3822, %v3823
    %3825 = vst [vmem:[#allocation2 + $0x30] sm:$0xff] %v3824
    %3826 = vmatprep.subr.mxu0 %v153
    %3827 = vmatpush1.msra.mxu0 %v152
    %3828 = vmatprep.subr.mxu0 %v156
    %3829 = vmatpush1.msra.mxu0 %v155
    %3830 = vmatprep.subr.mxu0 %v159
    %3831 = vmatpush1.msra.mxu0 %v158
    %3832 = vmatprep.subr.mxu0 %v162
    %3833 = vmatpush1.msra.mxu0 %v161
    %3834 = vmatprep.subr.mxu0 %v165
    %3835 = vmatpush1.msra.mxu0 %v164
    %3836 = vmatprep.subr.mxu0 %v168
    %3837 = vmatpush1.msra.mxu0 %v167
    %3838 = vmatprep.subr.mxu0 %v171
    %3839 = vmatpush1.msra.mxu0 %v170
    %3840 = vmatprep.subr.mxu0 %v174
    %3841 = vmatpush1.msra.mxu0 %v173
    %3842 = vmatprep.subr.mxu0 %v177
    %3843 = vmatpush1.msra.mxu0 %v176
    %3844 = vmatprep.subr.mxu0 %v180
    %3845 = vmatpush1.msra.mxu0 %v179
    %3846 = vmatprep.subr.mxu0 %v183
    %3847 = vmatpush1.msra.mxu0 %v182
    %3848 = vmatprep.subr.mxu0 %v186
    %3849 = vmatpush1.msra.mxu0 %v185
    %3850 = vmatprep.subr.mxu0 %v189
    %3851 = vmatpush1.msra.mxu0 %v188
    %3852 = vmatprep.subr.mxu0 %v192
    %3853 = vmatpush1.msra.mxu0 %v191
    %3854 = vmatprep.subr.mxu0 %v195
    %3855 = vmatpush1.msra.mxu0 %v194
    %3856 = vmatprep.subr.mxu0 %v198
    %3857 = vmatpush1.msra.mxu0 %v197
    %3858 = vmatprep.subr.mxu0 0.0
    %3859 = vmatpush1.msra.mxu0 0.0
    %3860 = vmatprep.subr.mxu0 0.0
    %3861 = vmatpush1.msra.mxu0 0.0
    %3862 = vmatprep.subr.mxu0 0.0
    %3863 = vmatpush1.msra.mxu0 0.0
    %3864 = vmatprep.subr.mxu0 0.0
    %3865 = vmatpush1.msra.mxu0 0.0
    %3866 = vmatprep.subr.mxu0 0.0
    %3867 = vmatpush1.msra.mxu0 0.0
    %3868 = vmatprep.subr.mxu0 0.0
    %3869 = vmatpush1.msra.mxu0 0.0
    %3870 = vmatprep.subr.mxu0 0.0
    %3871 = vmatpush1.msra.mxu0 0.0
    %3872 = vmatprep.subr.mxu0 0.0
    %3873 = vmatpush1.msra.mxu0 0.0
    %3874 = vmatprep.subr.mxu0 0.0
    %3875 = vmatpush1.msra.mxu0 0.0
    %3876 = vmatprep.subr.mxu0 0.0
    %3877 = vmatpush1.msra.mxu0 0.0
    %3878 = vmatprep.subr.mxu0 0.0
    %3879 = vmatpush1.msra.mxu0 0.0
    %3880 = vmatprep.subr.mxu0 0.0
    %3881 = vmatpush1.msra.mxu0 0.0
    %3882 = vmatprep.subr.mxu0 0.0
    %3883 = vmatpush1.msra.mxu0 0.0
    %3884 = vmatprep.subr.mxu0 0.0
    %3885 = vmatpush1.msra.mxu0 0.0
    %3886 = vmatprep.subr.mxu0 0.0
    %3887 = vmatpush1.msra.mxu0 0.0
    %3888 = vmatprep.subr.mxu0 0.0
    %3889 = vmatpush1.msra.mxu0 0.0
    %3890 = vmatprep.mubr.f32.mxu0 0.0
    %3891 = vmatmul.mubr.f32.gmra.mrb[0].mxu0 %v3520
    %v3892 = vpop.f32.mrb[0].mxu0
    %v3893 = vadd.f32 0.0, %v3892
    %v3894 = vpop.f32.mrb[0].mxu0
    %v3895 = vadd.f32 0.0, %v3894
    %3896 = vdwg.mxu0
    %3897 = vmatprep.subr.mxu0 0.0
    %3898 = vmatpush1.msra.mxu0 %v154
    %3899 = vmatprep.subr.mxu0 0.0
    %3900 = vmatpush1.msra.mxu0 %v157
    %3901 = vmatprep.subr.mxu0 0.0
    %3902 = vmatpush1.msra.mxu0 %v160
    %3903 = vmatprep.subr.mxu0 0.0
    %3904 = vmatpush1.msra.mxu0 %v163
    %3905 = vmatprep.subr.mxu0 0.0
    %3906 = vmatpush1.msra.mxu0 %v166
    %3907 = vmatprep.subr.mxu0 0.0
    %3908 = vmatpush1.msra.mxu0 %v169
    %3909 = vmatprep.subr.mxu0 0.0
    %3910 = vmatpush1.msra.mxu0 %v172
    %3911 = vmatprep.subr.mxu0 0.0
    %3912 = vmatpush1.msra.mxu0 %v175
    %3913 = vmatprep.subr.mxu0 0.0
    %3914 = vmatpush1.msra.mxu0 %v178
    %3915 = vmatprep.subr.mxu0 0.0
    %3916 = vmatpush1.msra.mxu0 %v181
    %3917 = vmatprep.subr.mxu0 0.0
    %3918 = vmatpush1.msra.mxu0 %v184
    %3919 = vmatprep.subr.mxu0 0.0
    %3920 = vmatpush1.msra.mxu0 %v187
    %3921 = vmatprep.subr.mxu0 0.0
    %3922 = vmatpush1.msra.mxu0 %v190
    %3923 = vmatprep.subr.mxu0 0.0
    %3924 = vmatpush1.msra.mxu0 %v193
    %3925 = vmatprep.subr.mxu0 0.0
    %3926 = vmatpush1.msra.mxu0 %v196
    %3927 = vmatprep.subr.mxu0 0.0
    %3928 = vmatpush1.msra.mxu0 %v199
    %3929 = vmatprep.subr.mxu0 0.0
    %3930 = vmatpush1.msra.mxu0 0.0
    %3931 = vmatprep.subr.mxu0 0.0
    %3932 = vmatpush1.msra.mxu0 0.0
    %3933 = vmatprep.subr.mxu0 0.0
    %3934 = vmatpush1.msra.mxu0 0.0
    %3935 = vmatprep.subr.mxu0 0.0
    %3936 = vmatpush1.msra.mxu0 0.0
    %3937 = vmatprep.subr.mxu0 0.0
    %3938 = vmatpush1.msra.mxu0 0.0
    %3939 = vmatprep.subr.mxu0 0.0
    %3940 = vmatpush1.msra.mxu0 0.0
    %3941 = vmatprep.subr.mxu0 0.0
    %3942 = vmatpush1.msra.mxu0 0.0
    %3943 = vmatprep.subr.mxu0 0.0
    %3944 = vmatpush1.msra.mxu0 0.0
    %3945 = vmatprep.subr.mxu0 0.0
    %3946 = vmatpush1.msra.mxu0 0.0
    %3947 = vmatprep.subr.mxu0 0.0
    %3948 = vmatpush1.msra.mxu0 0.0
    %3949 = vmatprep.subr.mxu0 0.0
    %3950 = vmatpush1.msra.mxu0 0.0
    %3951 = vmatprep.subr.mxu0 0.0
    %3952 = vmatpush1.msra.mxu0 0.0
    %3953 = vmatprep.subr.mxu0 0.0
    %3954 = vmatpush1.msra.mxu0 0.0
    %3955 = vmatprep.subr.mxu0 0.0
    %3956 = vmatpush1.msra.mxu0 0.0
    %3957 = vmatprep.subr.mxu0 0.0
    %3958 = vmatpush1.msra.mxu0 0.0
    %3959 = vmatprep.subr.mxu0 0.0
    %3960 = vmatpush1.msra.mxu0 0.0
    %3961 = vmatprep.mubr.f32.mxu0 0.0
    %3962 = vmatmul.mubr.f32.gmra.mrb[0].mxu0 %v3520
    %v3963 = vpop.f32.mrb[0].mxu0
    %v3964 = vadd.f32 0.0, %v3963
    %v3965 = vpop.f32.mrb[0].mxu0
    %3966 = vdwg.mxu0
    %v3967 = vadd.f32 %v438, %v3893
    %v3968 = vadd.f32 %v440, %v3895
    %v3969 = vxor.u32 %v3967, 2147483648
    %v3970 = vxor.u32 %v3968, 2147483648
    %v3971 = vmul.f32 %v3969, 1.442695
    %v3972 = vpow.pop %v3971
    %v3973 = vmul.f32 %v3970, 1.442695
    %v3974 = vpow.pop %v3973
    %v3975 = vadd.f32 %v3972, 1.0
    %v3976 = vadd.f32 %v3974, 1.0
    %v3977 = vrcp.pop %v3975
    %v3978 = vmul.f32 1.0, %v3977
    %v3979 = vrcp.pop %v3976
    %v3980 = vmul.f32 1.0, %v3979
    %v3981 = vadd.f32 %v3964, %v270
    %v3982 = vmul.f32 %v3978, %v3981
    %v3983 = vadd.f32 %v544, %v3982
    %v3984 = vtanh.pop %v3983
    %v3985 = vsub.f32 1.0, %v3980
    %v3986 = vmul.f32 %v3985, %v3984
    %v3987 = vmul.f32 %v3980, %v3520
    %v3988 = vadd.f32 %v3986, %v3987
    %3989 = vmatprep.subr.mxu0 %v105
    %3990 = vmatpush1.msra.mxu0 %v104
    %3991 = vmatprep.subr.mxu0 %v108
    %3992 = vmatpush1.msra.mxu0 %v107
    %3993 = vmatprep.subr.mxu0 %v111
    %3994 = vmatpush1.msra.mxu0 %v110
    %3995 = vmatprep.subr.mxu0 %v114
    %3996 = vmatpush1.msra.mxu0 %v113
    %3997 = vmatprep.subr.mxu0 %v117
    %3998 = vmatpush1.msra.mxu0 %v116
    %3999 = vmatprep.subr.mxu0 %v120
    %4000 = vmatpush1.msra.mxu0 %v119
    %4001 = vmatprep.subr.mxu0 %v123
    %4002 = vmatpush1.msra.mxu0 %v122
    %4003 = vmatprep.subr.mxu0 %v126
    %4004 = vmatpush1.msra.mxu0 %v125
    %4005 = vmatprep.subr.mxu0 %v129
    %4006 = vmatpush1.msra.mxu0 %v128
    %4007 = vmatprep.subr.mxu0 %v132
    %4008 = vmatpush1.msra.mxu0 %v131
    %4009 = vmatprep.subr.mxu0 %v135
    %4010 = vmatpush1.msra.mxu0 %v134
    %4011 = vmatprep.subr.mxu0 %v138
    %4012 = vmatpush1.msra.mxu0 %v137
    %4013 = vmatprep.subr.mxu0 %v141
    %4014 = vmatpush1.msra.mxu0 %v140
    %4015 = vmatprep.subr.mxu0 %v144
    %4016 = vmatpush1.msra.mxu0 %v143
    %4017 = vmatprep.subr.mxu0 %v147
    %4018 = vmatpush1.msra.mxu0 %v146
    %4019 = vmatprep.subr.mxu0 %v150
    %4020 = vmatpush1.msra.mxu0 %v149
    %4021 = vmatprep.subr.mxu0 0.0
    %4022 = vmatpush1.msra.mxu0 0.0
    %4023 = vmatprep.subr.mxu0 0.0
    %4024 = vmatpush1.msra.mxu0 0.0
    %4025 = vmatprep.subr.mxu0 0.0
    %4026 = vmatpush1.msra.mxu0 0.0
    %4027 = vmatprep.subr.mxu0 0.0
    %4028 = vmatpush1.msra.mxu0 0.0
    %4029 = vmatprep.subr.mxu0 0.0
    %4030 = vmatpush1.msra.mxu0 0.0
    %4031 = vmatprep.subr.mxu0 0.0
    %4032 = vmatpush1.msra.mxu0 0.0
    %4033 = vmatprep.subr.mxu0 0.0
    %4034 = vmatpush1.msra.mxu0 0.0
    %4035 = vmatprep.subr.mxu0 0.0
    %4036 = vmatpush1.msra.mxu0 0.0
    %4037 = vmatprep.subr.mxu0 0.0
    %4038 = vmatpush1.msra.mxu0 0.0
    %4039 = vmatprep.subr.mxu0 0.0
    %4040 = vmatpush1.msra.mxu0 0.0
    %4041 = vmatprep.subr.mxu0 0.0
    %4042 = vmatpush1.msra.mxu0 0.0
    %4043 = vmatprep.subr.mxu0 0.0
    %4044 = vmatpush1.msra.mxu0 0.0
    %4045 = vmatprep.subr.mxu0 0.0
    %4046 = vmatpush1.msra.mxu0 0.0
    %4047 = vmatprep.subr.mxu0 0.0
    %4048 = vmatpush1.msra.mxu0 0.0
    %4049 = vmatprep.subr.mxu0 0.0
    %4050 = vmatpush1.msra.mxu0 0.0
    %4051 = vmatprep.subr.mxu0 0.0
    %4052 = vmatpush1.msra.mxu0 0.0
    %4053 = vmatprep.mubr.f32.mxu0 0.0
    %4054 = vmatmul.mubr.f32.gmra.mrb[0].mxu0 %v3988
    %v4055 = vpop.f32.mrb[0].mxu0
    %v4056 = vadd.f32 %v253, %v4055
    %v4057 = vpop.f32.mrb[0].mxu0
    %v4058 = vadd.f32 %v257, %v4057
    %4059 = vdwg.mxu0
    %4060 = vmatprep.subr.mxu0 0.0
    %4061 = vmatpush1.msra.mxu0 %v106
    %4062 = vmatprep.subr.mxu0 0.0
    %4063 = vmatpush1.msra.mxu0 %v109
    %4064 = vmatprep.subr.mxu0 0.0
    %4065 = vmatpush1.msra.mxu0 %v112
    %4066 = vmatprep.subr.mxu0 0.0
    %4067 = vmatpush1.msra.mxu0 %v115
    %4068 = vmatprep.subr.mxu0 0.0
    %4069 = vmatpush1.msra.mxu0 %v118
    %4070 = vmatprep.subr.mxu0 0.0
    %4071 = vmatpush1.msra.mxu0 %v121
    %4072 = vmatprep.subr.mxu0 0.0
    %4073 = vmatpush1.msra.mxu0 %v124
    %4074 = vmatprep.subr.mxu0 0.0
    %4075 = vmatpush1.msra.mxu0 %v127
    %4076 = vmatprep.subr.mxu0 0.0
    %4077 = vmatpush1.msra.mxu0 %v130
    %4078 = vmatprep.subr.mxu0 0.0
    %4079 = vmatpush1.msra.mxu0 %v133
    %4080 = vmatprep.subr.mxu0 0.0
    %4081 = vmatpush1.msra.mxu0 %v136
    %4082 = vmatprep.subr.mxu0 0.0
    %4083 = vmatpush1.msra.mxu0 %v139
    %4084 = vmatprep.subr.mxu0 0.0
    %4085 = vmatpush1.msra.mxu0 %v142
    %4086 = vmatprep.subr.mxu0 0.0
    %4087 = vmatpush1.msra.mxu0 %v145
    %4088 = vmatprep.subr.mxu0 0.0
    %4089 = vmatpush1.msra.mxu0 %v148
    %4090 = vmatprep.subr.mxu0 0.0
    %4091 = vmatpush1.msra.mxu0 %v151
    %4092 = vmatprep.subr.mxu0 0.0
    %4093 = vmatpush1.msra.mxu0 0.0
    %4094 = vmatprep.subr.mxu0 0.0
    %4095 = vmatpush1.msra.mxu0 0.0
    %4096 = vmatprep.subr.mxu0 0.0
    %4097 = vmatpush1.msra.mxu0 0.0
    %4098 = vmatprep.subr.mxu0 0.0
    %4099 = vmatpush1.msra.mxu0 0.0
    %4100 = vmatprep.subr.mxu0 0.0
    %4101 = vmatpush1.msra.mxu0 0.0
    %4102 = vmatprep.subr.mxu0 0.0
    %4103 = vmatpush1.msra.mxu0 0.0
    %4104 = vmatprep.subr.mxu0 0.0
    %4105 = vmatpush1.msra.mxu0 0.0
    %4106 = vmatprep.subr.mxu0 0.0
    %4107 = vmatpush1.msra.mxu0 0.0
    %4108 = vmatprep.subr.mxu0 0.0
    %4109 = vmatpush1.msra.mxu0 0.0
    %4110 = vmatprep.subr.mxu0 0.0
    %4111 = vmatpush1.msra.mxu0 0.0
    %4112 = vmatprep.subr.mxu0 0.0
    %4113 = vmatpush1.msra.mxu0 0.0
    %4114 = vmatprep.subr.mxu0 0.0
    %4115 = vmatpush1.msra.mxu0 0.0
    %4116 = vmatprep.subr.mxu0 0.0
    %4117 = vmatpush1.msra.mxu0 0.0
    %4118 = vmatprep.subr.mxu0 0.0
    %4119 = vmatpush1.msra.mxu0 0.0
    %4120 = vmatprep.subr.mxu0 0.0
    %4121 = vmatpush1.msra.mxu0 0.0
    %4122 = vmatprep.subr.mxu0 0.0
    %4123 = vmatpush1.msra.mxu0 0.0
    %4124 = vmatprep.mubr.f32.mxu0 0.0
    %4125 = vmatmul.mubr.f32.gmra.mrb[0].mxu0 %v3988
    %v4126 = vpop.f32.mrb[0].mxu0
    %v4127 = vadd.f32 %v261, %v4126
    %v4128 = vpop.f32.mrb[0].mxu0
    %4129 = vdwg.mxu0
    %4130 = vmatprep.subr.mxu0 %v201
    %4131 = vmatpush1.msra.mxu0 %v200
    %4132 = vmatprep.subr.mxu0 %v204
    %4133 = vmatpush1.msra.mxu0 %v203
    %4134 = vmatprep.subr.mxu0 %v207
    %4135 = vmatpush1.msra.mxu0 %v206
    %4136 = vmatprep.subr.mxu0 %v210
    %4137 = vmatpush1.msra.mxu0 %v209
    %4138 = vmatprep.subr.mxu0 %v213
    %4139 = vmatpush1.msra.mxu0 %v212
    %4140 = vmatprep.subr.mxu0 %v216
    %4141 = vmatpush1.msra.mxu0 %v215
    %4142 = vmatprep.subr.mxu0 %v219
    %4143 = vmatpush1.msra.mxu0 %v218
    %4144 = vmatprep.subr.mxu0 %v222
    %4145 = vmatpush1.msra.mxu0 %v221
    %4146 = vmatprep.subr.mxu0 %v225
    %4147 = vmatpush1.msra.mxu0 %v224
    %4148 = vmatprep.subr.mxu0 %v228
    %4149 = vmatpush1.msra.mxu0 %v227
    %4150 = vmatprep.subr.mxu0 %v231
    %4151 = vmatpush1.msra.mxu0 %v230
    %4152 = vmatprep.subr.mxu0 %v234
    %4153 = vmatpush1.msra.mxu0 %v233
    %4154 = vmatprep.subr.mxu0 %v237
    %4155 = vmatpush1.msra.mxu0 %v236
    %4156 = vmatprep.subr.mxu0 %v240
    %4157 = vmatpush1.msra.mxu0 %v239
    %4158 = vmatprep.subr.mxu0 %v243
    %4159 = vmatpush1.msra.mxu0 %v242
    %4160 = vmatprep.subr.mxu0 %v246
    %4161 = vmatpush1.msra.mxu0 %v245
    %4162 = vmatprep.subr.mxu0 0.0
    %4163 = vmatpush1.msra.mxu0 0.0
    %4164 = vmatprep.subr.mxu0 0.0
    %4165 = vmatpush1.msra.mxu0 0.0
    %4166 = vmatprep.subr.mxu0 0.0
    %4167 = vmatpush1.msra.mxu0 0.0
    %4168 = vmatprep.subr.mxu0 0.0
    %4169 = vmatpush1.msra.mxu0 0.0
    %4170 = vmatprep.subr.mxu0 0.0
    %4171 = vmatpush1.msra.mxu0 0.0
    %4172 = vmatprep.subr.mxu0 0.0
    %4173 = vmatpush1.msra.mxu0 0.0
    %4174 = vmatprep.subr.mxu0 0.0
    %4175 = vmatpush1.msra.mxu0 0.0
    %4176 = vmatprep.subr.mxu0 0.0
    %4177 = vmatpush1.msra.mxu0 0.0
    %4178 = vmatprep.subr.mxu0 0.0
    %4179 = vmatpush1.msra.mxu0 0.0
    %4180 = vmatprep.subr.mxu0 0.0
    %4181 = vmatpush1.msra.mxu0 0.0
    %4182 = vmatprep.subr.mxu0 0.0
    %4183 = vmatpush1.msra.mxu0 0.0
    %4184 = vmatprep.subr.mxu0 0.0
    %4185 = vmatpush1.msra.mxu0 0.0
    %4186 = vmatprep.subr.mxu0 0.0
    %4187 = vmatpush1.msra.mxu0 0.0
    %4188 = vmatprep.subr.mxu0 0.0
    %4189 = vmatpush1.msra.mxu0 0.0
    %4190 = vmatprep.subr.mxu0 0.0
    %4191 = vmatpush1.msra.mxu0 0.0
    %4192 = vmatprep.subr.mxu0 0.0
    %4193 = vmatpush1.msra.mxu0 0.0
    %4194 = vmatprep.mubr.f32.mxu0 0.0
    %4195 = vmatmul.mubr.f32.gmra.mrb[0].mxu0 %v3824
    %v4196 = vpop.f32.mrb[0].mxu0
    %v4197 = vadd.f32 0.0, %v4196
    %v4198 = vpop.f32.mrb[0].mxu0
    %v4199 = vadd.f32 0.0, %v4198
    %4200 = vdwg.mxu0
    %4201 = vmatprep.subr.mxu0 0.0
    %4202 = vmatpush1.msra.mxu0 %v202
    %4203 = vmatprep.subr.mxu0 0.0
    %4204 = vmatpush1.msra.mxu0 %v205
    %4205 = vmatprep.subr.mxu0 0.0
    %4206 = vmatpush1.msra.mxu0 %v208
    %4207 = vmatprep.subr.mxu0 0.0
    %4208 = vmatpush1.msra.mxu0 %v211
    %4209 = vmatprep.subr.mxu0 0.0
    %4210 = vmatpush1.msra.mxu0 %v214
    %4211 = vmatprep.subr.mxu0 0.0
    %4212 = vmatpush1.msra.mxu0 %v217
    %4213 = vmatprep.subr.mxu0 0.0
    %4214 = vmatpush1.msra.mxu0 %v220
    %4215 = vmatprep.subr.mxu0 0.0
    %4216 = vmatpush1.msra.mxu0 %v223
    %4217 = vmatprep.subr.mxu0 0.0
    %4218 = vmatpush1.msra.mxu0 %v226
    %4219 = vmatprep.subr.mxu0 0.0
    %4220 = vmatpush1.msra.mxu0 %v229
    %4221 = vmatprep.subr.mxu0 0.0
    %4222 = vmatpush1.msra.mxu0 %v232
    %4223 = vmatprep.subr.mxu0 0.0
    %4224 = vmatpush1.msra.mxu0 %v235
    %4225 = vmatprep.subr.mxu0 0.0
    %4226 = vmatpush1.msra.mxu0 %v238
    %4227 = vmatprep.subr.mxu0 0.0
    %4228 = vmatpush1.msra.mxu0 %v241
    %4229 = vmatprep.subr.mxu0 0.0
    %4230 = vmatpush1.msra.mxu0 %v244
    %4231 = vmatprep.subr.mxu0 0.0
    %4232 = vmatpush1.msra.mxu0 %v247
    %4233 = vmatprep.subr.mxu0 0.0
    %4234 = vmatpush1.msra.mxu0 0.0
    %4235 = vmatprep.subr.mxu0 0.0
    %4236 = vmatpush1.msra.mxu0 0.0
    %4237 = vmatprep.subr.mxu0 0.0
    %4238 = vmatpush1.msra.mxu0 0.0
    %4239 = vmatprep.subr.mxu0 0.0
    %4240 = vmatpush1.msra.mxu0 0.0
    %4241 = vmatprep.subr.mxu0 0.0
    %4242 = vmatpush1.msra.mxu0 0.0
    %4243 = vmatprep.subr.mxu0 0.0
    %4244 = vmatpush1.msra.mxu0 0.0
    %4245 = vmatprep.subr.mxu0 0.0
    %4246 = vmatpush1.msra.mxu0 0.0
    %4247 = vmatprep.subr.mxu0 0.0
    %4248 = vmatpush1.msra.mxu0 0.0
    %4249 = vmatprep.subr.mxu0 0.0
    %4250 = vmatpush1.msra.mxu0 0.0
    %4251 = vmatprep.subr.mxu0 0.0
    %4252 = vmatpush1.msra.mxu0 0.0
    %4253 = vmatprep.subr.mxu0 0.0
    %4254 = vmatpush1.msra.mxu0 0.0
    %4255 = vmatprep.subr.mxu0 0.0
    %4256 = vmatpush1.msra.mxu0 0.0
    %4257 = vmatprep.subr.mxu0 0.0
    %4258 = vmatpush1.msra.mxu0 0.0
    %4259 = vmatprep.subr.mxu0 0.0
    %4260 = vmatpush1.msra.mxu0 0.0
    %4261 = vmatprep.subr.mxu0 0.0
    %4262 = vmatpush1.msra.mxu0 0.0
    %4263 = vmatprep.subr.mxu0 0.0
    %4264 = vmatpush1.msra.mxu0 0.0
    %4265 = vmatprep.mubr.f32.mxu0 0.0
    %4266 = vmatmul.mubr.f32.gmra.mrb[0].mxu0 %v3824
    %v4267 = vpop.f32.mrb[0].mxu0
    %v4268 = vadd.f32 0.0, %v4267
    %v4269 = vpop.f32.mrb[0].mxu0
    %4270 = vdwg.mxu0
    %v4271 = vadd.f32 %v4056, %v4197
    %v4272 = vadd.f32 %v4058, %v4199
    %v4273 = vxor.u32 %v4271, 2147483648
    %v4274 = vxor.u32 %v4272, 2147483648
    %v4275 = vmul.f32 %v4273, 1.442695
    %v4276 = vpow.pop %v4275
    %v4277 = vmul.f32 %v4274, 1.442695
    %v4278 = vpow.pop %v4277
    %v4279 = vadd.f32 %v4276, 1.0
    %v4280 = vadd.f32 %v4278, 1.0
    %v4281 = vrcp.pop %v4279
    %v4282 = vmul.f32 1.0, %v4281
    %v4283 = vrcp.pop %v4280
    %v4284 = vmul.f32 1.0, %v4283
    %v4285 = vadd.f32 %v4268, %v277
    %v4286 = vmul.f32 %v4282, %v4285
    %v4287 = vadd.f32 %v4127, %v4286
    %v4288 = vtanh.pop %v4287
    %v4289 = vsub.f32 1.0, %v4284
    %v4290 = vmul.f32 %v4289, %v4288
    %v4291 = vmul.f32 %v4284, %v3824
    %v4292 = vadd.f32 %v4290, %v4291
    %4293 = vst [vmem:[#allocation2 + $0x38] sm:$0xff] %v4292
    %4294 = vst [vmem:[%s13] sm:$0xff] %v3988
    %s4295 = scalar_lea.vmem %s13, 8
    %4296 = vst [vmem:[%s4295] sm:$0xff] %v4292
    %v4297 = vld [vmem:[#allocation2] sm:$0xff]
    %v4298 = vld [vmem:[#allocation2 + $0x8] sm:$0xff]
    %v4299 = vld [vmem:[#allocation2 + $0x10] sm:$0xff]
    %v4300 = vld [vmem:[#allocation2 + $0x18] sm:$0xff]
    %v4301 = vld [vmem:[#allocation2 + $0x20] sm:$0xff]
    %v4302 = vld [vmem:[#allocation2 + $0x28] sm:$0xff]
    %v4303 = vld [vmem:[#allocation2 + $0x30] sm:$0xff]
    %v4304 = vld [vmem:[#allocation2 + $0x38] sm:$0xff]
    %v4305 = vld [vmem:[%s10] sm:$0xff]
    %v4306 = vld [vmem:[%s10 + $0x8] sm:$0xff]
    %v4307 = vld [vmem:[%s10 + $0x10] sm:$0xff]
    %v4308 = vld [vmem:[%s10 + $0x18] sm:$0xff]
    %v4309 = vld [vmem:[%s10 + $0x20] sm:$0xff]
    %v4310 = vld [vmem:[%s10 + $0x28] sm:$0xff]
    %v4311 = vld [vmem:[%s10 + $0x30] sm:$0xff]
    %v4312 = vld [vmem:[%s10 + $0x38] sm:$0xff]
    %v4313 = vld [vmem:[%s10 + $0x40] sm:$0xff]
    %v4314 = vld [vmem:[%s10 + $0x48] sm:$0xff]
    %v4315 = vld [vmem:[%s10 + $0x50] sm:$0xff]
    %v4316 = vld [vmem:[%s10 + $0x58] sm:$0xff]
    %v4317 = vld [vmem:[%s10 + $0x60] sm:$0xff]
    %v4318 = vld [vmem:[%s10 + $0x68] sm:$0xff]
    %v4319 = vld [vmem:[%s10 + $0x70] sm:$0xff]
    %v4320 = vld [vmem:[%s10 + $0x78] sm:$0xff]
    %v4321 = vld [vmem:[%s11] sm:$0x1]
    %v4323 = vlaneseq
    %v4324 = vshrl.u32 %v4323, 7
    %v4325 = vsub.s32 0, %v4324
    %v4326 = vrot.slane %v4321, %v4325
    %4328 = vmatprep.subr.mxu0 0.0
    %4329 = vmatpush1.msra.mxu0 %v4305
    %4330 = vmatprep.subr.mxu0 0.0
    %4331 = vmatpush1.msra.mxu0 %v4306
    %4332 = vmatprep.subr.mxu0 0.0
    %4333 = vmatpush1.msra.mxu0 %v4307
    %4334 = vmatprep.subr.mxu0 0.0
    %4335 = vmatpush1.msra.mxu0 %v4308
    %4336 = vmatprep.subr.mxu0 0.0
    %4337 = vmatpush1.msra.mxu0 %v4309
    %4338 = vmatprep.subr.mxu0 0.0
    %4339 = vmatpush1.msra.mxu0 %v4310
    %4340 = vmatprep.subr.mxu0 0.0
    %4341 = vmatpush1.msra.mxu0 %v4311
    %4342 = vmatprep.subr.mxu0 0.0
    %4343 = vmatpush1.msra.mxu0 %v4312
    %4344 = vmatprep.subr.mxu0 0.0
    %4345 = vmatpush1.msra.mxu0 %v4313
    %4346 = vmatprep.subr.mxu0 0.0
    %4347 = vmatpush1.msra.mxu0 %v4314
    %4348 = vmatprep.subr.mxu0 0.0
    %4349 = vmatpush1.msra.mxu0 %v4315
    %4350 = vmatprep.subr.mxu0 0.0
    %4351 = vmatpush1.msra.mxu0 %v4316
    %4352 = vmatprep.subr.mxu0 0.0
    %4353 = vmatpush1.msra.mxu0 %v4317
    %4354 = vmatprep.subr.mxu0 0.0
    %4355 = vmatpush1.msra.mxu0 %v4318
    %4356 = vmatprep.subr.mxu0 0.0
    %4357 = vmatpush1.msra.mxu0 %v4319
    %4358 = vmatprep.subr.mxu0 0.0
    %4359 = vmatpush1.msra.mxu0 %v4320
    %4360 = vmatprep.subr.mxu0 0.0
    %4361 = vmatpush1.msra.mxu0 0.0
    %4362 = vmatprep.subr.mxu0 0.0
    %4363 = vmatpush1.msra.mxu0 0.0
    %4364 = vmatprep.subr.mxu0 0.0
    %4365 = vmatpush1.msra.mxu0 0.0
    %4366 = vmatprep.subr.mxu0 0.0
    %4367 = vmatpush1.msra.mxu0 0.0
    %4368 = vmatprep.subr.mxu0 0.0
    %4369 = vmatpush1.msra.mxu0 0.0
    %4370 = vmatprep.subr.mxu0 0.0
    %4371 = vmatpush1.msra.mxu0 0.0
    %4372 = vmatprep.subr.mxu0 0.0
    %4373 = vmatpush1.msra.mxu0 0.0
    %4374 = vmatprep.subr.mxu0 0.0
    %4375 = vmatpush1.msra.mxu0 0.0
    %4376 = vmatprep.subr.mxu0 0.0
    %4377 = vmatpush1.msra.mxu0 0.0
    %4378 = vmatprep.subr.mxu0 0.0
    %4379 = vmatpush1.msra.mxu0 0.0
    %4380 = vmatprep.subr.mxu0 0.0
    %4381 = vmatpush1.msra.mxu0 0.0
    %4382 = vmatprep.subr.mxu0 0.0
    %4383 = vmatpush1.msra.mxu0 0.0
    %4384 = vmatprep.subr.mxu0 0.0
    %4385 = vmatpush1.msra.mxu0 0.0
    %4386 = vmatprep.subr.mxu0 0.0
    %4387 = vmatpush1.msra.mxu0 0.0
    %4388 = vmatprep.subr.mxu0 0.0
    %4389 = vmatpush1.msra.mxu0 0.0
    %4390 = vmatprep.subr.mxu0 0.0
    %4391 = vmatpush1.msra.mxu0 0.0
    %4392 = vmatprep.mubr.f32.mxu0 0.0
    %4393 = vmatmul.mubr.f32.gmra.mrb[0].mxu0 %v4297
    %v4394 = vpop.f32.mrb[0].mxu0
    %v4395 = vadd.f32 %v4326, %v4394
    %v4396 = vpop.f32.mrb[0].mxu0
    %4397 = vmatprep.mubr.f32.mxu0 0.0
    %4398 = vmatmul.mubr.f32.gmra.mrb[0].mxu0 %v4298
    %v4399 = vpop.f32.mrb[0].mxu0
    %v4400 = vadd.f32 %v4326, %v4399
    %v4401 = vpop.f32.mrb[0].mxu0
    %4402 = vmatprep.mubr.f32.mxu0 0.0
    %4403 = vmatmul.mubr.f32.gmra.mrb[0].mxu0 %v4299
    %v4404 = vpop.f32.mrb[0].mxu0
    %v4405 = vadd.f32 %v4326, %v4404
    %v4406 = vpop.f32.mrb[0].mxu0
    %4407 = vmatprep.mubr.f32.mxu0 0.0
    %4408 = vmatmul.mubr.f32.gmra.mrb[0].mxu0 %v4300
    %v4409 = vpop.f32.mrb[0].mxu0
    %v4410 = vadd.f32 %v4326, %v4409
    %v4411 = vpop.f32.mrb[0].mxu0
    %4412 = vmatprep.mubr.f32.mxu0 0.0
    %4413 = vmatmul.mubr.f32.gmra.mrb[0].mxu0 %v4301
    %v4414 = vpop.f32.mrb[0].mxu0
    %v4415 = vadd.f32 %v4326, %v4414
    %v4416 = vpop.f32.mrb[0].mxu0
    %4417 = vmatprep.mubr.f32.mxu0 0.0
    %4418 = vmatmul.mubr.f32.gmra.mrb[0].mxu0 %v4302
    %v4419 = vpop.f32.mrb[0].mxu0
    %v4420 = vadd.f32 %v4326, %v4419
    %v4421 = vpop.f32.mrb[0].mxu0
    %4422 = vmatprep.mubr.f32.mxu0 0.0
    %4423 = vmatmul.mubr.f32.gmra.mrb[0].mxu0 %v4303
    %v4424 = vpop.f32.mrb[0].mxu0
    %v4425 = vadd.f32 %v4326, %v4424
    %v4426 = vpop.f32.mrb[0].mxu0
    %4427 = vmatprep.mubr.f32.mxu0 0.0
    %4428 = vmatmul.mubr.f32.gmra.mrb[0].mxu0 %v4304
    %v4429 = vpop.f32.mrb[0].mxu0
    %v4430 = vadd.f32 %v4326, %v4429
    %v4431 = vpop.f32.mrb[0].mxu0
    %4432 = vdwg.mxu0
    %4433 = vmax.xlane.f32.xlu0 %v4395
    %v4434 = vpop.xlane.xlu0 %4433
    %4435 = vmax.xlane.f32.xlu0 %v4400
    %v4436 = vpop.xlane.xlu0 %4435
    %4437 = vmax.xlane.f32.xlu0 %v4405
    %v4438 = vpop.xlane.xlu0 %4437
    %4439 = vmax.xlane.f32.xlu0 %v4410
    %v4440 = vpop.xlane.xlu0 %4439
    %4441 = vmax.xlane.f32.xlu0 %v4415
    %v4442 = vpop.xlane.xlu0 %4441
    %4443 = vmax.xlane.f32.xlu0 %v4420
    %v4444 = vpop.xlane.xlu0 %4443
    %4445 = vmax.xlane.f32.xlu0 %v4425
    %v4446 = vpop.xlane.xlu0 %4445
    %4447 = vmax.xlane.f32.xlu0 %v4430
    %v4448 = vpop.xlane.xlu0 %4447
    %v4449 = vsub.f32 %v4395, %v4434
    %v4450 = vsub.f32 %v4400, %v4436
    %v4451 = vsub.f32 %v4405, %v4438
    %v4452 = vsub.f32 %v4410, %v4440
    %v4453 = vsub.f32 %v4415, %v4442
    %v4454 = vsub.f32 %v4420, %v4444
    %v4455 = vsub.f32 %v4425, %v4446
    %v4456 = vsub.f32 %v4430, %v4448
    %v4457 = vmul.f32 %v4449, 1.442695
    %v4458 = vpow.pop %v4457
    %v4459 = vmul.f32 %v4450, 1.442695
    %v4460 = vpow.pop %v4459
    %v4461 = vmul.f32 %v4451, 1.442695
    %v4462 = vpow.pop %v4461
    %v4463 = vmul.f32 %v4452, 1.442695
    %v4464 = vpow.pop %v4463
    %v4465 = vmul.f32 %v4453, 1.442695
    %v4466 = vpow.pop %v4465
    %v4467 = vmul.f32 %v4454, 1.442695
    %v4468 = vpow.pop %v4467
    %v4469 = vmul.f32 %v4455, 1.442695
    %v4470 = vpow.pop %v4469
    %v4471 = vmul.f32 %v4456, 1.442695
    %v4472 = vpow.pop %v4471
    %4473 = vadd.xlane.f32.xlu0 %v4458
    %v4474 = vpop.xlane.xlu0 %4473
    %4475 = vadd.xlane.f32.xlu0 %v4460
    %v4476 = vpop.xlane.xlu0 %4475
    %4477 = vadd.xlane.f32.xlu0 %v4462
    %v4478 = vpop.xlane.xlu0 %4477
    %4479 = vadd.xlane.f32.xlu0 %v4464
    %v4480 = vpop.xlane.xlu0 %4479
    %4481 = vadd.xlane.f32.xlu0 %v4466
    %v4482 = vpop.xlane.xlu0 %4481
    %4483 = vadd.xlane.f32.xlu0 %v4468
    %v4484 = vpop.xlane.xlu0 %4483
    %4485 = vadd.xlane.f32.xlu0 %v4470
    %v4486 = vpop.xlane.xlu0 %4485
    %4487 = vadd.xlane.f32.xlu0 %v4472
    %v4488 = vpop.xlane.xlu0 %4487
    %v4489 = vrcp.pop %v4474
    %v4490 = vrcp.pop %v4476
    %v4491 = vrcp.pop %v4478
    %v4492 = vrcp.pop %v4480
    %v4493 = vrcp.pop %v4482
    %v4494 = vrcp.pop %v4484
    %v4495 = vrcp.pop %v4486
    %v4496 = vrcp.pop %v4488
    %v4497 = vmul.f32 %v4458, %v4489
    %v4498 = vmul.f32 %v4460, %v4490
    %v4499 = vmul.f32 %v4462, %v4491
    %v4500 = vmul.f32 %v4464, %v4492
    %v4501 = vmul.f32 %v4466, %v4493
    %v4502 = vmul.f32 %v4468, %v4494
    %v4503 = vmul.f32 %v4470, %v4495
    %v4504 = vmul.f32 %v4472, %v4496
    %4505 = vst [vmem:[%s12] sm:$0xff] %v4497
    %4506 = vst [vmem:[%s12 + $0x8] sm:$0xff] %v4498
    %4507 = vst [vmem:[%s12 + $0x10] sm:$0xff] %v4499
    %4508 = vst [vmem:[%s12 + $0x18] sm:$0xff] %v4500
    %4509 = vst [vmem:[%s12 + $0x20] sm:$0xff] %v4501
    %4510 = vst [vmem:[%s12 + $0x28] sm:$0xff] %v4502
    %4511 = vst [vmem:[%s12 + $0x30] sm:$0xff] %v4503
    %4512 = vst [vmem:[%s12 + $0x38] sm:$0xff] %v4504
    // Predicated region
    $region66: #{rc_action_model5_forward.1} parent=1 // pred_check
      _
    $region67: #{rc_action_model5_forward.1} parent=1 // pred_check_branch
      %4514 = sbr.rel (0) target = $region69
    $region68: #{rc_action_model5_forward.1} parent=1 // pred_region
      _
    $region69: #{rc_action_model5_forward.1} parent=1 // pred_fallthru
      _
    // Predicated region
    $region70: #{rc_action_model5_forward.1} parent=1 // pred_check
      _
    $region71: #{rc_action_model5_forward.1} parent=1 // pred_check_branch
      %4516 = sbr.rel (0) target = $region73
    $region72: #{rc_action_model5_forward.1} parent=1 // pred_region
      _
    $region73: #{rc_action_model5_forward.1} parent=1 // pred_fallthru
      _
    // Predicated region
    $region74: #{rc_action_model5_forward.1} parent=1 // pred_check
      _
    $region75: #{rc_action_model5_forward.1} parent=1 // pred_check_branch
      %4518 = sbr.rel (0) target = $region77
    $region76: #{rc_action_model5_forward.1} parent=1 // pred_region
      _
    $region77: #{rc_action_model5_forward.1} parent=1 // pred_fallthru
      _
    // Predicated region
    $region78: #{rc_action_model5_forward.1} parent=1 // pred_check
      _
    $region79: #{rc_action_model5_forward.1} parent=1 // pred_check_branch
      %4520 = sbr.rel (0) target = $region81
    $region80: #{rc_action_model5_forward.1} parent=1 // pred_region
      _
    $region81: #{rc_action_model5_forward.1} parent=1 // pred_fallthru
      _
    %4521 = vsyncpa [#allocation4], 1
    %4522 = vsyncpa [#allocation6], 1
    %4523 = vsyncpa [#allocation9], 1

</llo_original>
